<compile_context>
chip_gen: v7x
topology: tpu7x:2x2x1
jax: 0.10.0
libtpu: 0.0.40
codegen_flags: <defaults>
</compile_context>

<pallas_src>
import functools

import jax
import jax.numpy as jnp
from jax.experimental import pallas as pl
from jax.experimental.pallas import tpu as pltpu


TILE_N = 11264  # 88 * 128 lanes; Cout*K*K = 90000 pads to P = 90112 -> 8 grid steps


def convt_clamp_kernel(x_ref, w_ref, b_ref, o_ref, *, min_value, max_value):
    # x_ref: (N, Cin)   w_ref: (Cin, TN)   b_ref: (1, TN)   o_ref: (N, TN)
    y = jnp.dot(x_ref[...], w_ref[...], preferred_element_type=jnp.float32)
    y = y + b_ref[...]
    y = jnp.maximum(y, min_value)   # torch.clamp_min
    y = jnp.minimum(y, max_value)   # torch.clamp_max
    o_ref[...] = y.astype(o_ref.dtype)


def prepare_convt_params(w, b, *, tile_n=TILE_N):
    """One-time (out-of-hot-path) flatten + lane pad of the ConvTranspose2d params.

    w: (Cin, Cout, K, K) f32, b: (Cout,) f32
    returns w_pad: (Cin, P) f32, b_pad: (1, P) f32 with P a multiple of tile_n.
    """
    Cin, Cout, K, _ = w.shape
    M = Cout * K * K
    P = pl.cdiv(M, tile_n) * tile_n
    w_pad = jnp.pad(w.reshape(Cin, M), ((0, 0), (0, P - M)))
    b_pad = jnp.pad(
        jnp.broadcast_to(b[:, None, None], (Cout, K, K)).reshape(1, M),
        ((0, 0), (0, P - M)),
    )
    return w_pad, b_pad


@functools.partial(
    jax.jit, static_argnames=("cout", "k", "min_value", "max_value", "tile_n")
)
def conv_transpose_1x1_clamp(
    x, w_pad, b_pad, *, cout, k, min_value=0.0, max_value=0.0, tile_n=TILE_N
):
    """x: (N, Cin, 1, 1) f32; w_pad/b_pad from prepare_convt_params()."""
    N, Cin, Hin, Win = x.shape
    assert Hin == 1 and Win == 1, "kernel specialized for 1x1 spatial input"
    P = w_pad.shape[1]
    assert P % tile_n == 0
    M = cout * k * k

    x2 = x.reshape(N, Cin)

    kernel = functools.partial(
        convt_clamp_kernel, min_value=min_value, max_value=max_value
    )

    out = pl.pallas_call(
        kernel,
        out_shape=jax.ShapeDtypeStruct((N, P), jnp.float32),
        grid_spec=pltpu.PrefetchScalarGridSpec(
            num_scalar_prefetch=0,
            grid=(P // tile_n,),  # 8 steps at TILE_N -> even split on v7x megacore
            in_specs=[
                pl.BlockSpec((N, Cin), lambda j: (0, 0)),       # full x every step
                pl.BlockSpec((Cin, tile_n), lambda j: (0, j)),  # weight column tile
                pl.BlockSpec((1, tile_n), lambda j: (0, j)),    # bias column tile
            ],
            out_specs=pl.BlockSpec((N, tile_n), lambda j: (0, j)),
        ),
        compiler_params=pltpu.CompilerParams(
            dimension_semantics=("parallel",),
        ),
    )(x2, w_pad, b_pad)

    return out[:, :M].reshape(N, cout, k, k)


if __name__ == "__main__":
    # Module hyperparameters (from __init__ / forward):
    Cin, Cout, K = 32, 16, 75
    min_value, max_value = 0.0, 0.0
    N = 1  # forward implies a (N, 32, 1, 1) input for conv_transpose

    key = jax.random.PRNGKey(0)
    kx, kw, kb = jax.random.split(key, 3)

    # Deterministic parameter init (PyTorch-style uniform bounds).
    fan_in = Cin * K * K
    bound = 1.0 / (fan_in ** 0.5)
    w = jax.random.uniform(kw, (Cin, Cout, K, K), jnp.float32, -bound, bound)
    b = jax.random.uniform(kb, (Cout,), jnp.float32, -bound, bound)
    x = jax.random.normal(kx, (N, Cin, 1, 1), jnp.float32)

    # One-time parameter prep (hoisted out of the steady-state forward path).
    w_pad, b_pad = jax.block_until_ready(prepare_convt_params(w, b))

    # Module-faithful forward: clamp_min(0) then clamp_max(0).
    y = conv_transpose_1x1_clamp(
        x, w_pad, b_pad, cout=Cout, k=K, min_value=min_value, max_value=max_value
    )
    y = jax.block_until_ready(y)

    ref = jnp.einsum("nc,cokl->nokl", x.reshape(N, Cin), w) + b[None, :, None, None]
    ref = jnp.minimum(jnp.maximum(ref, min_value), max_value)
    assert y.shape == (N, Cout, K, K)
    assert jnp.allclose(y, ref, atol=1e-5), "mismatch vs reference (clamp 0,0)"

    # Sanity check with a non-degenerate clamp window to exercise the matmul path.
    y2 = jax.block_until_ready(
        conv_transpose_1x1_clamp(
            x, w_pad, b_pad, cout=Cout, k=K, min_value=-0.25, max_value=0.25
        )
    )
    ref2 = jnp.einsum("nc,cokl->nokl", x.reshape(N, Cin), w) + b[None, :, None, None]
    ref2 = jnp.minimum(jnp.maximum(ref2, -0.25), 0.25)
    assert jnp.allclose(y2, ref2, atol=1e-5), "mismatch vs reference (clamp -.25,.25)"

    print("KERNEL_OK")
</pallas_src>

<mosaic_0001>
module attributes {stable_mosaic.version = 11 : i64} {
  func.func @convt_clamp_kernel(%arg0: i32, %arg1: memref<1x32xf32, #tpu.memory_space<vmem>>, %arg2: memref<32x11264xf32, #tpu.memory_space<vmem>>, %arg3: memref<1x11264xf32, #tpu.memory_space<vmem>>, %arg4: memref<1x11264xf32, #tpu.memory_space<vmem>>) attributes {dimension_semantics = [#tpu.dimension_semantics<parallel>], iteration_bounds = array<i64: 8>, scalar_prefetch = 0 : i64, scratch_operands = 0 : i64, tpu.core_type = #tpu.core_type<tc>, window_params = [{pipeline_mode = #tpu.pipeline_mode<synchronous>, transform_indices = @transform_0, window_bounds = array<i64: 1, 32>}, {transform_indices = @transform_1, window_bounds = array<i64: 32, 11264>}, {transform_indices = @transform_2, window_bounds = array<i64: 1, 11264>}, {transform_indices = @transform_3, window_bounds = array<i64: 1, 11264>}]} {
    %c0 = arith.constant 0 : index
    %c0_0 = arith.constant 0 : index
    %0 = vector.load %arg1[%c0, %c0_0] : memref<1x32xf32, #tpu.memory_space<vmem>>, vector<1x32xf32>
    %c0_1 = arith.constant 0 : index
    %c0_2 = arith.constant 0 : index
    %1 = vector.load %arg2[%c0_1, %c0_2] : memref<32x11264xf32, #tpu.memory_space<vmem>>, vector<32x11264xf32>
    %cst = arith.constant dense<0.000000e+00> : vector<1x11264xf32>
    %2 = tpu.matmul %0, %1, %cst {dimension_numbers = #tpu.dot_dimension_numbers<[1], [0], [0], [1], [0, 0, 1, 1], [], []>} : vector<1x32xf32>, vector<32x11264xf32>, vector<1x11264xf32> -> vector<1x11264xf32>
    %c0_3 = arith.constant 0 : index
    %c0_4 = arith.constant 0 : index
    %3 = vector.load %arg3[%c0_3, %c0_4] : memref<1x11264xf32, #tpu.memory_space<vmem>>, vector<1x11264xf32>
    %4 = arith.addf %2, %3 : vector<1x11264xf32>
    %cst_5 = arith.constant 0.000000e+00 : f32
    %5 = vector.broadcast %cst_5 : f32 to vector<1x11264xf32>
    %6 = arith.maximumf %4, %5 : vector<1x11264xf32>
    %cst_6 = arith.constant 0.000000e+00 : f32
    %7 = vector.broadcast %cst_6 : f32 to vector<1x11264xf32>
    %8 = arith.minimumf %6, %7 : vector<1x11264xf32>
    %c0_7 = arith.constant 0 : index
    %c0_8 = arith.constant 0 : index
    %9 = vector.load %arg4[%c0_7, %c0_8] : memref<1x11264xf32, #tpu.memory_space<vmem>>, vector<1x11264xf32>
    tpu.vector_store %arg4[%c0_7, %c0_8], %8 {strides = array<i32>} : memref<1x11264xf32, #tpu.memory_space<vmem>>, vector<1x11264xf32>,
    return
  }
  func.func @transform_0(%arg0: i32) -> (i32, i32) {
    %c0_i32 = arith.constant 0 : i32
    %c0_i32_0 = arith.constant 0 : i32
    %c0_i32_1 = arith.constant 0 : i32
    return %c0_i32, %c0_i32_0 : i32, i32
  }
  func.func @transform_1(%arg0: i32) -> (i32, i32) {
    %c0_i32 = arith.constant 0 : i32
    %c0_i32_0 = arith.constant 0 : i32
    return %c0_i32, %arg0 : i32, i32
  }
  func.func @transform_2(%arg0: i32) -> (i32, i32) {
    %c0_i32 = arith.constant 0 : i32
    %c0_i32_0 = arith.constant 0 : i32
    return %c0_i32, %arg0 : i32, i32
  }
  func.func @transform_3(%arg0: i32) -> (i32, i32) {
    %c0_i32 = arith.constant 0 : i32
    %c0_i32_0 = arith.constant 0 : i32
    return %c0_i32, %arg0 : i32, i32
  }
}

</mosaic_0001>

<llo_original>
// kernel: conv_transpose_1x1_clamp.1
$region0: #{conv_transpose_1x1_clamp.1}
  #allocation0 [shape = 'u32[]', space=smem, size = 0x4, offset = 0x4, fixed_abs, tag = 'smem constant byte address 0x4 - core index']
  #allocation1 [shape = 'u32[144,128]{1,0:T(1,128)}', space=vmem, size = 0x12000, scoped, tag = 'internal scratch']
  %s0 = inlined_call_operand.hbm [shape: f32[1,32], index: 0, kind: input, shape index: {}]
  %s1 = inlined_call_operand.hbm [shape: f32[32,90112], index: 1, kind: input, shape index: {}]
  %s2 = inlined_call_operand.hbm [shape: f32[1,90112], index: 2, kind: input, shape index: {}]
  %s3 = inlined_call_operand.vmem [shape: f32[1,90112], index: 3, kind: output, shape index: {}]
  %s4 = sld [smem:[#allocation0]]
  $region57: #{conv_transpose_1x1_clamp.1} parent=0
    _
  %s6 = ssub.s32 1, %s4
  %s7 = scalar_select 0, %s6, %s4
  $region1: #{conv_transpose_1x1_clamp.1} parent=0
    #allocation2 [shape = 'u8[512]{0}', space=vmem, size = 0x400, scoped, tag = 'input window, operand 0, single buffered']
    #allocation3 [shape = 's32[2]{0}', space=sflag, size = 0x8, scoped, tag = 'scoped memory for conv_transpose_1x1_clamp.1']
    #allocation4 [shape = 'u8[2883584]{0}', space=vmem, size = 0x2c0000, scoped, tag = 'input window, operand 1']
    #allocation5 [shape = 's32[2]{0}', space=sflag, size = 0x8, scoped, tag = 'scoped memory for conv_transpose_1x1_clamp.1']
    #allocation6 [shape = 'u8[90112]{0}', space=vmem, size = 0x16000, scoped, tag = 'input window, operand 2']
    %8 = vsyncpa [#allocation3], 0
    %9 = vsyncpa [#allocation5], 0
    %s10 = scalar_lea.sflag [#allocation5], 1
    %11 = vsyncpa %s10, 0
    loop: start=0, step=1, limit=10
    $region2: #{conv_transpose_1x1_clamp.1} parent=1 // loop_pre_header
      _
    $region3: #{conv_transpose_1x1_clamp.1} parent=1 // loop_header
      %s13 = sphi 0, %s17
      %p14 = scmp.ge.s32.totalorder %s13, 10
      %s21 = sphi 0, %s21
      %s23 = sphi 0, %s21
      %s24 = sphi 0, %s23
      %s38 = sphi 0, %s24
      %s44 = sphi 0, %s46
      %s47 = sphi 0, %s44
      %s48 = sphi 0, %s47
      %s64 = sphi 0, %s48
      %s70 = sphi 0, %s72
      %s73 = sphi 0, %s70
      %s74 = sphi 0, %s73
      %s90 = sphi 0, %s74
      %s96 = sphi 0, %s98
      %s99 = sphi 0, %s96
      %s100 = sphi 0, %s99
      %s116 = sphi 0, %s100
    $region4: #{conv_transpose_1x1_clamp.1} parent=1 // loop_header_branch
      %16 = sbr.rel (%p14) target = $region8
    $region5: #{conv_transpose_1x1_clamp.1} parent=1 // loop_body
      %s18 = ssub.s32 %s13, 1
      %s19 = ssub.s32 %s13, 2
      %s20 = sadd.s32 %s13, 1
      %s22 = sadd.s32 %s21, 1
      %p25 = scmp.eq.s32.totalorder %s13, 7
      %p26 = scmp.ne.s32.totalorder %s21, %s23
      %p27 = scmp.eq.s32.totalorder %s13, 0
      %p28 = por %p26, %p27
      %p29 = scmp.ne.s32.totalorder %s21, %s23
      %p30 = scmp.eq.s32.totalorder %s18, 7
      %p31 = por %p29, %p30
      %p32 = scmp.ne.s32.totalorder %s23, %s24
      %p33 = scmp.eq.s32.totalorder %s18, 0
      %p34 = por %p32, %p33
      %p35 = scmp.ne.s32.totalorder %s23, %s24
      %p36 = scmp.eq.s32.totalorder %s19, 7
      %p37 = por %p35, %p36
      %p39 = scmp.ne.s32.totalorder %s24, %s38
      %p40 = scmp.eq.s32.totalorder %s19, 0
      %p41 = por %p39, %p40
      %s42 = ssub.s32 %s13, %s20
      %p43 = scmp.eq.s32.totalorder %s42, 0
      %s45 = sadd.s32 %s44, 1
      %s46 = scalar_select %p43, %s44, %s45
      %p49 = pneg %p43
      %p50 = scmp.eq.s32.totalorder %s13, 7
      %p51 = por %p49, %p50
      %p52 = scmp.ne.s32.totalorder %s44, %s47
      %p53 = scmp.eq.s32.totalorder %s13, 0
      %p54 = por %p52, %p53
      %p55 = scmp.ne.s32.totalorder %s44, %s47
      %p56 = scmp.eq.s32.totalorder %s18, 7
      %p57 = por %p55, %p56
      %p58 = scmp.ne.s32.totalorder %s47, %s48
      %p59 = scmp.eq.s32.totalorder %s18, 0
      %p60 = por %p58, %p59
      %p61 = scmp.ne.s32.totalorder %s47, %s48
      %p62 = scmp.eq.s32.totalorder %s19, 7
      %p63 = por %p61, %p62
      %p65 = scmp.ne.s32.totalorder %s48, %s64
      %p66 = scmp.eq.s32.totalorder %s19, 0
      %p67 = por %p65, %p66
      %s68 = ssub.s32 %s13, %s20
      %p69 = scmp.eq.s32.totalorder %s68, 0
      %s71 = sadd.s32 %s70, 1
      %s72 = scalar_select %p69, %s70, %s71
      %p75 = pneg %p69
      %p76 = scmp.eq.s32.totalorder %s13, 7
      %p77 = por %p75, %p76
      %p78 = scmp.ne.s32.totalorder %s70, %s73
      %p79 = scmp.eq.s32.totalorder %s13, 0
      %p80 = por %p78, %p79
      %p81 = scmp.ne.s32.totalorder %s70, %s73
      %p82 = scmp.eq.s32.totalorder %s18, 7
      %p83 = por %p81, %p82
      %p84 = scmp.ne.s32.totalorder %s73, %s74
      %p85 = scmp.eq.s32.totalorder %s18, 0
      %p86 = por %p84, %p85
      %p87 = scmp.ne.s32.totalorder %s73, %s74
      %p88 = scmp.eq.s32.totalorder %s19, 7
      %p89 = por %p87, %p88
      %p91 = scmp.ne.s32.totalorder %s74, %s90
      %p92 = scmp.eq.s32.totalorder %s19, 0
      %p93 = por %p91, %p92
      %s94 = ssub.s32 %s13, %s20
      %p95 = scmp.eq.s32.totalorder %s94, 0
      %s97 = sadd.s32 %s96, 1
      %s98 = scalar_select %p95, %s96, %s97
      %p101 = pneg %p95
      %p102 = scmp.eq.s32.totalorder %s13, 7
      %p103 = por %p101, %p102
      %p104 = scmp.ne.s32.totalorder %s96, %s99
      %p105 = scmp.eq.s32.totalorder %s13, 0
      %p106 = por %p104, %p105
      %p107 = scmp.ne.s32.totalorder %s96, %s99
      %p108 = scmp.eq.s32.totalorder %s18, 7
      %p109 = por %p107, %p108
      %p110 = scmp.ne.s32.totalorder %s99, %s100
      %p111 = scmp.eq.s32.totalorder %s18, 0
      %p112 = por %p110, %p111
      %p113 = scmp.ne.s32.totalorder %s99, %s100
      %p114 = scmp.eq.s32.totalorder %s19, 7
      %p115 = por %p113, %p114
      %p117 = scmp.ne.s32.totalorder %s100, %s116
      %p118 = scmp.eq.s32.totalorder %s19, 0
      %p119 = por %p117, %p118
      %p120 = scmp.le.s32.totalorder 1, %s13
      %p121 = scmp.lt.s32.totalorder %s13, 9
      %p122 = pnand %p120, %p121
      %p123 = pneg %p122
      // Predicated region
      $region9: #{conv_transpose_1x1_clamp.1} parent=5 // pred_check
        _
      $region10: #{conv_transpose_1x1_clamp.1} parent=5 // pred_check_branch
        %125 = sbr.rel (%p122) target = $region12
      $region11: #{conv_transpose_1x1_clamp.1} parent=5 // pred_region
        %s126 = ssub.s32 %s13, 1
        // Predicated region
        $region13: #{conv_transpose_1x1_clamp.1} parent=11 // pred_check
          %p127 = pneg %p34
        $region14: #{conv_transpose_1x1_clamp.1} parent=11 // pred_check_branch
          %129 = sbr.rel (%p127) target = $region16
        $region15: #{conv_transpose_1x1_clamp.1} parent=11 // pred_region
          %s131 = ssub.s32 16, 16
          %132 = vsyncadd [#allocation3], %s131
          %s134 = sshll.u32 [#allocation2], 4
          %s135 = int_to_ptr.vmem [resolvable:$true] %s134
          %137 = dma.hbm_to_vmem [thread:$0]  %s0, 16, %s135, [#allocation3]
        $region16: #{conv_transpose_1x1_clamp.1} parent=11 // pred_fallthru
          _
      $region12: #{conv_transpose_1x1_clamp.1} parent=5 // pred_fallthru
        _
      %p138 = scmp.lt.s32.totalorder %s13, 8
      // Predicated region
      $region17: #{conv_transpose_1x1_clamp.1} parent=5 // pred_check
        %p139 = pneg %p138
      $region18: #{conv_transpose_1x1_clamp.1} parent=5 // pred_check_branch
        %141 = sbr.rel (%p139) target = $region20
      $region19: #{conv_transpose_1x1_clamp.1} parent=5 // pred_region
        // Predicated region
        $region21: #{conv_transpose_1x1_clamp.1} parent=19 // pred_check
          %p142 = pneg %p54
        $region22: #{conv_transpose_1x1_clamp.1} parent=19 // pred_check_branch
          %144 = sbr.rel (%p142) target = $region24
        $region23: #{conv_transpose_1x1_clamp.1} parent=19 // pred_region
          %s145 = sand.u32 %s13, 1
          %s146 = scalar_lea.sflag [#allocation5], %s145
          %s147 = sand.u32 %s44, 1
          %s148 = smul.addr %s147, 2816
          %s149 = scalar_lea.vmem [#allocation4], %s148
          %s150 = smul.u32 88, %s13
          %s152 = ssub.s32 45056, 45056
          %153 = vsyncadd %s146, %s152
          %s154 = smul.addr %s150, 128
          %s155 = scalar_lea.hbm %s1, %s154
          %s156 = sshll.u32 %s149, 4
          %s157 = int_to_ptr.vmem [resolvable:$true] %s156
          %162 = dma.hbm_to_vmem [thread:$0]  %s155, 45056, %s157, %s146, 90112, 11264, 704
        $region24: #{conv_transpose_1x1_clamp.1} parent=19 // pred_fallthru
          _
        // Predicated region
        $region25: #{conv_transpose_1x1_clamp.1} parent=19 // pred_check
          %p163 = pneg %p80
        $region26: #{conv_transpose_1x1_clamp.1} parent=19 // pred_check_branch
          %165 = sbr.rel (%p163) target = $region28
        $region27: #{conv_transpose_1x1_clamp.1} parent=19 // pred_region
          %s166 = sand.u32 %s13, 1
          %s167 = scalar_lea.sflag [#allocation5], %s166
          %s168 = sand.u32 %s70, 1
          %s169 = smul.addr %s168, 88
          %s170 = scalar_lea.vmem [#allocation6], %s169
          %s171 = smul.u32 88, %s13
          %s173 = ssub.s32 1408, 1408
          %174 = vsyncadd %s167, %s173
          %s175 = smul.addr %s171, 16
          %s176 = scalar_lea.hbm %s2, %s175
          %s178 = sshll.u32 %s170, 4
          %s179 = int_to_ptr.vmem [resolvable:$true] %s178
          %181 = dma.hbm_to_vmem [thread:$0]  %s176, 1408, %s179, %s167
        $region28: #{conv_transpose_1x1_clamp.1} parent=19 // pred_fallthru
          _
      $region20: #{conv_transpose_1x1_clamp.1} parent=5 // pred_fallthru
        _
      %p182 = scmp.le.s32.totalorder 1, %s13
      %p183 = scmp.lt.s32.totalorder %s13, 9
      %p184 = pnand %p182, %p183
      %p185 = pneg %p184
      // Predicated region
      $region29: #{conv_transpose_1x1_clamp.1} parent=5 // pred_check
        _
      $region30: #{conv_transpose_1x1_clamp.1} parent=5 // pred_check_branch
        %187 = sbr.rel (%p184) target = $region32
      $region31: #{conv_transpose_1x1_clamp.1} parent=5 // pred_region
        %s188 = ssub.s32 %s13, 1
        // Predicated region
        $region33: #{conv_transpose_1x1_clamp.1} parent=31 // pred_check
          %p189 = pneg %p34
        $region34: #{conv_transpose_1x1_clamp.1} parent=31 // pred_check_branch
          %191 = sbr.rel (%p189) target = $region36
        $region35: #{conv_transpose_1x1_clamp.1} parent=31 // pred_region
          %192 = dma.done [#allocation3], 16
        $region36: #{conv_transpose_1x1_clamp.1} parent=31 // pred_fallthru
          _
        %s193 = sand.u32 %s18, 1
        %s194 = scalar_lea.sflag [#allocation5], %s193
        %s195 = sand.u32 %s47, 1
        %s196 = smul.addr %s195, 2816
        %s197 = scalar_lea.vmem [#allocation4], %s196
        // Predicated region
        $region37: #{conv_transpose_1x1_clamp.1} parent=31 // pred_check
          %p198 = pneg %p60
        $region38: #{conv_transpose_1x1_clamp.1} parent=31 // pred_check_branch
          %200 = sbr.rel (%p198) target = $region40
        $region39: #{conv_transpose_1x1_clamp.1} parent=31 // pred_region
          %201 = dma.done %s194, 45056
        $region40: #{conv_transpose_1x1_clamp.1} parent=31 // pred_fallthru
          _
        %s202 = sand.u32 %s18, 1
        %s203 = scalar_lea.sflag [#allocation5], %s202
        %s204 = sand.u32 %s73, 1
        %s205 = smul.addr %s204, 88
        %s206 = scalar_lea.vmem [#allocation6], %s205
        // Predicated region
        $region41: #{conv_transpose_1x1_clamp.1} parent=31 // pred_check
          %p207 = pneg %p86
        $region42: #{conv_transpose_1x1_clamp.1} parent=31 // pred_check_branch
          %209 = sbr.rel (%p207) target = $region44
        $region43: #{conv_transpose_1x1_clamp.1} parent=31 // pred_region
          %210 = dma.done %s203, 1408
        $region44: #{conv_transpose_1x1_clamp.1} parent=31 // pred_fallthru
          _
        %p211 = pneg %p34
        %p212 = pneg %p31
        %s213 = sand.u32 %s18, 1
        %s214 = scalar_lea.sflag [#allocation5], %s213
        %s215 = sand.u32 %s47, 1
        %s216 = smul.addr %s215, 2816
        %s217 = scalar_lea.vmem [#allocation4], %s216
        %p218 = pneg %p60
        %p219 = pneg %p57
        %s220 = sand.u32 %s18, 1
        %s221 = scalar_lea.sflag [#allocation5], %s220
        %s222 = sand.u32 %s73, 1
        %s223 = smul.addr %s222, 88
        %s224 = scalar_lea.vmem [#allocation6], %s223
        %p225 = pneg %p86
        %p226 = pneg %p83
        %p227 = pneg %p112
        %p228 = pneg %p109
        %s229 = smul.u32 88, %s18
        %p230 = scmp.lt.s32.totalorder %s229, 703
        %s231 = scalar_select %p230, %s229, 703
        %s232 = scalar_lea.vmem %s3, %s231
        %s233 = smul.u32 88, %s18
        %s234 = smul.u32 88, %s18
        %s235 = smul.u32 88, %s18
        %p236 = scmp.lt.s32.totalorder %s235, 703
        %s237 = scalar_select %p236, %s235, 703
        %s238 = scalar_lea.vmem %s3, %s237
        %s239 = smul.u32 88, %s18
        %v240 = vld [vmem:[#allocation2] sm:$0x1]
        %v241 = vld [vmem:[%s197] sm:$0xff]
        %v242 = vld [vmem:[%s197 + $0x8] sm:$0xff]
        %v243 = vld [vmem:[%s197 + $0x10] sm:$0xff]
        %v244 = vld [vmem:[%s197 + $0x18] sm:$0xff]
        %v245 = vld [vmem:[%s197 + $0x20] sm:$0xff]
        %v246 = vld [vmem:[%s197 + $0x28] sm:$0xff]
        %v247 = vld [vmem:[%s197 + $0x30] sm:$0xff]
        %v248 = vld [vmem:[%s197 + $0x38] sm:$0xff]
        %v249 = vld [vmem:[%s197 + $0x40] sm:$0xff]
        %v250 = vld [vmem:[%s197 + $0x48] sm:$0xff]
        %v251 = vld [vmem:[%s197 + $0x50] sm:$0xff]
        %v252 = vld [vmem:[%s197 + $0x58] sm:$0xff]
        %v253 = vld [vmem:[%s197 + $0x60] sm:$0xff]
        %v254 = vld [vmem:[%s197 + $0x68] sm:$0xff]
        %v255 = vld [vmem:[%s197 + $0x70] sm:$0xff]
        %v256 = vld [vmem:[%s197 + $0x78] sm:$0xff]
        %v257 = vld [vmem:[%s197 + $0x80] sm:$0xff]
        %v258 = vld [vmem:[%s197 + $0x88] sm:$0xff]
        %v259 = vld [vmem:[%s197 + $0x90] sm:$0xff]
        %v260 = vld [vmem:[%s197 + $0x98] sm:$0xff]
        %v261 = vld [vmem:[%s197 + $0xa0] sm:$0xff]
        %v262 = vld [vmem:[%s197 + $0xa8] sm:$0xff]
        %v263 = vld [vmem:[%s197 + $0xb0] sm:$0xff]
        %v264 = vld [vmem:[%s197 + $0xb8] sm:$0xff]
        %v265 = vld [vmem:[%s197 + $0xc0] sm:$0xff]
        %v266 = vld [vmem:[%s197 + $0xc8] sm:$0xff]
        %v267 = vld [vmem:[%s197 + $0xd0] sm:$0xff]
        %v268 = vld [vmem:[%s197 + $0xd8] sm:$0xff]
        %v269 = vld [vmem:[%s197 + $0xe0] sm:$0xff]
        %v270 = vld [vmem:[%s197 + $0xe8] sm:$0xff]
        %v271 = vld [vmem:[%s197 + $0xf0] sm:$0xff]
        %v272 = vld [vmem:[%s197 + $0xf8] sm:$0xff]
        %v273 = vld [vmem:[%s197 + $0x100] sm:$0xff]
        %v274 = vld [vmem:[%s197 + $0x108] sm:$0xff]
        %v275 = vld [vmem:[%s197 + $0x110] sm:$0xff]
        %v276 = vld [vmem:[%s197 + $0x118] sm:$0xff]
        %v277 = vld [vmem:[%s197 + $0x120] sm:$0xff]
        %v278 = vld [vmem:[%s197 + $0x128] sm:$0xff]
        %v279 = vld [vmem:[%s197 + $0x130] sm:$0xff]
        %v280 = vld [vmem:[%s197 + $0x138] sm:$0xff]
        %v281 = vld [vmem:[%s197 + $0x140] sm:$0xff]
        %v282 = vld [vmem:[%s197 + $0x148] sm:$0xff]
        %v283 = vld [vmem:[%s197 + $0x150] sm:$0xff]
        %v284 = vld [vmem:[%s197 + $0x158] sm:$0xff]
        %v285 = vld [vmem:[%s197 + $0x160] sm:$0xff]
        %v286 = vld [vmem:[%s197 + $0x168] sm:$0xff]
        %v287 = vld [vmem:[%s197 + $0x170] sm:$0xff]
        %v288 = vld [vmem:[%s197 + $0x178] sm:$0xff]
        %v289 = vld [vmem:[%s197 + $0x180] sm:$0xff]
        %v290 = vld [vmem:[%s197 + $0x188] sm:$0xff]
        %v291 = vld [vmem:[%s197 + $0x190] sm:$0xff]
        %v292 = vld [vmem:[%s197 + $0x198] sm:$0xff]
        %v293 = vld [vmem:[%s197 + $0x1a0] sm:$0xff]
        %v294 = vld [vmem:[%s197 + $0x1a8] sm:$0xff]
        %v295 = vld [vmem:[%s197 + $0x1b0] sm:$0xff]
        %v296 = vld [vmem:[%s197 + $0x1b8] sm:$0xff]
        %v297 = vld [vmem:[%s197 + $0x1c0] sm:$0xff]
        %v298 = vld [vmem:[%s197 + $0x1c8] sm:$0xff]
        %v299 = vld [vmem:[%s197 + $0x1d0] sm:$0xff]
        %v300 = vld [vmem:[%s197 + $0x1d8] sm:$0xff]
        %v301 = vld [vmem:[%s197 + $0x1e0] sm:$0xff]
        %v302 = vld [vmem:[%s197 + $0x1e8] sm:$0xff]
        %v303 = vld [vmem:[%s197 + $0x1f0] sm:$0xff]
        %v304 = vld [vmem:[%s197 + $0x1f8] sm:$0xff]
        %v305 = vld [vmem:[%s197 + $0x200] sm:$0xff]
        %v306 = vld [vmem:[%s197 + $0x208] sm:$0xff]
        %v307 = vld [vmem:[%s197 + $0x210] sm:$0xff]
        %v308 = vld [vmem:[%s197 + $0x218] sm:$0xff]
        %v309 = vld [vmem:[%s197 + $0x220] sm:$0xff]
        %v310 = vld [vmem:[%s197 + $0x228] sm:$0xff]
        %v311 = vld [vmem:[%s197 + $0x230] sm:$0xff]
        %v312 = vld [vmem:[%s197 + $0x238] sm:$0xff]
        %v313 = vld [vmem:[%s197 + $0x240] sm:$0xff]
        %v314 = vld [vmem:[%s197 + $0x248] sm:$0xff]
        %v315 = vld [vmem:[%s197 + $0x250] sm:$0xff]
        %v316 = vld [vmem:[%s197 + $0x258] sm:$0xff]
        %v317 = vld [vmem:[%s197 + $0x260] sm:$0xff]
        %v318 = vld [vmem:[%s197 + $0x268] sm:$0xff]
        %v319 = vld [vmem:[%s197 + $0x270] sm:$0xff]
        %v320 = vld [vmem:[%s197 + $0x278] sm:$0xff]
        %v321 = vld [vmem:[%s197 + $0x280] sm:$0xff]
        %v322 = vld [vmem:[%s197 + $0x288] sm:$0xff]
        %v323 = vld [vmem:[%s197 + $0x290] sm:$0xff]
        %v324 = vld [vmem:[%s197 + $0x298] sm:$0xff]
        %v325 = vld [vmem:[%s197 + $0x2a0] sm:$0xff]
        %v326 = vld [vmem:[%s197 + $0x2a8] sm:$0xff]
        %v327 = vld [vmem:[%s197 + $0x2b0] sm:$0xff]
        %v328 = vld [vmem:[%s197 + $0x2b8] sm:$0xff]
        %v329 = vld [vmem:[%s197 + $0x2c0] sm:$0xff]
        %v330 = vld [vmem:[%s197 + $0x2c8] sm:$0xff]
        %v331 = vld [vmem:[%s197 + $0x2d0] sm:$0xff]
        %v332 = vld [vmem:[%s197 + $0x2d8] sm:$0xff]
        %v333 = vld [vmem:[%s197 + $0x2e0] sm:$0xff]
        %v334 = vld [vmem:[%s197 + $0x2e8] sm:$0xff]
        %v335 = vld [vmem:[%s197 + $0x2f0] sm:$0xff]
        %v336 = vld [vmem:[%s197 + $0x2f8] sm:$0xff]
        %v337 = vld [vmem:[%s197 + $0x300] sm:$0xff]
        %v338 = vld [vmem:[%s197 + $0x308] sm:$0xff]
        %v339 = vld [vmem:[%s197 + $0x310] sm:$0xff]
        %v340 = vld [vmem:[%s197 + $0x318] sm:$0xff]
        %v341 = vld [vmem:[%s197 + $0x320] sm:$0xff]
        %v342 = vld [vmem:[%s197 + $0x328] sm:$0xff]
        %v343 = vld [vmem:[%s197 + $0x330] sm:$0xff]
        %v344 = vld [vmem:[%s197 + $0x338] sm:$0xff]
        %v345 = vld [vmem:[%s197 + $0x340] sm:$0xff]
        %v346 = vld [vmem:[%s197 + $0x348] sm:$0xff]
        %v347 = vld [vmem:[%s197 + $0x350] sm:$0xff]
        %v348 = vld [vmem:[%s197 + $0x358] sm:$0xff]
        %v349 = vld [vmem:[%s197 + $0x360] sm:$0xff]
        %v350 = vld [vmem:[%s197 + $0x368] sm:$0xff]
        %v351 = vld [vmem:[%s197 + $0x370] sm:$0xff]
        %v352 = vld [vmem:[%s197 + $0x378] sm:$0xff]
        %v353 = vld [vmem:[%s197 + $0x380] sm:$0xff]
        %v354 = vld [vmem:[%s197 + $0x388] sm:$0xff]
        %v355 = vld [vmem:[%s197 + $0x390] sm:$0xff]
        %v356 = vld [vmem:[%s197 + $0x398] sm:$0xff]
        %v357 = vld [vmem:[%s197 + $0x3a0] sm:$0xff]
        %v358 = vld [vmem:[%s197 + $0x3a8] sm:$0xff]
        %v359 = vld [vmem:[%s197 + $0x3b0] sm:$0xff]
        %v360 = vld [vmem:[%s197 + $0x3b8] sm:$0xff]
        %v361 = vld [vmem:[%s197 + $0x3c0] sm:$0xff]
        %v362 = vld [vmem:[%s197 + $0x3c8] sm:$0xff]
        %v363 = vld [vmem:[%s197 + $0x3d0] sm:$0xff]
        %v364 = vld [vmem:[%s197 + $0x3d8] sm:$0xff]
        %v365 = vld [vmem:[%s197 + $0x3e0] sm:$0xff]
        %v366 = vld [vmem:[%s197 + $0x3e8] sm:$0xff]
        %v367 = vld [vmem:[%s197 + $0x3f0] sm:$0xff]
        %v368 = vld [vmem:[%s197 + $0x3f8] sm:$0xff]
        %v369 = vld [vmem:[%s197 + $0x400] sm:$0xff]
        %v370 = vld [vmem:[%s197 + $0x408] sm:$0xff]
        %v371 = vld [vmem:[%s197 + $0x410] sm:$0xff]
        %v372 = vld [vmem:[%s197 + $0x418] sm:$0xff]
        %v373 = vld [vmem:[%s197 + $0x420] sm:$0xff]
        %v374 = vld [vmem:[%s197 + $0x428] sm:$0xff]
        %v375 = vld [vmem:[%s197 + $0x430] sm:$0xff]
        %v376 = vld [vmem:[%s197 + $0x438] sm:$0xff]
        %v377 = vld [vmem:[%s197 + $0x440] sm:$0xff]
        %v378 = vld [vmem:[%s197 + $0x448] sm:$0xff]
        %v379 = vld [vmem:[%s197 + $0x450] sm:$0xff]
        %v380 = vld [vmem:[%s197 + $0x458] sm:$0xff]
        %v381 = vld [vmem:[%s197 + $0x460] sm:$0xff]
        %v382 = vld [vmem:[%s197 + $0x468] sm:$0xff]
        %v383 = vld [vmem:[%s197 + $0x470] sm:$0xff]
        %v384 = vld [vmem:[%s197 + $0x478] sm:$0xff]
        %v385 = vld [vmem:[%s197 + $0x480] sm:$0xff]
        %v386 = vld [vmem:[%s197 + $0x488] sm:$0xff]
        %v387 = vld [vmem:[%s197 + $0x490] sm:$0xff]
        %v388 = vld [vmem:[%s197 + $0x498] sm:$0xff]
        %v389 = vld [vmem:[%s197 + $0x4a0] sm:$0xff]
        %v390 = vld [vmem:[%s197 + $0x4a8] sm:$0xff]
        %v391 = vld [vmem:[%s197 + $0x4b0] sm:$0xff]
        %v392 = vld [vmem:[%s197 + $0x4b8] sm:$0xff]
        %v393 = vld [vmem:[%s197 + $0x4c0] sm:$0xff]
        %v394 = vld [vmem:[%s197 + $0x4c8] sm:$0xff]
        %v395 = vld [vmem:[%s197 + $0x4d0] sm:$0xff]
        %v396 = vld [vmem:[%s197 + $0x4d8] sm:$0xff]
        %v397 = vld [vmem:[%s197 + $0x4e0] sm:$0xff]
        %v398 = vld [vmem:[%s197 + $0x4e8] sm:$0xff]
        %v399 = vld [vmem:[%s197 + $0x4f0] sm:$0xff]
        %v400 = vld [vmem:[%s197 + $0x4f8] sm:$0xff]
        %v401 = vld [vmem:[%s197 + $0x500] sm:$0xff]
        %v402 = vld [vmem:[%s197 + $0x508] sm:$0xff]
        %v403 = vld [vmem:[%s197 + $0x510] sm:$0xff]
        %v404 = vld [vmem:[%s197 + $0x518] sm:$0xff]
        %v405 = vld [vmem:[%s197 + $0x520] sm:$0xff]
        %v406 = vld [vmem:[%s197 + $0x528] sm:$0xff]
        %v407 = vld [vmem:[%s197 + $0x530] sm:$0xff]
        %v408 = vld [vmem:[%s197 + $0x538] sm:$0xff]
        %v409 = vld [vmem:[%s197 + $0x540] sm:$0xff]
        %v410 = vld [vmem:[%s197 + $0x548] sm:$0xff]
        %v411 = vld [vmem:[%s197 + $0x550] sm:$0xff]
        %v412 = vld [vmem:[%s197 + $0x558] sm:$0xff]
        %v413 = vld [vmem:[%s197 + $0x560] sm:$0xff]
        %v414 = vld [vmem:[%s197 + $0x568] sm:$0xff]
        %v415 = vld [vmem:[%s197 + $0x570] sm:$0xff]
        %v416 = vld [vmem:[%s197 + $0x578] sm:$0xff]
        %v417 = vld [vmem:[%s197 + $0x580] sm:$0xff]
        %v418 = vld [vmem:[%s197 + $0x588] sm:$0xff]
        %v419 = vld [vmem:[%s197 + $0x590] sm:$0xff]
        %v420 = vld [vmem:[%s197 + $0x598] sm:$0xff]
        %v421 = vld [vmem:[%s197 + $0x5a0] sm:$0xff]
        %v422 = vld [vmem:[%s197 + $0x5a8] sm:$0xff]
        %v423 = vld [vmem:[%s197 + $0x5b0] sm:$0xff]
        %v424 = vld [vmem:[%s197 + $0x5b8] sm:$0xff]
        %v425 = vld [vmem:[%s197 + $0x5c0] sm:$0xff]
        %v426 = vld [vmem:[%s197 + $0x5c8] sm:$0xff]
        %v427 = vld [vmem:[%s197 + $0x5d0] sm:$0xff]
        %v428 = vld [vmem:[%s197 + $0x5d8] sm:$0xff]
        %v429 = vld [vmem:[%s197 + $0x5e0] sm:$0xff]
        %v430 = vld [vmem:[%s197 + $0x5e8] sm:$0xff]
        %v431 = vld [vmem:[%s197 + $0x5f0] sm:$0xff]
        %v432 = vld [vmem:[%s197 + $0x5f8] sm:$0xff]
        %v433 = vld [vmem:[%s197 + $0x600] sm:$0xff]
        %v434 = vld [vmem:[%s197 + $0x608] sm:$0xff]
        %v435 = vld [vmem:[%s197 + $0x610] sm:$0xff]
        %v436 = vld [vmem:[%s197 + $0x618] sm:$0xff]
        %v437 = vld [vmem:[%s197 + $0x620] sm:$0xff]
        %v438 = vld [vmem:[%s197 + $0x628] sm:$0xff]
        %v439 = vld [vmem:[%s197 + $0x630] sm:$0xff]
        %v440 = vld [vmem:[%s197 + $0x638] sm:$0xff]
        %v441 = vld [vmem:[%s197 + $0x640] sm:$0xff]
        %v442 = vld [vmem:[%s197 + $0x648] sm:$0xff]
        %v443 = vld [vmem:[%s197 + $0x650] sm:$0xff]
        %v444 = vld [vmem:[%s197 + $0x658] sm:$0xff]
        %v445 = vld [vmem:[%s197 + $0x660] sm:$0xff]
        %v446 = vld [vmem:[%s197 + $0x668] sm:$0xff]
        %v447 = vld [vmem:[%s197 + $0x670] sm:$0xff]
        %v448 = vld [vmem:[%s197 + $0x678] sm:$0xff]
        %v449 = vld [vmem:[%s197 + $0x680] sm:$0xff]
        %v450 = vld [vmem:[%s197 + $0x688] sm:$0xff]
        %v451 = vld [vmem:[%s197 + $0x690] sm:$0xff]
        %v452 = vld [vmem:[%s197 + $0x698] sm:$0xff]
        %v453 = vld [vmem:[%s197 + $0x6a0] sm:$0xff]
        %v454 = vld [vmem:[%s197 + $0x6a8] sm:$0xff]
        %v455 = vld [vmem:[%s197 + $0x6b0] sm:$0xff]
        %v456 = vld [vmem:[%s197 + $0x6b8] sm:$0xff]
        %v457 = vld [vmem:[%s197 + $0x6c0] sm:$0xff]
        %v458 = vld [vmem:[%s197 + $0x6c8] sm:$0xff]
        %v459 = vld [vmem:[%s197 + $0x6d0] sm:$0xff]
        %v460 = vld [vmem:[%s197 + $0x6d8] sm:$0xff]
        %v461 = vld [vmem:[%s197 + $0x6e0] sm:$0xff]
        %v462 = vld [vmem:[%s197 + $0x6e8] sm:$0xff]
        %v463 = vld [vmem:[%s197 + $0x6f0] sm:$0xff]
        %v464 = vld [vmem:[%s197 + $0x6f8] sm:$0xff]
        %v465 = vld [vmem:[%s197 + $0x700] sm:$0xff]
        %v466 = vld [vmem:[%s197 + $0x708] sm:$0xff]
        %v467 = vld [vmem:[%s197 + $0x710] sm:$0xff]
        %v468 = vld [vmem:[%s197 + $0x718] sm:$0xff]
        %v469 = vld [vmem:[%s197 + $0x720] sm:$0xff]
        %v470 = vld [vmem:[%s197 + $0x728] sm:$0xff]
        %v471 = vld [vmem:[%s197 + $0x730] sm:$0xff]
        %v472 = vld [vmem:[%s197 + $0x738] sm:$0xff]
        %v473 = vld [vmem:[%s197 + $0x740] sm:$0xff]
        %v474 = vld [vmem:[%s197 + $0x748] sm:$0xff]
        %v475 = vld [vmem:[%s197 + $0x750] sm:$0xff]
        %v476 = vld [vmem:[%s197 + $0x758] sm:$0xff]
        %v477 = vld [vmem:[%s197 + $0x760] sm:$0xff]
        %v478 = vld [vmem:[%s197 + $0x768] sm:$0xff]
        %v479 = vld [vmem:[%s197 + $0x770] sm:$0xff]
        %v480 = vld [vmem:[%s197 + $0x778] sm:$0xff]
        %v481 = vld [vmem:[%s197 + $0x780] sm:$0xff]
        %v482 = vld [vmem:[%s197 + $0x788] sm:$0xff]
        %v483 = vld [vmem:[%s197 + $0x790] sm:$0xff]
        %v484 = vld [vmem:[%s197 + $0x798] sm:$0xff]
        %v485 = vld [vmem:[%s197 + $0x7a0] sm:$0xff]
        %v486 = vld [vmem:[%s197 + $0x7a8] sm:$0xff]
        %v487 = vld [vmem:[%s197 + $0x7b0] sm:$0xff]
        %v488 = vld [vmem:[%s197 + $0x7b8] sm:$0xff]
        %v489 = vld [vmem:[%s197 + $0x7c0] sm:$0xff]
        %v490 = vld [vmem:[%s197 + $0x7c8] sm:$0xff]
        %v491 = vld [vmem:[%s197 + $0x7d0] sm:$0xff]
        %v492 = vld [vmem:[%s197 + $0x7d8] sm:$0xff]
        %v493 = vld [vmem:[%s197 + $0x7e0] sm:$0xff]
        %v494 = vld [vmem:[%s197 + $0x7e8] sm:$0xff]
        %v495 = vld [vmem:[%s197 + $0x7f0] sm:$0xff]
        %v496 = vld [vmem:[%s197 + $0x7f8] sm:$0xff]
        %v497 = vld [vmem:[%s197 + $0x800] sm:$0xff]
        %v498 = vld [vmem:[%s197 + $0x808] sm:$0xff]
        %v499 = vld [vmem:[%s197 + $0x810] sm:$0xff]
        %v500 = vld [vmem:[%s197 + $0x818] sm:$0xff]
        %v501 = vld [vmem:[%s197 + $0x820] sm:$0xff]
        %v502 = vld [vmem:[%s197 + $0x828] sm:$0xff]
        %v503 = vld [vmem:[%s197 + $0x830] sm:$0xff]
        %v504 = vld [vmem:[%s197 + $0x838] sm:$0xff]
        %v505 = vld [vmem:[%s197 + $0x840] sm:$0xff]
        %v506 = vld [vmem:[%s197 + $0x848] sm:$0xff]
        %v507 = vld [vmem:[%s197 + $0x850] sm:$0xff]
        %v508 = vld [vmem:[%s197 + $0x858] sm:$0xff]
        %v509 = vld [vmem:[%s197 + $0x860] sm:$0xff]
        %v510 = vld [vmem:[%s197 + $0x868] sm:$0xff]
        %v511 = vld [vmem:[%s197 + $0x870] sm:$0xff]
        %v512 = vld [vmem:[%s197 + $0x878] sm:$0xff]
        %v513 = vld [vmem:[%s197 + $0x880] sm:$0xff]
        %v514 = vld [vmem:[%s197 + $0x888] sm:$0xff]
        %v515 = vld [vmem:[%s197 + $0x890] sm:$0xff]
        %v516 = vld [vmem:[%s197 + $0x898] sm:$0xff]
        %v517 = vld [vmem:[%s197 + $0x8a0] sm:$0xff]
        %v518 = vld [vmem:[%s197 + $0x8a8] sm:$0xff]
        %v519 = vld [vmem:[%s197 + $0x8b0] sm:$0xff]
        %v520 = vld [vmem:[%s197 + $0x8b8] sm:$0xff]
        %v521 = vld [vmem:[%s197 + $0x8c0] sm:$0xff]
        %v522 = vld [vmem:[%s197 + $0x8c8] sm:$0xff]
        %v523 = vld [vmem:[%s197 + $0x8d0] sm:$0xff]
        %v524 = vld [vmem:[%s197 + $0x8d8] sm:$0xff]
        %v525 = vld [vmem:[%s197 + $0x8e0] sm:$0xff]
        %v526 = vld [vmem:[%s197 + $0x8e8] sm:$0xff]
        %v527 = vld [vmem:[%s197 + $0x8f0] sm:$0xff]
        %v528 = vld [vmem:[%s197 + $0x8f8] sm:$0xff]
        %v529 = vld [vmem:[%s197 + $0x900] sm:$0xff]
        %v530 = vld [vmem:[%s197 + $0x908] sm:$0xff]
        %v531 = vld [vmem:[%s197 + $0x910] sm:$0xff]
        %v532 = vld [vmem:[%s197 + $0x918] sm:$0xff]
        %v533 = vld [vmem:[%s197 + $0x920] sm:$0xff]
        %v534 = vld [vmem:[%s197 + $0x928] sm:$0xff]
        %v535 = vld [vmem:[%s197 + $0x930] sm:$0xff]
        %v536 = vld [vmem:[%s197 + $0x938] sm:$0xff]
        %v537 = vld [vmem:[%s197 + $0x940] sm:$0xff]
        %v538 = vld [vmem:[%s197 + $0x948] sm:$0xff]
        %v539 = vld [vmem:[%s197 + $0x950] sm:$0xff]
        %v540 = vld [vmem:[%s197 + $0x958] sm:$0xff]
        %v541 = vld [vmem:[%s197 + $0x960] sm:$0xff]
        %v542 = vld [vmem:[%s197 + $0x968] sm:$0xff]
        %v543 = vld [vmem:[%s197 + $0x970] sm:$0xff]
        %v544 = vld [vmem:[%s197 + $0x978] sm:$0xff]
        %v545 = vld [vmem:[%s197 + $0x980] sm:$0xff]
        %v546 = vld [vmem:[%s197 + $0x988] sm:$0xff]
        %v547 = vld [vmem:[%s197 + $0x990] sm:$0xff]
        %v548 = vld [vmem:[%s197 + $0x998] sm:$0xff]
        %v549 = vld [vmem:[%s197 + $0x9a0] sm:$0xff]
        %v550 = vld [vmem:[%s197 + $0x9a8] sm:$0xff]
        %v551 = vld [vmem:[%s197 + $0x9b0] sm:$0xff]
        %v552 = vld [vmem:[%s197 + $0x9b8] sm:$0xff]
        %v553 = vld [vmem:[%s197 + $0x9c0] sm:$0xff]
        %v554 = vld [vmem:[%s197 + $0x9c8] sm:$0xff]
        %v555 = vld [vmem:[%s197 + $0x9d0] sm:$0xff]
        %v556 = vld [vmem:[%s197 + $0x9d8] sm:$0xff]
        %v557 = vld [vmem:[%s197 + $0x9e0] sm:$0xff]
        %v558 = vld [vmem:[%s197 + $0x9e8] sm:$0xff]
        %v559 = vld [vmem:[%s197 + $0x9f0] sm:$0xff]
        %v560 = vld [vmem:[%s197 + $0x9f8] sm:$0xff]
        %v561 = vld [vmem:[%s197 + $0xa00] sm:$0xff]
        %v562 = vld [vmem:[%s197 + $0xa08] sm:$0xff]
        %v563 = vld [vmem:[%s197 + $0xa10] sm:$0xff]
        %v564 = vld [vmem:[%s197 + $0xa18] sm:$0xff]
        %v565 = vld [vmem:[%s197 + $0xa20] sm:$0xff]
        %v566 = vld [vmem:[%s197 + $0xa28] sm:$0xff]
        %v567 = vld [vmem:[%s197 + $0xa30] sm:$0xff]
        %v568 = vld [vmem:[%s197 + $0xa38] sm:$0xff]
        %v569 = vld [vmem:[%s197 + $0xa40] sm:$0xff]
        %v570 = vld [vmem:[%s197 + $0xa48] sm:$0xff]
        %v571 = vld [vmem:[%s197 + $0xa50] sm:$0xff]
        %v572 = vld [vmem:[%s197 + $0xa58] sm:$0xff]
        %v573 = vld [vmem:[%s197 + $0xa60] sm:$0xff]
        %v574 = vld [vmem:[%s197 + $0xa68] sm:$0xff]
        %v575 = vld [vmem:[%s197 + $0xa70] sm:$0xff]
        %v576 = vld [vmem:[%s197 + $0xa78] sm:$0xff]
        %v577 = vld [vmem:[%s197 + $0xa80] sm:$0xff]
        %v578 = vld [vmem:[%s197 + $0xa88] sm:$0xff]
        %v579 = vld [vmem:[%s197 + $0xa90] sm:$0xff]
        %v580 = vld [vmem:[%s197 + $0xa98] sm:$0xff]
        %v581 = vld [vmem:[%s197 + $0xaa0] sm:$0xff]
        %v582 = vld [vmem:[%s197 + $0xaa8] sm:$0xff]
        %v583 = vld [vmem:[%s197 + $0xab0] sm:$0xff]
        %v584 = vld [vmem:[%s197 + $0xab8] sm:$0xff]
        %v585 = vld [vmem:[%s197 + $0xac0] sm:$0xff]
        %v586 = vld [vmem:[%s197 + $0xac8] sm:$0xff]
        %v587 = vld [vmem:[%s197 + $0xad0] sm:$0xff]
        %v588 = vld [vmem:[%s197 + $0xad8] sm:$0xff]
        %v589 = vld [vmem:[%s197 + $0xae0] sm:$0xff]
        %v590 = vld [vmem:[%s197 + $0xae8] sm:$0xff]
        %v591 = vld [vmem:[%s197 + $0xaf0] sm:$0xff]
        %v592 = vld [vmem:[%s197 + $0xaf8] sm:$0xff]
        %v593 = vld [vmem:[%s206] sm:$0xff]
        %v594 = vld [vmem:[%s206 + $0x8] sm:$0xff]
        %v595 = vld [vmem:[%s206 + $0x10] sm:$0xff]
        %v596 = vld [vmem:[%s206 + $0x18] sm:$0xff]
        %v597 = vld [vmem:[%s206 + $0x20] sm:$0xff]
        %v598 = vld [vmem:[%s206 + $0x28] sm:$0xff]
        %v599 = vld [vmem:[%s206 + $0x30] sm:$0xff]
        %v600 = vld [vmem:[%s206 + $0x38] sm:$0xff]
        %v601 = vld [vmem:[%s206 + $0x40] sm:$0xff]
        %v602 = vld [vmem:[%s206 + $0x48] sm:$0xff]
        %v603 = vld [vmem:[%s206 + $0x50] sm:$0xff]
        %v615 = vlaneseq
        %v616 = vshrl.u32 %v615, 7
        %v617 = vsub.s32 0, %v616
        %v618 = vrot.slane %v593, %v617
        %v619 = vlaneseq
        %v620 = vshrl.u32 %v619, 7
        %v621 = vsub.s32 1, %v620
        %v622 = vrot.slane %v593, %v621
        %v623 = vlaneseq
        %v624 = vshrl.u32 %v623, 7
        %v625 = vsub.s32 2, %v624
        %v626 = vrot.slane %v593, %v625
        %v627 = vlaneseq
        %v628 = vshrl.u32 %v627, 7
        %v629 = vsub.s32 3, %v628
        %v630 = vrot.slane %v593, %v629
        %v631 = vlaneseq
        %v632 = vshrl.u32 %v631, 7
        %v633 = vsub.s32 4, %v632
        %v634 = vrot.slane %v593, %v633
        %v635 = vlaneseq
        %v636 = vshrl.u32 %v635, 7
        %v637 = vsub.s32 5, %v636
        %v638 = vrot.slane %v593, %v637
        %v639 = vlaneseq
        %v640 = vshrl.u32 %v639, 7
        %v641 = vsub.s32 6, %v640
        %v642 = vrot.slane %v593, %v641
        %v643 = vlaneseq
        %v644 = vshrl.u32 %v643, 7
        %v645 = vsub.s32 7, %v644
        %v646 = vrot.slane %v593, %v645
        %v647 = vlaneseq
        %v648 = vshrl.u32 %v647, 7
        %v649 = vsub.s32 0, %v648
        %v650 = vrot.slane %v594, %v649
        %v651 = vlaneseq
        %v652 = vshrl.u32 %v651, 7
        %v653 = vsub.s32 1, %v652
        %v654 = vrot.slane %v594, %v653
        %v655 = vlaneseq
        %v656 = vshrl.u32 %v655, 7
        %v657 = vsub.s32 2, %v656
        %v658 = vrot.slane %v594, %v657
        %v659 = vlaneseq
        %v660 = vshrl.u32 %v659, 7
        %v661 = vsub.s32 3, %v660
        %v662 = vrot.slane %v594, %v661
        %v663 = vlaneseq
        %v664 = vshrl.u32 %v663, 7
        %v665 = vsub.s32 4, %v664
        %v666 = vrot.slane %v594, %v665
        %v667 = vlaneseq
        %v668 = vshrl.u32 %v667, 7
        %v669 = vsub.s32 5, %v668
        %v670 = vrot.slane %v594, %v669
        %v671 = vlaneseq
        %v672 = vshrl.u32 %v671, 7
        %v673 = vsub.s32 6, %v672
        %v674 = vrot.slane %v594, %v673
        %v675 = vlaneseq
        %v676 = vshrl.u32 %v675, 7
        %v677 = vsub.s32 7, %v676
        %v678 = vrot.slane %v594, %v677
        %v679 = vlaneseq
        %v680 = vshrl.u32 %v679, 7
        %v681 = vsub.s32 0, %v680
        %v682 = vrot.slane %v595, %v681
        %v683 = vlaneseq
        %v684 = vshrl.u32 %v683, 7
        %v685 = vsub.s32 1, %v684
        %v686 = vrot.slane %v595, %v685
        %v687 = vlaneseq
        %v688 = vshrl.u32 %v687, 7
        %v689 = vsub.s32 2, %v688
        %v690 = vrot.slane %v595, %v689
        %v691 = vlaneseq
        %v692 = vshrl.u32 %v691, 7
        %v693 = vsub.s32 3, %v692
        %v694 = vrot.slane %v595, %v693
        %v695 = vlaneseq
        %v696 = vshrl.u32 %v695, 7
        %v697 = vsub.s32 4, %v696
        %v698 = vrot.slane %v595, %v697
        %v699 = vlaneseq
        %v700 = vshrl.u32 %v699, 7
        %v701 = vsub.s32 5, %v700
        %v702 = vrot.slane %v595, %v701
        %v703 = vlaneseq
        %v704 = vshrl.u32 %v703, 7
        %v705 = vsub.s32 6, %v704
        %v706 = vrot.slane %v595, %v705
        %v707 = vlaneseq
        %v708 = vshrl.u32 %v707, 7
        %v709 = vsub.s32 7, %v708
        %v710 = vrot.slane %v595, %v709
        %v711 = vlaneseq
        %v712 = vshrl.u32 %v711, 7
        %v713 = vsub.s32 0, %v712
        %v714 = vrot.slane %v596, %v713
        %v715 = vlaneseq
        %v716 = vshrl.u32 %v715, 7
        %v717 = vsub.s32 1, %v716
        %v718 = vrot.slane %v596, %v717
        %v719 = vlaneseq
        %v720 = vshrl.u32 %v719, 7
        %v721 = vsub.s32 2, %v720
        %v722 = vrot.slane %v596, %v721
        %v723 = vlaneseq
        %v724 = vshrl.u32 %v723, 7
        %v725 = vsub.s32 3, %v724
        %v726 = vrot.slane %v596, %v725
        %v727 = vlaneseq
        %v728 = vshrl.u32 %v727, 7
        %v729 = vsub.s32 4, %v728
        %v730 = vrot.slane %v596, %v729
        %v731 = vlaneseq
        %v732 = vshrl.u32 %v731, 7
        %v733 = vsub.s32 5, %v732
        %v734 = vrot.slane %v596, %v733
        %v735 = vlaneseq
        %v736 = vshrl.u32 %v735, 7
        %v737 = vsub.s32 6, %v736
        %v738 = vrot.slane %v596, %v737
        %v739 = vlaneseq
        %v740 = vshrl.u32 %v739, 7
        %v741 = vsub.s32 7, %v740
        %v742 = vrot.slane %v596, %v741
        %v743 = vlaneseq
        %v744 = vshrl.u32 %v743, 7
        %v745 = vsub.s32 0, %v744
        %v746 = vrot.slane %v597, %v745
        %v747 = vlaneseq
        %v748 = vshrl.u32 %v747, 7
        %v749 = vsub.s32 1, %v748
        %v750 = vrot.slane %v597, %v749
        %v751 = vlaneseq
        %v752 = vshrl.u32 %v751, 7
        %v753 = vsub.s32 2, %v752
        %v754 = vrot.slane %v597, %v753
        %v755 = vlaneseq
        %v756 = vshrl.u32 %v755, 7
        %v757 = vsub.s32 3, %v756
        %v758 = vrot.slane %v597, %v757
        %v759 = vlaneseq
        %v760 = vshrl.u32 %v759, 7
        %v761 = vsub.s32 4, %v760
        %v762 = vrot.slane %v597, %v761
        %v763 = vlaneseq
        %v764 = vshrl.u32 %v763, 7
        %v765 = vsub.s32 5, %v764
        %v766 = vrot.slane %v597, %v765
        %v767 = vlaneseq
        %v768 = vshrl.u32 %v767, 7
        %v769 = vsub.s32 6, %v768
        %v770 = vrot.slane %v597, %v769
        %v771 = vlaneseq
        %v772 = vshrl.u32 %v771, 7
        %v773 = vsub.s32 7, %v772
        %v774 = vrot.slane %v597, %v773
        %v775 = vlaneseq
        %v776 = vshrl.u32 %v775, 7
        %v777 = vsub.s32 0, %v776
        %v778 = vrot.slane %v598, %v777
        %v779 = vlaneseq
        %v780 = vshrl.u32 %v779, 7
        %v781 = vsub.s32 1, %v780
        %v782 = vrot.slane %v598, %v781
        %v783 = vlaneseq
        %v784 = vshrl.u32 %v783, 7
        %v785 = vsub.s32 2, %v784
        %v786 = vrot.slane %v598, %v785
        %v787 = vlaneseq
        %v788 = vshrl.u32 %v787, 7
        %v789 = vsub.s32 3, %v788
        %v790 = vrot.slane %v598, %v789
        %v791 = vlaneseq
        %v792 = vshrl.u32 %v791, 7
        %v793 = vsub.s32 4, %v792
        %v794 = vrot.slane %v598, %v793
        %v795 = vlaneseq
        %v796 = vshrl.u32 %v795, 7
        %v797 = vsub.s32 5, %v796
        %v798 = vrot.slane %v598, %v797
        %v799 = vlaneseq
        %v800 = vshrl.u32 %v799, 7
        %v801 = vsub.s32 6, %v800
        %v802 = vrot.slane %v598, %v801
        %v803 = vlaneseq
        %v804 = vshrl.u32 %v803, 7
        %v805 = vsub.s32 7, %v804
        %v806 = vrot.slane %v598, %v805
        %v807 = vlaneseq
        %v808 = vshrl.u32 %v807, 7
        %v809 = vsub.s32 0, %v808
        %v810 = vrot.slane %v599, %v809
        %v811 = vlaneseq
        %v812 = vshrl.u32 %v811, 7
        %v813 = vsub.s32 1, %v812
        %v814 = vrot.slane %v599, %v813
        %v815 = vlaneseq
        %v816 = vshrl.u32 %v815, 7
        %v817 = vsub.s32 2, %v816
        %v818 = vrot.slane %v599, %v817
        %v819 = vlaneseq
        %v820 = vshrl.u32 %v819, 7
        %v821 = vsub.s32 3, %v820
        %v822 = vrot.slane %v599, %v821
        %v823 = vlaneseq
        %v824 = vshrl.u32 %v823, 7
        %v825 = vsub.s32 4, %v824
        %v826 = vrot.slane %v599, %v825
        %v827 = vlaneseq
        %v828 = vshrl.u32 %v827, 7
        %v829 = vsub.s32 5, %v828
        %v830 = vrot.slane %v599, %v829
        %v831 = vlaneseq
        %v832 = vshrl.u32 %v831, 7
        %v833 = vsub.s32 6, %v832
        %v834 = vrot.slane %v599, %v833
        %v835 = vlaneseq
        %v836 = vshrl.u32 %v835, 7
        %v837 = vsub.s32 7, %v836
        %v838 = vrot.slane %v599, %v837
        %v839 = vlaneseq
        %v840 = vshrl.u32 %v839, 7
        %v841 = vsub.s32 0, %v840
        %v842 = vrot.slane %v600, %v841
        %v843 = vlaneseq
        %v844 = vshrl.u32 %v843, 7
        %v845 = vsub.s32 1, %v844
        %v846 = vrot.slane %v600, %v845
        %v847 = vlaneseq
        %v848 = vshrl.u32 %v847, 7
        %v849 = vsub.s32 2, %v848
        %v850 = vrot.slane %v600, %v849
        %v851 = vlaneseq
        %v852 = vshrl.u32 %v851, 7
        %v853 = vsub.s32 3, %v852
        %v854 = vrot.slane %v600, %v853
        %v855 = vlaneseq
        %v856 = vshrl.u32 %v855, 7
        %v857 = vsub.s32 4, %v856
        %v858 = vrot.slane %v600, %v857
        %v859 = vlaneseq
        %v860 = vshrl.u32 %v859, 7
        %v861 = vsub.s32 5, %v860
        %v862 = vrot.slane %v600, %v861
        %v863 = vlaneseq
        %v864 = vshrl.u32 %v863, 7
        %v865 = vsub.s32 6, %v864
        %v866 = vrot.slane %v600, %v865
        %v867 = vlaneseq
        %v868 = vshrl.u32 %v867, 7
        %v869 = vsub.s32 7, %v868
        %v870 = vrot.slane %v600, %v869
        %v871 = vlaneseq
        %v872 = vshrl.u32 %v871, 7
        %v873 = vsub.s32 0, %v872
        %v874 = vrot.slane %v601, %v873
        %v875 = vlaneseq
        %v876 = vshrl.u32 %v875, 7
        %v877 = vsub.s32 1, %v876
        %v878 = vrot.slane %v601, %v877
        %v879 = vlaneseq
        %v880 = vshrl.u32 %v879, 7
        %v881 = vsub.s32 2, %v880
        %v882 = vrot.slane %v601, %v881
        %v883 = vlaneseq
        %v884 = vshrl.u32 %v883, 7
        %v885 = vsub.s32 3, %v884
        %v886 = vrot.slane %v601, %v885
        %v887 = vlaneseq
        %v888 = vshrl.u32 %v887, 7
        %v889 = vsub.s32 4, %v888
        %v890 = vrot.slane %v601, %v889
        %v891 = vlaneseq
        %v892 = vshrl.u32 %v891, 7
        %v893 = vsub.s32 5, %v892
        %v894 = vrot.slane %v601, %v893
        %v895 = vlaneseq
        %v896 = vshrl.u32 %v895, 7
        %v897 = vsub.s32 6, %v896
        %v898 = vrot.slane %v601, %v897
        %v899 = vlaneseq
        %v900 = vshrl.u32 %v899, 7
        %v901 = vsub.s32 7, %v900
        %v902 = vrot.slane %v601, %v901
        %v903 = vlaneseq
        %v904 = vshrl.u32 %v903, 7
        %v905 = vsub.s32 0, %v904
        %v906 = vrot.slane %v602, %v905
        %v907 = vlaneseq
        %v908 = vshrl.u32 %v907, 7
        %v909 = vsub.s32 1, %v908
        %v910 = vrot.slane %v602, %v909
        %v911 = vlaneseq
        %v912 = vshrl.u32 %v911, 7
        %v913 = vsub.s32 2, %v912
        %v914 = vrot.slane %v602, %v913
        %v915 = vlaneseq
        %v916 = vshrl.u32 %v915, 7
        %v917 = vsub.s32 3, %v916
        %v918 = vrot.slane %v602, %v917
        %v919 = vlaneseq
        %v920 = vshrl.u32 %v919, 7
        %v921 = vsub.s32 4, %v920
        %v922 = vrot.slane %v602, %v921
        %v923 = vlaneseq
        %v924 = vshrl.u32 %v923, 7
        %v925 = vsub.s32 5, %v924
        %v926 = vrot.slane %v602, %v925
        %v927 = vlaneseq
        %v928 = vshrl.u32 %v927, 7
        %v929 = vsub.s32 6, %v928
        %v930 = vrot.slane %v602, %v929
        %v931 = vlaneseq
        %v932 = vshrl.u32 %v931, 7
        %v933 = vsub.s32 7, %v932
        %v934 = vrot.slane %v602, %v933
        %v935 = vlaneseq
        %v936 = vshrl.u32 %v935, 7
        %v937 = vsub.s32 0, %v936
        %v938 = vrot.slane %v603, %v937
        %v939 = vlaneseq
        %v940 = vshrl.u32 %v939, 7
        %v941 = vsub.s32 1, %v940
        %v942 = vrot.slane %v603, %v941
        %v943 = vlaneseq
        %v944 = vshrl.u32 %v943, 7
        %v945 = vsub.s32 2, %v944
        %v946 = vrot.slane %v603, %v945
        %v947 = vlaneseq
        %v948 = vshrl.u32 %v947, 7
        %v949 = vsub.s32 3, %v948
        %v950 = vrot.slane %v603, %v949
        %v951 = vlaneseq
        %v952 = vshrl.u32 %v951, 7
        %v953 = vsub.s32 4, %v952
        %v954 = vrot.slane %v603, %v953
        %v955 = vlaneseq
        %v956 = vshrl.u32 %v955, 7
        %v957 = vsub.s32 5, %v956
        %v958 = vrot.slane %v603, %v957
        %v959 = vlaneseq
        %v960 = vshrl.u32 %v959, 7
        %v961 = vsub.s32 6, %v960
        %v962 = vrot.slane %v603, %v961
        %v963 = vlaneseq
        %v964 = vshrl.u32 %v963, 7
        %v965 = vsub.s32 7, %v964
        %v966 = vrot.slane %v603, %v965
        %vm1055 = vcmask 261120
        %v1057 = vsel %vm1055, %v240, 0
        %1059 = vmatprep.subr.mxu0 %v242
        %1060 = vmatpush1.msra.mxu0 %v241
        %1061 = vmatprep.subr.mxu0 %v330
        %1062 = vmatpush1.msra.mxu0 %v329
        %1063 = vmatprep.subr.mxu0 %v418
        %1064 = vmatpush1.msra.mxu0 %v417
        %1065 = vmatprep.subr.mxu0 %v506
        %1066 = vmatpush1.msra.mxu0 %v505
        %1067 = vmatprep.subr.mxu0 0.0
        %1068 = vmatpush1.msra.mxu0 0.0
        %1069 = vmatprep.subr.mxu0 0.0
        %1070 = vmatpush1.msra.mxu0 0.0
        %1071 = vmatprep.subr.mxu0 0.0
        %1072 = vmatpush1.msra.mxu0 0.0
        %1073 = vmatprep.subr.mxu0 0.0
        %1074 = vmatpush1.msra.mxu0 0.0
        %1075 = vmatprep.subr.mxu0 0.0
        %1076 = vmatpush1.msra.mxu0 0.0
        %1077 = vmatprep.subr.mxu0 0.0
        %1078 = vmatpush1.msra.mxu0 0.0
        %1079 = vmatprep.subr.mxu0 0.0
        %1080 = vmatpush1.msra.mxu0 0.0
        %1081 = vmatprep.subr.mxu0 0.0
        %1082 = vmatpush1.msra.mxu0 0.0
        %1083 = vmatprep.subr.mxu0 0.0
        %1084 = vmatpush1.msra.mxu0 0.0
        %1085 = vmatprep.subr.mxu0 0.0
        %1086 = vmatpush1.msra.mxu0 0.0
        %1087 = vmatprep.subr.mxu0 0.0
        %1088 = vmatpush1.msra.mxu0 0.0
        %1089 = vmatprep.subr.mxu0 0.0
        %1090 = vmatpush1.msra.mxu0 0.0
        %1091 = vmatprep.subr.mxu0 0.0
        %1092 = vmatpush1.msra.mxu0 0.0
        %1093 = vmatprep.subr.mxu0 0.0
        %1094 = vmatpush1.msra.mxu0 0.0
        %1095 = vmatprep.subr.mxu0 0.0
        %1096 = vmatpush1.msra.mxu0 0.0
        %1097 = vmatprep.subr.mxu0 0.0
        %1098 = vmatpush1.msra.mxu0 0.0
        %1099 = vmatprep.subr.mxu0 0.0
        %1100 = vmatpush1.msra.mxu0 0.0
        %1101 = vmatprep.subr.mxu0 0.0
        %1102 = vmatpush1.msra.mxu0 0.0
        %1103 = vmatprep.subr.mxu0 0.0
        %1104 = vmatpush1.msra.mxu0 0.0
        %1105 = vmatprep.subr.mxu0 0.0
        %1106 = vmatpush1.msra.mxu0 0.0
        %1107 = vmatprep.subr.mxu0 0.0
        %1108 = vmatpush1.msra.mxu0 0.0
        %1109 = vmatprep.subr.mxu0 0.0
        %1110 = vmatpush1.msra.mxu0 0.0
        %1111 = vmatprep.subr.mxu0 0.0
        %1112 = vmatpush1.msra.mxu0 0.0
        %1113 = vmatprep.subr.mxu0 0.0
        %1114 = vmatpush1.msra.mxu0 0.0
        %1115 = vmatprep.subr.mxu0 0.0
        %1116 = vmatpush1.msra.mxu0 0.0
        %1117 = vmatprep.subr.mxu0 0.0
        %1118 = vmatpush1.msra.mxu0 0.0
        %1119 = vmatprep.subr.mxu0 0.0
        %1120 = vmatpush1.msra.mxu0 0.0
        %1121 = vmatprep.subr.mxu0 0.0
        %1122 = vmatpush1.msra.mxu0 0.0
        %1123 = vmatprep.mubr.f32.mxu0 0.0
        %1124 = vmatmul.mubr.f32.gmra.mrb[0].mxu0 %v1057
        %v1125 = vpop.f32.mrb[0].mxu0
        %v1126 = vadd.f32 %v618, %v1125
        %v1127 = vpop.f32.mrb[0].mxu0
        %v1128 = vadd.f32 %v622, %v1127
        %1129 = vdwg.mxu0
        %1130 = vmatprep.subr.mxu0 %v244
        %1131 = vmatpush1.msra.mxu0 %v243
        %1132 = vmatprep.subr.mxu0 %v332
        %1133 = vmatpush1.msra.mxu0 %v331
        %1134 = vmatprep.subr.mxu0 %v420
        %1135 = vmatpush1.msra.mxu0 %v419
        %1136 = vmatprep.subr.mxu0 %v508
        %1137 = vmatpush1.msra.mxu0 %v507
        %1138 = vmatprep.subr.mxu0 0.0
        %1139 = vmatpush1.msra.mxu0 0.0
        %1140 = vmatprep.subr.mxu0 0.0
        %1141 = vmatpush1.msra.mxu0 0.0
        %1142 = vmatprep.subr.mxu0 0.0
        %1143 = vmatpush1.msra.mxu0 0.0
        %1144 = vmatprep.subr.mxu0 0.0
        %1145 = vmatpush1.msra.mxu0 0.0
        %1146 = vmatprep.subr.mxu0 0.0
        %1147 = vmatpush1.msra.mxu0 0.0
        %1148 = vmatprep.subr.mxu0 0.0
        %1149 = vmatpush1.msra.mxu0 0.0
        %1150 = vmatprep.subr.mxu0 0.0
        %1151 = vmatpush1.msra.mxu0 0.0
        %1152 = vmatprep.subr.mxu0 0.0
        %1153 = vmatpush1.msra.mxu0 0.0
        %1154 = vmatprep.subr.mxu0 0.0
        %1155 = vmatpush1.msra.mxu0 0.0
        %1156 = vmatprep.subr.mxu0 0.0
        %1157 = vmatpush1.msra.mxu0 0.0
        %1158 = vmatprep.subr.mxu0 0.0
        %1159 = vmatpush1.msra.mxu0 0.0
        %1160 = vmatprep.subr.mxu0 0.0
        %1161 = vmatpush1.msra.mxu0 0.0
        %1162 = vmatprep.subr.mxu0 0.0
        %1163 = vmatpush1.msra.mxu0 0.0
        %1164 = vmatprep.subr.mxu0 0.0
        %1165 = vmatpush1.msra.mxu0 0.0
        %1166 = vmatprep.subr.mxu0 0.0
        %1167 = vmatpush1.msra.mxu0 0.0
        %1168 = vmatprep.subr.mxu0 0.0
        %1169 = vmatpush1.msra.mxu0 0.0
        %1170 = vmatprep.subr.mxu0 0.0
        %1171 = vmatpush1.msra.mxu0 0.0
        %1172 = vmatprep.subr.mxu0 0.0
        %1173 = vmatpush1.msra.mxu0 0.0
        %1174 = vmatprep.subr.mxu0 0.0
        %1175 = vmatpush1.msra.mxu0 0.0
        %1176 = vmatprep.subr.mxu0 0.0
        %1177 = vmatpush1.msra.mxu0 0.0
        %1178 = vmatprep.subr.mxu0 0.0
        %1179 = vmatpush1.msra.mxu0 0.0
        %1180 = vmatprep.subr.mxu0 0.0
        %1181 = vmatpush1.msra.mxu0 0.0
        %1182 = vmatprep.subr.mxu0 0.0
        %1183 = vmatpush1.msra.mxu0 0.0
        %1184 = vmatprep.subr.mxu0 0.0
        %1185 = vmatpush1.msra.mxu0 0.0
        %1186 = vmatprep.subr.mxu0 0.0
        %1187 = vmatpush1.msra.mxu0 0.0
        %1188 = vmatprep.subr.mxu0 0.0
        %1189 = vmatpush1.msra.mxu0 0.0
        %1190 = vmatprep.subr.mxu0 0.0
        %1191 = vmatpush1.msra.mxu0 0.0
        %1192 = vmatprep.subr.mxu0 0.0
        %1193 = vmatpush1.msra.mxu0 0.0
        %1194 = vmatprep.mubr.f32.mxu0 0.0
        %1195 = vmatmul.mubr.f32.gmra.mrb[0].mxu0 %v1057
        %v1196 = vpop.f32.mrb[0].mxu0
        %v1197 = vadd.f32 %v626, %v1196
        %v1198 = vpop.f32.mrb[0].mxu0
        %v1199 = vadd.f32 %v630, %v1198
        %1200 = vdwg.mxu0
        %1201 = vmatprep.subr.mxu0 %v246
        %1202 = vmatpush1.msra.mxu0 %v245
        %1203 = vmatprep.subr.mxu0 %v334
        %1204 = vmatpush1.msra.mxu0 %v333
        %1205 = vmatprep.subr.mxu0 %v422
        %1206 = vmatpush1.msra.mxu0 %v421
        %1207 = vmatprep.subr.mxu0 %v510
        %1208 = vmatpush1.msra.mxu0 %v509
        %1209 = vmatprep.subr.mxu0 0.0
        %1210 = vmatpush1.msra.mxu0 0.0
        %1211 = vmatprep.subr.mxu0 0.0
        %1212 = vmatpush1.msra.mxu0 0.0
        %1213 = vmatprep.subr.mxu0 0.0
        %1214 = vmatpush1.msra.mxu0 0.0
        %1215 = vmatprep.subr.mxu0 0.0
        %1216 = vmatpush1.msra.mxu0 0.0
        %1217 = vmatprep.subr.mxu0 0.0
        %1218 = vmatpush1.msra.mxu0 0.0
        %1219 = vmatprep.subr.mxu0 0.0
        %1220 = vmatpush1.msra.mxu0 0.0
        %1221 = vmatprep.subr.mxu0 0.0
        %1222 = vmatpush1.msra.mxu0 0.0
        %1223 = vmatprep.subr.mxu0 0.0
        %1224 = vmatpush1.msra.mxu0 0.0
        %1225 = vmatprep.subr.mxu0 0.0
        %1226 = vmatpush1.msra.mxu0 0.0
        %1227 = vmatprep.subr.mxu0 0.0
        %1228 = vmatpush1.msra.mxu0 0.0
        %1229 = vmatprep.subr.mxu0 0.0
        %1230 = vmatpush1.msra.mxu0 0.0
        %1231 = vmatprep.subr.mxu0 0.0
        %1232 = vmatpush1.msra.mxu0 0.0
        %1233 = vmatprep.subr.mxu0 0.0
        %1234 = vmatpush1.msra.mxu0 0.0
        %1235 = vmatprep.subr.mxu0 0.0
        %1236 = vmatpush1.msra.mxu0 0.0
        %1237 = vmatprep.subr.mxu0 0.0
        %1238 = vmatpush1.msra.mxu0 0.0
        %1239 = vmatprep.subr.mxu0 0.0
        %1240 = vmatpush1.msra.mxu0 0.0
        %1241 = vmatprep.subr.mxu0 0.0
        %1242 = vmatpush1.msra.mxu0 0.0
        %1243 = vmatprep.subr.mxu0 0.0
        %1244 = vmatpush1.msra.mxu0 0.0
        %1245 = vmatprep.subr.mxu0 0.0
        %1246 = vmatpush1.msra.mxu0 0.0
        %1247 = vmatprep.subr.mxu0 0.0
        %1248 = vmatpush1.msra.mxu0 0.0
        %1249 = vmatprep.subr.mxu0 0.0
        %1250 = vmatpush1.msra.mxu0 0.0
        %1251 = vmatprep.subr.mxu0 0.0
        %1252 = vmatpush1.msra.mxu0 0.0
        %1253 = vmatprep.subr.mxu0 0.0
        %1254 = vmatpush1.msra.mxu0 0.0
        %1255 = vmatprep.subr.mxu0 0.0
        %1256 = vmatpush1.msra.mxu0 0.0
        %1257 = vmatprep.subr.mxu0 0.0
        %1258 = vmatpush1.msra.mxu0 0.0
        %1259 = vmatprep.subr.mxu0 0.0
        %1260 = vmatpush1.msra.mxu0 0.0
        %1261 = vmatprep.subr.mxu0 0.0
        %1262 = vmatpush1.msra.mxu0 0.0
        %1263 = vmatprep.subr.mxu0 0.0
        %1264 = vmatpush1.msra.mxu0 0.0
        %1265 = vmatprep.mubr.f32.mxu0 0.0
        %1266 = vmatmul.mubr.f32.gmra.mrb[0].mxu0 %v1057
        %v1267 = vpop.f32.mrb[0].mxu0
        %v1268 = vadd.f32 %v634, %v1267
        %v1269 = vpop.f32.mrb[0].mxu0
        %v1270 = vadd.f32 %v638, %v1269
        %1271 = vdwg.mxu0
        %1272 = vmatprep.subr.mxu0 %v248
        %1273 = vmatpush1.msra.mxu0 %v247
        %1274 = vmatprep.subr.mxu0 %v336
        %1275 = vmatpush1.msra.mxu0 %v335
        %1276 = vmatprep.subr.mxu0 %v424
        %1277 = vmatpush1.msra.mxu0 %v423
        %1278 = vmatprep.subr.mxu0 %v512
        %1279 = vmatpush1.msra.mxu0 %v511
        %1280 = vmatprep.subr.mxu0 0.0
        %1281 = vmatpush1.msra.mxu0 0.0
        %1282 = vmatprep.subr.mxu0 0.0
        %1283 = vmatpush1.msra.mxu0 0.0
        %1284 = vmatprep.subr.mxu0 0.0
        %1285 = vmatpush1.msra.mxu0 0.0
        %1286 = vmatprep.subr.mxu0 0.0
        %1287 = vmatpush1.msra.mxu0 0.0
        %1288 = vmatprep.subr.mxu0 0.0
        %1289 = vmatpush1.msra.mxu0 0.0
        %1290 = vmatprep.subr.mxu0 0.0
        %1291 = vmatpush1.msra.mxu0 0.0
        %1292 = vmatprep.subr.mxu0 0.0
        %1293 = vmatpush1.msra.mxu0 0.0
        %1294 = vmatprep.subr.mxu0 0.0
        %1295 = vmatpush1.msra.mxu0 0.0
        %1296 = vmatprep.subr.mxu0 0.0
        %1297 = vmatpush1.msra.mxu0 0.0
        %1298 = vmatprep.subr.mxu0 0.0
        %1299 = vmatpush1.msra.mxu0 0.0
        %1300 = vmatprep.subr.mxu0 0.0
        %1301 = vmatpush1.msra.mxu0 0.0
        %1302 = vmatprep.subr.mxu0 0.0
        %1303 = vmatpush1.msra.mxu0 0.0
        %1304 = vmatprep.subr.mxu0 0.0
        %1305 = vmatpush1.msra.mxu0 0.0
        %1306 = vmatprep.subr.mxu0 0.0
        %1307 = vmatpush1.msra.mxu0 0.0
        %1308 = vmatprep.subr.mxu0 0.0
        %1309 = vmatpush1.msra.mxu0 0.0
        %1310 = vmatprep.subr.mxu0 0.0
        %1311 = vmatpush1.msra.mxu0 0.0
        %1312 = vmatprep.subr.mxu0 0.0
        %1313 = vmatpush1.msra.mxu0 0.0
        %1314 = vmatprep.subr.mxu0 0.0
        %1315 = vmatpush1.msra.mxu0 0.0
        %1316 = vmatprep.subr.mxu0 0.0
        %1317 = vmatpush1.msra.mxu0 0.0
        %1318 = vmatprep.subr.mxu0 0.0
        %1319 = vmatpush1.msra.mxu0 0.0
        %1320 = vmatprep.subr.mxu0 0.0
        %1321 = vmatpush1.msra.mxu0 0.0
        %1322 = vmatprep.subr.mxu0 0.0
        %1323 = vmatpush1.msra.mxu0 0.0
        %1324 = vmatprep.subr.mxu0 0.0
        %1325 = vmatpush1.msra.mxu0 0.0
        %1326 = vmatprep.subr.mxu0 0.0
        %1327 = vmatpush1.msra.mxu0 0.0
        %1328 = vmatprep.subr.mxu0 0.0
        %1329 = vmatpush1.msra.mxu0 0.0
        %1330 = vmatprep.subr.mxu0 0.0
        %1331 = vmatpush1.msra.mxu0 0.0
        %1332 = vmatprep.subr.mxu0 0.0
        %1333 = vmatpush1.msra.mxu0 0.0
        %1334 = vmatprep.subr.mxu0 0.0
        %1335 = vmatpush1.msra.mxu0 0.0
        %1336 = vmatprep.mubr.f32.mxu0 0.0
        %1337 = vmatmul.mubr.f32.gmra.mrb[0].mxu0 %v1057
        %v1338 = vpop.f32.mrb[0].mxu0
        %v1339 = vadd.f32 %v642, %v1338
        %v1340 = vpop.f32.mrb[0].mxu0
        %v1341 = vadd.f32 %v646, %v1340
        %1342 = vdwg.mxu0
        %1343 = vmatprep.subr.mxu0 %v250
        %1344 = vmatpush1.msra.mxu0 %v249
        %1345 = vmatprep.subr.mxu0 %v338
        %1346 = vmatpush1.msra.mxu0 %v337
        %1347 = vmatprep.subr.mxu0 %v426
        %1348 = vmatpush1.msra.mxu0 %v425
        %1349 = vmatprep.subr.mxu0 %v514
        %1350 = vmatpush1.msra.mxu0 %v513
        %1351 = vmatprep.subr.mxu0 0.0
        %1352 = vmatpush1.msra.mxu0 0.0
        %1353 = vmatprep.subr.mxu0 0.0
        %1354 = vmatpush1.msra.mxu0 0.0
        %1355 = vmatprep.subr.mxu0 0.0
        %1356 = vmatpush1.msra.mxu0 0.0
        %1357 = vmatprep.subr.mxu0 0.0
        %1358 = vmatpush1.msra.mxu0 0.0
        %1359 = vmatprep.subr.mxu0 0.0
        %1360 = vmatpush1.msra.mxu0 0.0
        %1361 = vmatprep.subr.mxu0 0.0
        %1362 = vmatpush1.msra.mxu0 0.0
        %1363 = vmatprep.subr.mxu0 0.0
        %1364 = vmatpush1.msra.mxu0 0.0
        %1365 = vmatprep.subr.mxu0 0.0
        %1366 = vmatpush1.msra.mxu0 0.0
        %1367 = vmatprep.subr.mxu0 0.0
        %1368 = vmatpush1.msra.mxu0 0.0
        %1369 = vmatprep.subr.mxu0 0.0
        %1370 = vmatpush1.msra.mxu0 0.0
        %1371 = vmatprep.subr.mxu0 0.0
        %1372 = vmatpush1.msra.mxu0 0.0
        %1373 = vmatprep.subr.mxu0 0.0
        %1374 = vmatpush1.msra.mxu0 0.0
        %1375 = vmatprep.subr.mxu0 0.0
        %1376 = vmatpush1.msra.mxu0 0.0
        %1377 = vmatprep.subr.mxu0 0.0
        %1378 = vmatpush1.msra.mxu0 0.0
        %1379 = vmatprep.subr.mxu0 0.0
        %1380 = vmatpush1.msra.mxu0 0.0
        %1381 = vmatprep.subr.mxu0 0.0
        %1382 = vmatpush1.msra.mxu0 0.0
        %1383 = vmatprep.subr.mxu0 0.0
        %1384 = vmatpush1.msra.mxu0 0.0
        %1385 = vmatprep.subr.mxu0 0.0
        %1386 = vmatpush1.msra.mxu0 0.0
        %1387 = vmatprep.subr.mxu0 0.0
        %1388 = vmatpush1.msra.mxu0 0.0
        %1389 = vmatprep.subr.mxu0 0.0
        %1390 = vmatpush1.msra.mxu0 0.0
        %1391 = vmatprep.subr.mxu0 0.0
        %1392 = vmatpush1.msra.mxu0 0.0
        %1393 = vmatprep.subr.mxu0 0.0
        %1394 = vmatpush1.msra.mxu0 0.0
        %1395 = vmatprep.subr.mxu0 0.0
        %1396 = vmatpush1.msra.mxu0 0.0
        %1397 = vmatprep.subr.mxu0 0.0
        %1398 = vmatpush1.msra.mxu0 0.0
        %1399 = vmatprep.subr.mxu0 0.0
        %1400 = vmatpush1.msra.mxu0 0.0
        %1401 = vmatprep.subr.mxu0 0.0
        %1402 = vmatpush1.msra.mxu0 0.0
        %1403 = vmatprep.subr.mxu0 0.0
        %1404 = vmatpush1.msra.mxu0 0.0
        %1405 = vmatprep.subr.mxu0 0.0
        %1406 = vmatpush1.msra.mxu0 0.0
        %1407 = vmatprep.mubr.f32.mxu0 0.0
        %1408 = vmatmul.mubr.f32.gmra.mrb[0].mxu0 %v1057
        %v1409 = vpop.f32.mrb[0].mxu0
        %v1410 = vadd.f32 %v650, %v1409
        %v1411 = vpop.f32.mrb[0].mxu0
        %v1412 = vadd.f32 %v654, %v1411
        %1413 = vdwg.mxu0
        %1414 = vmatprep.subr.mxu0 %v252
        %1415 = vmatpush1.msra.mxu0 %v251
        %1416 = vmatprep.subr.mxu0 %v340
        %1417 = vmatpush1.msra.mxu0 %v339
        %1418 = vmatprep.subr.mxu0 %v428
        %1419 = vmatpush1.msra.mxu0 %v427
        %1420 = vmatprep.subr.mxu0 %v516
        %1421 = vmatpush1.msra.mxu0 %v515
        %1422 = vmatprep.subr.mxu0 0.0
        %1423 = vmatpush1.msra.mxu0 0.0
        %1424 = vmatprep.subr.mxu0 0.0
        %1425 = vmatpush1.msra.mxu0 0.0
        %1426 = vmatprep.subr.mxu0 0.0
        %1427 = vmatpush1.msra.mxu0 0.0
        %1428 = vmatprep.subr.mxu0 0.0
        %1429 = vmatpush1.msra.mxu0 0.0
        %1430 = vmatprep.subr.mxu0 0.0
        %1431 = vmatpush1.msra.mxu0 0.0
        %1432 = vmatprep.subr.mxu0 0.0
        %1433 = vmatpush1.msra.mxu0 0.0
        %1434 = vmatprep.subr.mxu0 0.0
        %1435 = vmatpush1.msra.mxu0 0.0
        %1436 = vmatprep.subr.mxu0 0.0
        %1437 = vmatpush1.msra.mxu0 0.0
        %1438 = vmatprep.subr.mxu0 0.0
        %1439 = vmatpush1.msra.mxu0 0.0
        %1440 = vmatprep.subr.mxu0 0.0
        %1441 = vmatpush1.msra.mxu0 0.0
        %1442 = vmatprep.subr.mxu0 0.0
        %1443 = vmatpush1.msra.mxu0 0.0
        %1444 = vmatprep.subr.mxu0 0.0
        %1445 = vmatpush1.msra.mxu0 0.0
        %1446 = vmatprep.subr.mxu0 0.0
        %1447 = vmatpush1.msra.mxu0 0.0
        %1448 = vmatprep.subr.mxu0 0.0
        %1449 = vmatpush1.msra.mxu0 0.0
        %1450 = vmatprep.subr.mxu0 0.0
        %1451 = vmatpush1.msra.mxu0 0.0
        %1452 = vmatprep.subr.mxu0 0.0
        %1453 = vmatpush1.msra.mxu0 0.0
        %1454 = vmatprep.subr.mxu0 0.0
        %1455 = vmatpush1.msra.mxu0 0.0
        %1456 = vmatprep.subr.mxu0 0.0
        %1457 = vmatpush1.msra.mxu0 0.0
        %1458 = vmatprep.subr.mxu0 0.0
        %1459 = vmatpush1.msra.mxu0 0.0
        %1460 = vmatprep.subr.mxu0 0.0
        %1461 = vmatpush1.msra.mxu0 0.0
        %1462 = vmatprep.subr.mxu0 0.0
        %1463 = vmatpush1.msra.mxu0 0.0
        %1464 = vmatprep.subr.mxu0 0.0
        %1465 = vmatpush1.msra.mxu0 0.0
        %1466 = vmatprep.subr.mxu0 0.0
        %1467 = vmatpush1.msra.mxu0 0.0
        %1468 = vmatprep.subr.mxu0 0.0
        %1469 = vmatpush1.msra.mxu0 0.0
        %1470 = vmatprep.subr.mxu0 0.0
        %1471 = vmatpush1.msra.mxu0 0.0
        %1472 = vmatprep.subr.mxu0 0.0
        %1473 = vmatpush1.msra.mxu0 0.0
        %1474 = vmatprep.subr.mxu0 0.0
        %1475 = vmatpush1.msra.mxu0 0.0
        %1476 = vmatprep.subr.mxu0 0.0
        %1477 = vmatpush1.msra.mxu0 0.0
        %1478 = vmatprep.mubr.f32.mxu0 0.0
        %1479 = vmatmul.mubr.f32.gmra.mrb[0].mxu0 %v1057
        %v1480 = vpop.f32.mrb[0].mxu0
        %v1481 = vadd.f32 %v658, %v1480
        %v1482 = vpop.f32.mrb[0].mxu0
        %v1483 = vadd.f32 %v662, %v1482
        %1484 = vdwg.mxu0
        %1485 = vmatprep.subr.mxu0 %v254
        %1486 = vmatpush1.msra.mxu0 %v253
        %1487 = vmatprep.subr.mxu0 %v342
        %1488 = vmatpush1.msra.mxu0 %v341
        %1489 = vmatprep.subr.mxu0 %v430
        %1490 = vmatpush1.msra.mxu0 %v429
        %1491 = vmatprep.subr.mxu0 %v518
        %1492 = vmatpush1.msra.mxu0 %v517
        %1493 = vmatprep.subr.mxu0 0.0
        %1494 = vmatpush1.msra.mxu0 0.0
        %1495 = vmatprep.subr.mxu0 0.0
        %1496 = vmatpush1.msra.mxu0 0.0
        %1497 = vmatprep.subr.mxu0 0.0
        %1498 = vmatpush1.msra.mxu0 0.0
        %1499 = vmatprep.subr.mxu0 0.0
        %1500 = vmatpush1.msra.mxu0 0.0
        %1501 = vmatprep.subr.mxu0 0.0
        %1502 = vmatpush1.msra.mxu0 0.0
        %1503 = vmatprep.subr.mxu0 0.0
        %1504 = vmatpush1.msra.mxu0 0.0
        %1505 = vmatprep.subr.mxu0 0.0
        %1506 = vmatpush1.msra.mxu0 0.0
        %1507 = vmatprep.subr.mxu0 0.0
        %1508 = vmatpush1.msra.mxu0 0.0
        %1509 = vmatprep.subr.mxu0 0.0
        %1510 = vmatpush1.msra.mxu0 0.0
        %1511 = vmatprep.subr.mxu0 0.0
        %1512 = vmatpush1.msra.mxu0 0.0
        %1513 = vmatprep.subr.mxu0 0.0
        %1514 = vmatpush1.msra.mxu0 0.0
        %1515 = vmatprep.subr.mxu0 0.0
        %1516 = vmatpush1.msra.mxu0 0.0
        %1517 = vmatprep.subr.mxu0 0.0
        %1518 = vmatpush1.msra.mxu0 0.0
        %1519 = vmatprep.subr.mxu0 0.0
        %1520 = vmatpush1.msra.mxu0 0.0
        %1521 = vmatprep.subr.mxu0 0.0
        %1522 = vmatpush1.msra.mxu0 0.0
        %1523 = vmatprep.subr.mxu0 0.0
        %1524 = vmatpush1.msra.mxu0 0.0
        %1525 = vmatprep.subr.mxu0 0.0
        %1526 = vmatpush1.msra.mxu0 0.0
        %1527 = vmatprep.subr.mxu0 0.0
        %1528 = vmatpush1.msra.mxu0 0.0
        %1529 = vmatprep.subr.mxu0 0.0
        %1530 = vmatpush1.msra.mxu0 0.0
        %1531 = vmatprep.subr.mxu0 0.0
        %1532 = vmatpush1.msra.mxu0 0.0
        %1533 = vmatprep.subr.mxu0 0.0
        %1534 = vmatpush1.msra.mxu0 0.0
        %1535 = vmatprep.subr.mxu0 0.0
        %1536 = vmatpush1.msra.mxu0 0.0
        %1537 = vmatprep.subr.mxu0 0.0
        %1538 = vmatpush1.msra.mxu0 0.0
        %1539 = vmatprep.subr.mxu0 0.0
        %1540 = vmatpush1.msra.mxu0 0.0
        %1541 = vmatprep.subr.mxu0 0.0
        %1542 = vmatpush1.msra.mxu0 0.0
        %1543 = vmatprep.subr.mxu0 0.0
        %1544 = vmatpush1.msra.mxu0 0.0
        %1545 = vmatprep.subr.mxu0 0.0
        %1546 = vmatpush1.msra.mxu0 0.0
        %1547 = vmatprep.subr.mxu0 0.0
        %1548 = vmatpush1.msra.mxu0 0.0
        %1549 = vmatprep.mubr.f32.mxu0 0.0
        %1550 = vmatmul.mubr.f32.gmra.mrb[0].mxu0 %v1057
        %v1551 = vpop.f32.mrb[0].mxu0
        %v1552 = vadd.f32 %v666, %v1551
        %v1553 = vpop.f32.mrb[0].mxu0
        %v1554 = vadd.f32 %v670, %v1553
        %1555 = vdwg.mxu0
        %1556 = vmatprep.subr.mxu0 %v256
        %1557 = vmatpush1.msra.mxu0 %v255
        %1558 = vmatprep.subr.mxu0 %v344
        %1559 = vmatpush1.msra.mxu0 %v343
        %1560 = vmatprep.subr.mxu0 %v432
        %1561 = vmatpush1.msra.mxu0 %v431
        %1562 = vmatprep.subr.mxu0 %v520
        %1563 = vmatpush1.msra.mxu0 %v519
        %1564 = vmatprep.subr.mxu0 0.0
        %1565 = vmatpush1.msra.mxu0 0.0
        %1566 = vmatprep.subr.mxu0 0.0
        %1567 = vmatpush1.msra.mxu0 0.0
        %1568 = vmatprep.subr.mxu0 0.0
        %1569 = vmatpush1.msra.mxu0 0.0
        %1570 = vmatprep.subr.mxu0 0.0
        %1571 = vmatpush1.msra.mxu0 0.0
        %1572 = vmatprep.subr.mxu0 0.0
        %1573 = vmatpush1.msra.mxu0 0.0
        %1574 = vmatprep.subr.mxu0 0.0
        %1575 = vmatpush1.msra.mxu0 0.0
        %1576 = vmatprep.subr.mxu0 0.0
        %1577 = vmatpush1.msra.mxu0 0.0
        %1578 = vmatprep.subr.mxu0 0.0
        %1579 = vmatpush1.msra.mxu0 0.0
        %1580 = vmatprep.subr.mxu0 0.0
        %1581 = vmatpush1.msra.mxu0 0.0
        %1582 = vmatprep.subr.mxu0 0.0
        %1583 = vmatpush1.msra.mxu0 0.0
        %1584 = vmatprep.subr.mxu0 0.0
        %1585 = vmatpush1.msra.mxu0 0.0
        %1586 = vmatprep.subr.mxu0 0.0
        %1587 = vmatpush1.msra.mxu0 0.0
        %1588 = vmatprep.subr.mxu0 0.0
        %1589 = vmatpush1.msra.mxu0 0.0
        %1590 = vmatprep.subr.mxu0 0.0
        %1591 = vmatpush1.msra.mxu0 0.0
        %1592 = vmatprep.subr.mxu0 0.0
        %1593 = vmatpush1.msra.mxu0 0.0
        %1594 = vmatprep.subr.mxu0 0.0
        %1595 = vmatpush1.msra.mxu0 0.0
        %1596 = vmatprep.subr.mxu0 0.0
        %1597 = vmatpush1.msra.mxu0 0.0
        %1598 = vmatprep.subr.mxu0 0.0
        %1599 = vmatpush1.msra.mxu0 0.0
        %1600 = vmatprep.subr.mxu0 0.0
        %1601 = vmatpush1.msra.mxu0 0.0
        %1602 = vmatprep.subr.mxu0 0.0
        %1603 = vmatpush1.msra.mxu0 0.0
        %1604 = vmatprep.subr.mxu0 0.0
        %1605 = vmatpush1.msra.mxu0 0.0
        %1606 = vmatprep.subr.mxu0 0.0
        %1607 = vmatpush1.msra.mxu0 0.0
        %1608 = vmatprep.subr.mxu0 0.0
        %1609 = vmatpush1.msra.mxu0 0.0
        %1610 = vmatprep.subr.mxu0 0.0
        %1611 = vmatpush1.msra.mxu0 0.0
        %1612 = vmatprep.subr.mxu0 0.0
        %1613 = vmatpush1.msra.mxu0 0.0
        %1614 = vmatprep.subr.mxu0 0.0
        %1615 = vmatpush1.msra.mxu0 0.0
        %1616 = vmatprep.subr.mxu0 0.0
        %1617 = vmatpush1.msra.mxu0 0.0
        %1618 = vmatprep.subr.mxu0 0.0
        %1619 = vmatpush1.msra.mxu0 0.0
        %1620 = vmatprep.mubr.f32.mxu0 0.0
        %1621 = vmatmul.mubr.f32.gmra.mrb[0].mxu0 %v1057
        %v1622 = vpop.f32.mrb[0].mxu0
        %v1623 = vadd.f32 %v674, %v1622
        %v1624 = vpop.f32.mrb[0].mxu0
        %v1625 = vadd.f32 %v678, %v1624
        %1626 = vdwg.mxu0
        %1627 = vmatprep.subr.mxu0 %v258
        %1628 = vmatpush1.msra.mxu0 %v257
        %1629 = vmatprep.subr.mxu0 %v346
        %1630 = vmatpush1.msra.mxu0 %v345
        %1631 = vmatprep.subr.mxu0 %v434
        %1632 = vmatpush1.msra.mxu0 %v433
        %1633 = vmatprep.subr.mxu0 %v522
        %1634 = vmatpush1.msra.mxu0 %v521
        %1635 = vmatprep.subr.mxu0 0.0
        %1636 = vmatpush1.msra.mxu0 0.0
        %1637 = vmatprep.subr.mxu0 0.0
        %1638 = vmatpush1.msra.mxu0 0.0
        %1639 = vmatprep.subr.mxu0 0.0
        %1640 = vmatpush1.msra.mxu0 0.0
        %1641 = vmatprep.subr.mxu0 0.0
        %1642 = vmatpush1.msra.mxu0 0.0
        %1643 = vmatprep.subr.mxu0 0.0
        %1644 = vmatpush1.msra.mxu0 0.0
        %1645 = vmatprep.subr.mxu0 0.0
        %1646 = vmatpush1.msra.mxu0 0.0
        %1647 = vmatprep.subr.mxu0 0.0
        %1648 = vmatpush1.msra.mxu0 0.0
        %1649 = vmatprep.subr.mxu0 0.0
        %1650 = vmatpush1.msra.mxu0 0.0
        %1651 = vmatprep.subr.mxu0 0.0
        %1652 = vmatpush1.msra.mxu0 0.0
        %1653 = vmatprep.subr.mxu0 0.0
        %1654 = vmatpush1.msra.mxu0 0.0
        %1655 = vmatprep.subr.mxu0 0.0
        %1656 = vmatpush1.msra.mxu0 0.0
        %1657 = vmatprep.subr.mxu0 0.0
        %1658 = vmatpush1.msra.mxu0 0.0
        %1659 = vmatprep.subr.mxu0 0.0
        %1660 = vmatpush1.msra.mxu0 0.0
        %1661 = vmatprep.subr.mxu0 0.0
        %1662 = vmatpush1.msra.mxu0 0.0
        %1663 = vmatprep.subr.mxu0 0.0
        %1664 = vmatpush1.msra.mxu0 0.0
        %1665 = vmatprep.subr.mxu0 0.0
        %1666 = vmatpush1.msra.mxu0 0.0
        %1667 = vmatprep.subr.mxu0 0.0
        %1668 = vmatpush1.msra.mxu0 0.0
        %1669 = vmatprep.subr.mxu0 0.0
        %1670 = vmatpush1.msra.mxu0 0.0
        %1671 = vmatprep.subr.mxu0 0.0
        %1672 = vmatpush1.msra.mxu0 0.0
        %1673 = vmatprep.subr.mxu0 0.0
        %1674 = vmatpush1.msra.mxu0 0.0
        %1675 = vmatprep.subr.mxu0 0.0
        %1676 = vmatpush1.msra.mxu0 0.0
        %1677 = vmatprep.subr.mxu0 0.0
        %1678 = vmatpush1.msra.mxu0 0.0
        %1679 = vmatprep.subr.mxu0 0.0
        %1680 = vmatpush1.msra.mxu0 0.0
        %1681 = vmatprep.subr.mxu0 0.0
        %1682 = vmatpush1.msra.mxu0 0.0
        %1683 = vmatprep.subr.mxu0 0.0
        %1684 = vmatpush1.msra.mxu0 0.0
        %1685 = vmatprep.subr.mxu0 0.0
        %1686 = vmatpush1.msra.mxu0 0.0
        %1687 = vmatprep.subr.mxu0 0.0
        %1688 = vmatpush1.msra.mxu0 0.0
        %1689 = vmatprep.subr.mxu0 0.0
        %1690 = vmatpush1.msra.mxu0 0.0
        %1691 = vmatprep.mubr.f32.mxu0 0.0
        %1692 = vmatmul.mubr.f32.gmra.mrb[0].mxu0 %v1057
        %v1693 = vpop.f32.mrb[0].mxu0
        %v1694 = vadd.f32 %v682, %v1693
        %v1695 = vpop.f32.mrb[0].mxu0
        %v1696 = vadd.f32 %v686, %v1695
        %1697 = vdwg.mxu0
        %1698 = vmatprep.subr.mxu0 %v260
        %1699 = vmatpush1.msra.mxu0 %v259
        %1700 = vmatprep.subr.mxu0 %v348
        %1701 = vmatpush1.msra.mxu0 %v347
        %1702 = vmatprep.subr.mxu0 %v436
        %1703 = vmatpush1.msra.mxu0 %v435
        %1704 = vmatprep.subr.mxu0 %v524
        %1705 = vmatpush1.msra.mxu0 %v523
        %1706 = vmatprep.subr.mxu0 0.0
        %1707 = vmatpush1.msra.mxu0 0.0
        %1708 = vmatprep.subr.mxu0 0.0
        %1709 = vmatpush1.msra.mxu0 0.0
        %1710 = vmatprep.subr.mxu0 0.0
        %1711 = vmatpush1.msra.mxu0 0.0
        %1712 = vmatprep.subr.mxu0 0.0
        %1713 = vmatpush1.msra.mxu0 0.0
        %1714 = vmatprep.subr.mxu0 0.0
        %1715 = vmatpush1.msra.mxu0 0.0
        %1716 = vmatprep.subr.mxu0 0.0
        %1717 = vmatpush1.msra.mxu0 0.0
        %1718 = vmatprep.subr.mxu0 0.0
        %1719 = vmatpush1.msra.mxu0 0.0
        %1720 = vmatprep.subr.mxu0 0.0
        %1721 = vmatpush1.msra.mxu0 0.0
        %1722 = vmatprep.subr.mxu0 0.0
        %1723 = vmatpush1.msra.mxu0 0.0
        %1724 = vmatprep.subr.mxu0 0.0
        %1725 = vmatpush1.msra.mxu0 0.0
        %1726 = vmatprep.subr.mxu0 0.0
        %1727 = vmatpush1.msra.mxu0 0.0
        %1728 = vmatprep.subr.mxu0 0.0
        %1729 = vmatpush1.msra.mxu0 0.0
        %1730 = vmatprep.subr.mxu0 0.0
        %1731 = vmatpush1.msra.mxu0 0.0
        %1732 = vmatprep.subr.mxu0 0.0
        %1733 = vmatpush1.msra.mxu0 0.0
        %1734 = vmatprep.subr.mxu0 0.0
        %1735 = vmatpush1.msra.mxu0 0.0
        %1736 = vmatprep.subr.mxu0 0.0
        %1737 = vmatpush1.msra.mxu0 0.0
        %1738 = vmatprep.subr.mxu0 0.0
        %1739 = vmatpush1.msra.mxu0 0.0
        %1740 = vmatprep.subr.mxu0 0.0
        %1741 = vmatpush1.msra.mxu0 0.0
        %1742 = vmatprep.subr.mxu0 0.0
        %1743 = vmatpush1.msra.mxu0 0.0
        %1744 = vmatprep.subr.mxu0 0.0
        %1745 = vmatpush1.msra.mxu0 0.0
        %1746 = vmatprep.subr.mxu0 0.0
        %1747 = vmatpush1.msra.mxu0 0.0
        %1748 = vmatprep.subr.mxu0 0.0
        %1749 = vmatpush1.msra.mxu0 0.0
        %1750 = vmatprep.subr.mxu0 0.0
        %1751 = vmatpush1.msra.mxu0 0.0
        %1752 = vmatprep.subr.mxu0 0.0
        %1753 = vmatpush1.msra.mxu0 0.0
        %1754 = vmatprep.subr.mxu0 0.0
        %1755 = vmatpush1.msra.mxu0 0.0
        %1756 = vmatprep.subr.mxu0 0.0
        %1757 = vmatpush1.msra.mxu0 0.0
        %1758 = vmatprep.subr.mxu0 0.0
        %1759 = vmatpush1.msra.mxu0 0.0
        %1760 = vmatprep.subr.mxu0 0.0
        %1761 = vmatpush1.msra.mxu0 0.0
        %1762 = vmatprep.mubr.f32.mxu0 0.0
        %1763 = vmatmul.mubr.f32.gmra.mrb[0].mxu0 %v1057
        %v1764 = vpop.f32.mrb[0].mxu0
        %v1765 = vadd.f32 %v690, %v1764
        %v1766 = vpop.f32.mrb[0].mxu0
        %v1767 = vadd.f32 %v694, %v1766
        %1768 = vdwg.mxu0
        %1769 = vmatprep.subr.mxu0 %v262
        %1770 = vmatpush1.msra.mxu0 %v261
        %1771 = vmatprep.subr.mxu0 %v350
        %1772 = vmatpush1.msra.mxu0 %v349
        %1773 = vmatprep.subr.mxu0 %v438
        %1774 = vmatpush1.msra.mxu0 %v437
        %1775 = vmatprep.subr.mxu0 %v526
        %1776 = vmatpush1.msra.mxu0 %v525
        %1777 = vmatprep.subr.mxu0 0.0
        %1778 = vmatpush1.msra.mxu0 0.0
        %1779 = vmatprep.subr.mxu0 0.0
        %1780 = vmatpush1.msra.mxu0 0.0
        %1781 = vmatprep.subr.mxu0 0.0
        %1782 = vmatpush1.msra.mxu0 0.0
        %1783 = vmatprep.subr.mxu0 0.0
        %1784 = vmatpush1.msra.mxu0 0.0
        %1785 = vmatprep.subr.mxu0 0.0
        %1786 = vmatpush1.msra.mxu0 0.0
        %1787 = vmatprep.subr.mxu0 0.0
        %1788 = vmatpush1.msra.mxu0 0.0
        %1789 = vmatprep.subr.mxu0 0.0
        %1790 = vmatpush1.msra.mxu0 0.0
        %1791 = vmatprep.subr.mxu0 0.0
        %1792 = vmatpush1.msra.mxu0 0.0
        %1793 = vmatprep.subr.mxu0 0.0
        %1794 = vmatpush1.msra.mxu0 0.0
        %1795 = vmatprep.subr.mxu0 0.0
        %1796 = vmatpush1.msra.mxu0 0.0
        %1797 = vmatprep.subr.mxu0 0.0
        %1798 = vmatpush1.msra.mxu0 0.0
        %1799 = vmatprep.subr.mxu0 0.0
        %1800 = vmatpush1.msra.mxu0 0.0
        %1801 = vmatprep.subr.mxu0 0.0
        %1802 = vmatpush1.msra.mxu0 0.0
        %1803 = vmatprep.subr.mxu0 0.0
        %1804 = vmatpush1.msra.mxu0 0.0
        %1805 = vmatprep.subr.mxu0 0.0
        %1806 = vmatpush1.msra.mxu0 0.0
        %1807 = vmatprep.subr.mxu0 0.0
        %1808 = vmatpush1.msra.mxu0 0.0
        %1809 = vmatprep.subr.mxu0 0.0
        %1810 = vmatpush1.msra.mxu0 0.0
        %1811 = vmatprep.subr.mxu0 0.0
        %1812 = vmatpush1.msra.mxu0 0.0
        %1813 = vmatprep.subr.mxu0 0.0
        %1814 = vmatpush1.msra.mxu0 0.0
        %1815 = vmatprep.subr.mxu0 0.0
        %1816 = vmatpush1.msra.mxu0 0.0
        %1817 = vmatprep.subr.mxu0 0.0
        %1818 = vmatpush1.msra.mxu0 0.0
        %1819 = vmatprep.subr.mxu0 0.0
        %1820 = vmatpush1.msra.mxu0 0.0
        %1821 = vmatprep.subr.mxu0 0.0
        %1822 = vmatpush1.msra.mxu0 0.0
        %1823 = vmatprep.subr.mxu0 0.0
        %1824 = vmatpush1.msra.mxu0 0.0
        %1825 = vmatprep.subr.mxu0 0.0
        %1826 = vmatpush1.msra.mxu0 0.0
        %1827 = vmatprep.subr.mxu0 0.0
        %1828 = vmatpush1.msra.mxu0 0.0
        %1829 = vmatprep.subr.mxu0 0.0
        %1830 = vmatpush1.msra.mxu0 0.0
        %1831 = vmatprep.subr.mxu0 0.0
        %1832 = vmatpush1.msra.mxu0 0.0
        %1833 = vmatprep.mubr.f32.mxu0 0.0
        %1834 = vmatmul.mubr.f32.gmra.mrb[0].mxu0 %v1057
        %v1835 = vpop.f32.mrb[0].mxu0
        %v1836 = vadd.f32 %v698, %v1835
        %v1837 = vpop.f32.mrb[0].mxu0
        %v1838 = vadd.f32 %v702, %v1837
        %1839 = vdwg.mxu0
        %1840 = vmatprep.subr.mxu0 %v264
        %1841 = vmatpush1.msra.mxu0 %v263
        %1842 = vmatprep.subr.mxu0 %v352
        %1843 = vmatpush1.msra.mxu0 %v351
        %1844 = vmatprep.subr.mxu0 %v440
        %1845 = vmatpush1.msra.mxu0 %v439
        %1846 = vmatprep.subr.mxu0 %v528
        %1847 = vmatpush1.msra.mxu0 %v527
        %1848 = vmatprep.subr.mxu0 0.0
        %1849 = vmatpush1.msra.mxu0 0.0
        %1850 = vmatprep.subr.mxu0 0.0
        %1851 = vmatpush1.msra.mxu0 0.0
        %1852 = vmatprep.subr.mxu0 0.0
        %1853 = vmatpush1.msra.mxu0 0.0
        %1854 = vmatprep.subr.mxu0 0.0
        %1855 = vmatpush1.msra.mxu0 0.0
        %1856 = vmatprep.subr.mxu0 0.0
        %1857 = vmatpush1.msra.mxu0 0.0
        %1858 = vmatprep.subr.mxu0 0.0
        %1859 = vmatpush1.msra.mxu0 0.0
        %1860 = vmatprep.subr.mxu0 0.0
        %1861 = vmatpush1.msra.mxu0 0.0
        %1862 = vmatprep.subr.mxu0 0.0
        %1863 = vmatpush1.msra.mxu0 0.0
        %1864 = vmatprep.subr.mxu0 0.0
        %1865 = vmatpush1.msra.mxu0 0.0
        %1866 = vmatprep.subr.mxu0 0.0
        %1867 = vmatpush1.msra.mxu0 0.0
        %1868 = vmatprep.subr.mxu0 0.0
        %1869 = vmatpush1.msra.mxu0 0.0
        %1870 = vmatprep.subr.mxu0 0.0
        %1871 = vmatpush1.msra.mxu0 0.0
        %1872 = vmatprep.subr.mxu0 0.0
        %1873 = vmatpush1.msra.mxu0 0.0
        %1874 = vmatprep.subr.mxu0 0.0
        %1875 = vmatpush1.msra.mxu0 0.0
        %1876 = vmatprep.subr.mxu0 0.0
        %1877 = vmatpush1.msra.mxu0 0.0
        %1878 = vmatprep.subr.mxu0 0.0
        %1879 = vmatpush1.msra.mxu0 0.0
        %1880 = vmatprep.subr.mxu0 0.0
        %1881 = vmatpush1.msra.mxu0 0.0
        %1882 = vmatprep.subr.mxu0 0.0
        %1883 = vmatpush1.msra.mxu0 0.0
        %1884 = vmatprep.subr.mxu0 0.0
        %1885 = vmatpush1.msra.mxu0 0.0
        %1886 = vmatprep.subr.mxu0 0.0
        %1887 = vmatpush1.msra.mxu0 0.0
        %1888 = vmatprep.subr.mxu0 0.0
        %1889 = vmatpush1.msra.mxu0 0.0
        %1890 = vmatprep.subr.mxu0 0.0
        %1891 = vmatpush1.msra.mxu0 0.0
        %1892 = vmatprep.subr.mxu0 0.0
        %1893 = vmatpush1.msra.mxu0 0.0
        %1894 = vmatprep.subr.mxu0 0.0
        %1895 = vmatpush1.msra.mxu0 0.0
        %1896 = vmatprep.subr.mxu0 0.0
        %1897 = vmatpush1.msra.mxu0 0.0
        %1898 = vmatprep.subr.mxu0 0.0
        %1899 = vmatpush1.msra.mxu0 0.0
        %1900 = vmatprep.subr.mxu0 0.0
        %1901 = vmatpush1.msra.mxu0 0.0
        %1902 = vmatprep.subr.mxu0 0.0
        %1903 = vmatpush1.msra.mxu0 0.0
        %1904 = vmatprep.mubr.f32.mxu0 0.0
        %1905 = vmatmul.mubr.f32.gmra.mrb[0].mxu0 %v1057
        %v1906 = vpop.f32.mrb[0].mxu0
        %v1907 = vadd.f32 %v706, %v1906
        %v1908 = vpop.f32.mrb[0].mxu0
        %v1909 = vadd.f32 %v710, %v1908
        %1910 = vdwg.mxu0
        %1911 = vmatprep.subr.mxu0 %v266
        %1912 = vmatpush1.msra.mxu0 %v265
        %1913 = vmatprep.subr.mxu0 %v354
        %1914 = vmatpush1.msra.mxu0 %v353
        %1915 = vmatprep.subr.mxu0 %v442
        %1916 = vmatpush1.msra.mxu0 %v441
        %1917 = vmatprep.subr.mxu0 %v530
        %1918 = vmatpush1.msra.mxu0 %v529
        %1919 = vmatprep.subr.mxu0 0.0
        %1920 = vmatpush1.msra.mxu0 0.0
        %1921 = vmatprep.subr.mxu0 0.0
        %1922 = vmatpush1.msra.mxu0 0.0
        %1923 = vmatprep.subr.mxu0 0.0
        %1924 = vmatpush1.msra.mxu0 0.0
        %1925 = vmatprep.subr.mxu0 0.0
        %1926 = vmatpush1.msra.mxu0 0.0
        %1927 = vmatprep.subr.mxu0 0.0
        %1928 = vmatpush1.msra.mxu0 0.0
        %1929 = vmatprep.subr.mxu0 0.0
        %1930 = vmatpush1.msra.mxu0 0.0
        %1931 = vmatprep.subr.mxu0 0.0
        %1932 = vmatpush1.msra.mxu0 0.0
        %1933 = vmatprep.subr.mxu0 0.0
        %1934 = vmatpush1.msra.mxu0 0.0
        %1935 = vmatprep.subr.mxu0 0.0
        %1936 = vmatpush1.msra.mxu0 0.0
        %1937 = vmatprep.subr.mxu0 0.0
        %1938 = vmatpush1.msra.mxu0 0.0
        %1939 = vmatprep.subr.mxu0 0.0
        %1940 = vmatpush1.msra.mxu0 0.0
        %1941 = vmatprep.subr.mxu0 0.0
        %1942 = vmatpush1.msra.mxu0 0.0
        %1943 = vmatprep.subr.mxu0 0.0
        %1944 = vmatpush1.msra.mxu0 0.0
        %1945 = vmatprep.subr.mxu0 0.0
        %1946 = vmatpush1.msra.mxu0 0.0
        %1947 = vmatprep.subr.mxu0 0.0
        %1948 = vmatpush1.msra.mxu0 0.0
        %1949 = vmatprep.subr.mxu0 0.0
        %1950 = vmatpush1.msra.mxu0 0.0
        %1951 = vmatprep.subr.mxu0 0.0
        %1952 = vmatpush1.msra.mxu0 0.0
        %1953 = vmatprep.subr.mxu0 0.0
        %1954 = vmatpush1.msra.mxu0 0.0
        %1955 = vmatprep.subr.mxu0 0.0
        %1956 = vmatpush1.msra.mxu0 0.0
        %1957 = vmatprep.subr.mxu0 0.0
        %1958 = vmatpush1.msra.mxu0 0.0
        %1959 = vmatprep.subr.mxu0 0.0
        %1960 = vmatpush1.msra.mxu0 0.0
        %1961 = vmatprep.subr.mxu0 0.0
        %1962 = vmatpush1.msra.mxu0 0.0
        %1963 = vmatprep.subr.mxu0 0.0
        %1964 = vmatpush1.msra.mxu0 0.0
        %1965 = vmatprep.subr.mxu0 0.0
        %1966 = vmatpush1.msra.mxu0 0.0
        %1967 = vmatprep.subr.mxu0 0.0
        %1968 = vmatpush1.msra.mxu0 0.0
        %1969 = vmatprep.subr.mxu0 0.0
        %1970 = vmatpush1.msra.mxu0 0.0
        %1971 = vmatprep.subr.mxu0 0.0
        %1972 = vmatpush1.msra.mxu0 0.0
        %1973 = vmatprep.subr.mxu0 0.0
        %1974 = vmatpush1.msra.mxu0 0.0
        %1975 = vmatprep.mubr.f32.mxu0 0.0
        %1976 = vmatmul.mubr.f32.gmra.mrb[0].mxu0 %v1057
        %v1977 = vpop.f32.mrb[0].mxu0
        %v1978 = vadd.f32 %v714, %v1977
        %v1979 = vpop.f32.mrb[0].mxu0
        %v1980 = vadd.f32 %v718, %v1979
        %1981 = vdwg.mxu0
        %1982 = vmatprep.subr.mxu0 %v268
        %1983 = vmatpush1.msra.mxu0 %v267
        %1984 = vmatprep.subr.mxu0 %v356
        %1985 = vmatpush1.msra.mxu0 %v355
        %1986 = vmatprep.subr.mxu0 %v444
        %1987 = vmatpush1.msra.mxu0 %v443
        %1988 = vmatprep.subr.mxu0 %v532
        %1989 = vmatpush1.msra.mxu0 %v531
        %1990 = vmatprep.subr.mxu0 0.0
        %1991 = vmatpush1.msra.mxu0 0.0
        %1992 = vmatprep.subr.mxu0 0.0
        %1993 = vmatpush1.msra.mxu0 0.0
        %1994 = vmatprep.subr.mxu0 0.0
        %1995 = vmatpush1.msra.mxu0 0.0
        %1996 = vmatprep.subr.mxu0 0.0
        %1997 = vmatpush1.msra.mxu0 0.0
        %1998 = vmatprep.subr.mxu0 0.0
        %1999 = vmatpush1.msra.mxu0 0.0
        %2000 = vmatprep.subr.mxu0 0.0
        %2001 = vmatpush1.msra.mxu0 0.0
        %2002 = vmatprep.subr.mxu0 0.0
        %2003 = vmatpush1.msra.mxu0 0.0
        %2004 = vmatprep.subr.mxu0 0.0
        %2005 = vmatpush1.msra.mxu0 0.0
        %2006 = vmatprep.subr.mxu0 0.0
        %2007 = vmatpush1.msra.mxu0 0.0
        %2008 = vmatprep.subr.mxu0 0.0
        %2009 = vmatpush1.msra.mxu0 0.0
        %2010 = vmatprep.subr.mxu0 0.0
        %2011 = vmatpush1.msra.mxu0 0.0
        %2012 = vmatprep.subr.mxu0 0.0
        %2013 = vmatpush1.msra.mxu0 0.0
        %2014 = vmatprep.subr.mxu0 0.0
        %2015 = vmatpush1.msra.mxu0 0.0
        %2016 = vmatprep.subr.mxu0 0.0
        %2017 = vmatpush1.msra.mxu0 0.0
        %2018 = vmatprep.subr.mxu0 0.0
        %2019 = vmatpush1.msra.mxu0 0.0
        %2020 = vmatprep.subr.mxu0 0.0
        %2021 = vmatpush1.msra.mxu0 0.0
        %2022 = vmatprep.subr.mxu0 0.0
        %2023 = vmatpush1.msra.mxu0 0.0
        %2024 = vmatprep.subr.mxu0 0.0
        %2025 = vmatpush1.msra.mxu0 0.0
        %2026 = vmatprep.subr.mxu0 0.0
        %2027 = vmatpush1.msra.mxu0 0.0
        %2028 = vmatprep.subr.mxu0 0.0
        %2029 = vmatpush1.msra.mxu0 0.0
        %2030 = vmatprep.subr.mxu0 0.0
        %2031 = vmatpush1.msra.mxu0 0.0
        %2032 = vmatprep.subr.mxu0 0.0
        %2033 = vmatpush1.msra.mxu0 0.0
        %2034 = vmatprep.subr.mxu0 0.0
        %2035 = vmatpush1.msra.mxu0 0.0
        %2036 = vmatprep.subr.mxu0 0.0
        %2037 = vmatpush1.msra.mxu0 0.0
        %2038 = vmatprep.subr.mxu0 0.0
        %2039 = vmatpush1.msra.mxu0 0.0
        %2040 = vmatprep.subr.mxu0 0.0
        %2041 = vmatpush1.msra.mxu0 0.0
        %2042 = vmatprep.subr.mxu0 0.0
        %2043 = vmatpush1.msra.mxu0 0.0
        %2044 = vmatprep.subr.mxu0 0.0
        %2045 = vmatpush1.msra.mxu0 0.0
        %2046 = vmatprep.mubr.f32.mxu0 0.0
        %2047 = vmatmul.mubr.f32.gmra.mrb[0].mxu0 %v1057
        %v2048 = vpop.f32.mrb[0].mxu0
        %v2049 = vadd.f32 %v722, %v2048
        %v2050 = vpop.f32.mrb[0].mxu0
        %v2051 = vadd.f32 %v726, %v2050
        %2052 = vdwg.mxu0
        %2053 = vmatprep.subr.mxu0 %v270
        %2054 = vmatpush1.msra.mxu0 %v269
        %2055 = vmatprep.subr.mxu0 %v358
        %2056 = vmatpush1.msra.mxu0 %v357
        %2057 = vmatprep.subr.mxu0 %v446
        %2058 = vmatpush1.msra.mxu0 %v445
        %2059 = vmatprep.subr.mxu0 %v534
        %2060 = vmatpush1.msra.mxu0 %v533
        %2061 = vmatprep.subr.mxu0 0.0
        %2062 = vmatpush1.msra.mxu0 0.0
        %2063 = vmatprep.subr.mxu0 0.0
        %2064 = vmatpush1.msra.mxu0 0.0
        %2065 = vmatprep.subr.mxu0 0.0
        %2066 = vmatpush1.msra.mxu0 0.0
        %2067 = vmatprep.subr.mxu0 0.0
        %2068 = vmatpush1.msra.mxu0 0.0
        %2069 = vmatprep.subr.mxu0 0.0
        %2070 = vmatpush1.msra.mxu0 0.0
        %2071 = vmatprep.subr.mxu0 0.0
        %2072 = vmatpush1.msra.mxu0 0.0
        %2073 = vmatprep.subr.mxu0 0.0
        %2074 = vmatpush1.msra.mxu0 0.0
        %2075 = vmatprep.subr.mxu0 0.0
        %2076 = vmatpush1.msra.mxu0 0.0
        %2077 = vmatprep.subr.mxu0 0.0
        %2078 = vmatpush1.msra.mxu0 0.0
        %2079 = vmatprep.subr.mxu0 0.0
        %2080 = vmatpush1.msra.mxu0 0.0
        %2081 = vmatprep.subr.mxu0 0.0
        %2082 = vmatpush1.msra.mxu0 0.0
        %2083 = vmatprep.subr.mxu0 0.0
        %2084 = vmatpush1.msra.mxu0 0.0
        %2085 = vmatprep.subr.mxu0 0.0
        %2086 = vmatpush1.msra.mxu0 0.0
        %2087 = vmatprep.subr.mxu0 0.0
        %2088 = vmatpush1.msra.mxu0 0.0
        %2089 = vmatprep.subr.mxu0 0.0
        %2090 = vmatpush1.msra.mxu0 0.0
        %2091 = vmatprep.subr.mxu0 0.0
        %2092 = vmatpush1.msra.mxu0 0.0
        %2093 = vmatprep.subr.mxu0 0.0
        %2094 = vmatpush1.msra.mxu0 0.0
        %2095 = vmatprep.subr.mxu0 0.0
        %2096 = vmatpush1.msra.mxu0 0.0
        %2097 = vmatprep.subr.mxu0 0.0
        %2098 = vmatpush1.msra.mxu0 0.0
        %2099 = vmatprep.subr.mxu0 0.0
        %2100 = vmatpush1.msra.mxu0 0.0
        %2101 = vmatprep.subr.mxu0 0.0
        %2102 = vmatpush1.msra.mxu0 0.0
        %2103 = vmatprep.subr.mxu0 0.0
        %2104 = vmatpush1.msra.mxu0 0.0
        %2105 = vmatprep.subr.mxu0 0.0
        %2106 = vmatpush1.msra.mxu0 0.0
        %2107 = vmatprep.subr.mxu0 0.0
        %2108 = vmatpush1.msra.mxu0 0.0
        %2109 = vmatprep.subr.mxu0 0.0
        %2110 = vmatpush1.msra.mxu0 0.0
        %2111 = vmatprep.subr.mxu0 0.0
        %2112 = vmatpush1.msra.mxu0 0.0
        %2113 = vmatprep.subr.mxu0 0.0
        %2114 = vmatpush1.msra.mxu0 0.0
        %2115 = vmatprep.subr.mxu0 0.0
        %2116 = vmatpush1.msra.mxu0 0.0
        %2117 = vmatprep.mubr.f32.mxu0 0.0
        %2118 = vmatmul.mubr.f32.gmra.mrb[0].mxu0 %v1057
        %v2119 = vpop.f32.mrb[0].mxu0
        %v2120 = vadd.f32 %v730, %v2119
        %v2121 = vpop.f32.mrb[0].mxu0
        %v2122 = vadd.f32 %v734, %v2121
        %2123 = vdwg.mxu0
        %2124 = vmatprep.subr.mxu0 %v272
        %2125 = vmatpush1.msra.mxu0 %v271
        %2126 = vmatprep.subr.mxu0 %v360
        %2127 = vmatpush1.msra.mxu0 %v359
        %2128 = vmatprep.subr.mxu0 %v448
        %2129 = vmatpush1.msra.mxu0 %v447
        %2130 = vmatprep.subr.mxu0 %v536
        %2131 = vmatpush1.msra.mxu0 %v535
        %2132 = vmatprep.subr.mxu0 0.0
        %2133 = vmatpush1.msra.mxu0 0.0
        %2134 = vmatprep.subr.mxu0 0.0
        %2135 = vmatpush1.msra.mxu0 0.0
        %2136 = vmatprep.subr.mxu0 0.0
        %2137 = vmatpush1.msra.mxu0 0.0
        %2138 = vmatprep.subr.mxu0 0.0
        %2139 = vmatpush1.msra.mxu0 0.0
        %2140 = vmatprep.subr.mxu0 0.0
        %2141 = vmatpush1.msra.mxu0 0.0
        %2142 = vmatprep.subr.mxu0 0.0
        %2143 = vmatpush1.msra.mxu0 0.0
        %2144 = vmatprep.subr.mxu0 0.0
        %2145 = vmatpush1.msra.mxu0 0.0
        %2146 = vmatprep.subr.mxu0 0.0
        %2147 = vmatpush1.msra.mxu0 0.0
        %2148 = vmatprep.subr.mxu0 0.0
        %2149 = vmatpush1.msra.mxu0 0.0
        %2150 = vmatprep.subr.mxu0 0.0
        %2151 = vmatpush1.msra.mxu0 0.0
        %2152 = vmatprep.subr.mxu0 0.0
        %2153 = vmatpush1.msra.mxu0 0.0
        %2154 = vmatprep.subr.mxu0 0.0
        %2155 = vmatpush1.msra.mxu0 0.0
        %2156 = vmatprep.subr.mxu0 0.0
        %2157 = vmatpush1.msra.mxu0 0.0
        %2158 = vmatprep.subr.mxu0 0.0
        %2159 = vmatpush1.msra.mxu0 0.0
        %2160 = vmatprep.subr.mxu0 0.0
        %2161 = vmatpush1.msra.mxu0 0.0
        %2162 = vmatprep.subr.mxu0 0.0
        %2163 = vmatpush1.msra.mxu0 0.0
        %2164 = vmatprep.subr.mxu0 0.0
        %2165 = vmatpush1.msra.mxu0 0.0
        %2166 = vmatprep.subr.mxu0 0.0
        %2167 = vmatpush1.msra.mxu0 0.0
        %2168 = vmatprep.subr.mxu0 0.0
        %2169 = vmatpush1.msra.mxu0 0.0
        %2170 = vmatprep.subr.mxu0 0.0
        %2171 = vmatpush1.msra.mxu0 0.0
        %2172 = vmatprep.subr.mxu0 0.0
        %2173 = vmatpush1.msra.mxu0 0.0
        %2174 = vmatprep.subr.mxu0 0.0
        %2175 = vmatpush1.msra.mxu0 0.0
        %2176 = vmatprep.subr.mxu0 0.0
        %2177 = vmatpush1.msra.mxu0 0.0
        %2178 = vmatprep.subr.mxu0 0.0
        %2179 = vmatpush1.msra.mxu0 0.0
        %2180 = vmatprep.subr.mxu0 0.0
        %2181 = vmatpush1.msra.mxu0 0.0
        %2182 = vmatprep.subr.mxu0 0.0
        %2183 = vmatpush1.msra.mxu0 0.0
        %2184 = vmatprep.subr.mxu0 0.0
        %2185 = vmatpush1.msra.mxu0 0.0
        %2186 = vmatprep.subr.mxu0 0.0
        %2187 = vmatpush1.msra.mxu0 0.0
        %2188 = vmatprep.mubr.f32.mxu0 0.0
        %2189 = vmatmul.mubr.f32.gmra.mrb[0].mxu0 %v1057
        %v2190 = vpop.f32.mrb[0].mxu0
        %v2191 = vadd.f32 %v738, %v2190
        %v2192 = vpop.f32.mrb[0].mxu0
        %v2193 = vadd.f32 %v742, %v2192
        %2194 = vdwg.mxu0
        %2195 = vmatprep.subr.mxu0 %v274
        %2196 = vmatpush1.msra.mxu0 %v273
        %2197 = vmatprep.subr.mxu0 %v362
        %2198 = vmatpush1.msra.mxu0 %v361
        %2199 = vmatprep.subr.mxu0 %v450
        %2200 = vmatpush1.msra.mxu0 %v449
        %2201 = vmatprep.subr.mxu0 %v538
        %2202 = vmatpush1.msra.mxu0 %v537
        %2203 = vmatprep.subr.mxu0 0.0
        %2204 = vmatpush1.msra.mxu0 0.0
        %2205 = vmatprep.subr.mxu0 0.0
        %2206 = vmatpush1.msra.mxu0 0.0
        %2207 = vmatprep.subr.mxu0 0.0
        %2208 = vmatpush1.msra.mxu0 0.0
        %2209 = vmatprep.subr.mxu0 0.0
        %2210 = vmatpush1.msra.mxu0 0.0
        %2211 = vmatprep.subr.mxu0 0.0
        %2212 = vmatpush1.msra.mxu0 0.0
        %2213 = vmatprep.subr.mxu0 0.0
        %2214 = vmatpush1.msra.mxu0 0.0
        %2215 = vmatprep.subr.mxu0 0.0
        %2216 = vmatpush1.msra.mxu0 0.0
        %2217 = vmatprep.subr.mxu0 0.0
        %2218 = vmatpush1.msra.mxu0 0.0
        %2219 = vmatprep.subr.mxu0 0.0
        %2220 = vmatpush1.msra.mxu0 0.0
        %2221 = vmatprep.subr.mxu0 0.0
        %2222 = vmatpush1.msra.mxu0 0.0
        %2223 = vmatprep.subr.mxu0 0.0
        %2224 = vmatpush1.msra.mxu0 0.0
        %2225 = vmatprep.subr.mxu0 0.0
        %2226 = vmatpush1.msra.mxu0 0.0
        %2227 = vmatprep.subr.mxu0 0.0
        %2228 = vmatpush1.msra.mxu0 0.0
        %2229 = vmatprep.subr.mxu0 0.0
        %2230 = vmatpush1.msra.mxu0 0.0
        %2231 = vmatprep.subr.mxu0 0.0
        %2232 = vmatpush1.msra.mxu0 0.0
        %2233 = vmatprep.subr.mxu0 0.0
        %2234 = vmatpush1.msra.mxu0 0.0
        %2235 = vmatprep.subr.mxu0 0.0
        %2236 = vmatpush1.msra.mxu0 0.0
        %2237 = vmatprep.subr.mxu0 0.0
        %2238 = vmatpush1.msra.mxu0 0.0
        %2239 = vmatprep.subr.mxu0 0.0
        %2240 = vmatpush1.msra.mxu0 0.0
        %2241 = vmatprep.subr.mxu0 0.0
        %2242 = vmatpush1.msra.mxu0 0.0
        %2243 = vmatprep.subr.mxu0 0.0
        %2244 = vmatpush1.msra.mxu0 0.0
        %2245 = vmatprep.subr.mxu0 0.0
        %2246 = vmatpush1.msra.mxu0 0.0
        %2247 = vmatprep.subr.mxu0 0.0
        %2248 = vmatpush1.msra.mxu0 0.0
        %2249 = vmatprep.subr.mxu0 0.0
        %2250 = vmatpush1.msra.mxu0 0.0
        %2251 = vmatprep.subr.mxu0 0.0
        %2252 = vmatpush1.msra.mxu0 0.0
        %2253 = vmatprep.subr.mxu0 0.0
        %2254 = vmatpush1.msra.mxu0 0.0
        %2255 = vmatprep.subr.mxu0 0.0
        %2256 = vmatpush1.msra.mxu0 0.0
        %2257 = vmatprep.subr.mxu0 0.0
        %2258 = vmatpush1.msra.mxu0 0.0
        %2259 = vmatprep.mubr.f32.mxu0 0.0
        %2260 = vmatmul.mubr.f32.gmra.mrb[0].mxu0 %v1057
        %v2261 = vpop.f32.mrb[0].mxu0
        %v2262 = vadd.f32 %v746, %v2261
        %v2263 = vpop.f32.mrb[0].mxu0
        %v2264 = vadd.f32 %v750, %v2263
        %2265 = vdwg.mxu0
        %2266 = vmatprep.subr.mxu0 %v276
        %2267 = vmatpush1.msra.mxu0 %v275
        %2268 = vmatprep.subr.mxu0 %v364
        %2269 = vmatpush1.msra.mxu0 %v363
        %2270 = vmatprep.subr.mxu0 %v452
        %2271 = vmatpush1.msra.mxu0 %v451
        %2272 = vmatprep.subr.mxu0 %v540
        %2273 = vmatpush1.msra.mxu0 %v539
        %2274 = vmatprep.subr.mxu0 0.0
        %2275 = vmatpush1.msra.mxu0 0.0
        %2276 = vmatprep.subr.mxu0 0.0
        %2277 = vmatpush1.msra.mxu0 0.0
        %2278 = vmatprep.subr.mxu0 0.0
        %2279 = vmatpush1.msra.mxu0 0.0
        %2280 = vmatprep.subr.mxu0 0.0
        %2281 = vmatpush1.msra.mxu0 0.0
        %2282 = vmatprep.subr.mxu0 0.0
        %2283 = vmatpush1.msra.mxu0 0.0
        %2284 = vmatprep.subr.mxu0 0.0
        %2285 = vmatpush1.msra.mxu0 0.0
        %2286 = vmatprep.subr.mxu0 0.0
        %2287 = vmatpush1.msra.mxu0 0.0
        %2288 = vmatprep.subr.mxu0 0.0
        %2289 = vmatpush1.msra.mxu0 0.0
        %2290 = vmatprep.subr.mxu0 0.0
        %2291 = vmatpush1.msra.mxu0 0.0
        %2292 = vmatprep.subr.mxu0 0.0
        %2293 = vmatpush1.msra.mxu0 0.0
        %2294 = vmatprep.subr.mxu0 0.0
        %2295 = vmatpush1.msra.mxu0 0.0
        %2296 = vmatprep.subr.mxu0 0.0
        %2297 = vmatpush1.msra.mxu0 0.0
        %2298 = vmatprep.subr.mxu0 0.0
        %2299 = vmatpush1.msra.mxu0 0.0
        %2300 = vmatprep.subr.mxu0 0.0
        %2301 = vmatpush1.msra.mxu0 0.0
        %2302 = vmatprep.subr.mxu0 0.0
        %2303 = vmatpush1.msra.mxu0 0.0
        %2304 = vmatprep.subr.mxu0 0.0
        %2305 = vmatpush1.msra.mxu0 0.0
        %2306 = vmatprep.subr.mxu0 0.0
        %2307 = vmatpush1.msra.mxu0 0.0
        %2308 = vmatprep.subr.mxu0 0.0
        %2309 = vmatpush1.msra.mxu0 0.0
        %2310 = vmatprep.subr.mxu0 0.0
        %2311 = vmatpush1.msra.mxu0 0.0
        %2312 = vmatprep.subr.mxu0 0.0
        %2313 = vmatpush1.msra.mxu0 0.0
        %2314 = vmatprep.subr.mxu0 0.0
        %2315 = vmatpush1.msra.mxu0 0.0
        %2316 = vmatprep.subr.mxu0 0.0
        %2317 = vmatpush1.msra.mxu0 0.0
        %2318 = vmatprep.subr.mxu0 0.0
        %2319 = vmatpush1.msra.mxu0 0.0
        %2320 = vmatprep.subr.mxu0 0.0
        %2321 = vmatpush1.msra.mxu0 0.0
        %2322 = vmatprep.subr.mxu0 0.0
        %2323 = vmatpush1.msra.mxu0 0.0
        %2324 = vmatprep.subr.mxu0 0.0
        %2325 = vmatpush1.msra.mxu0 0.0
        %2326 = vmatprep.subr.mxu0 0.0
        %2327 = vmatpush1.msra.mxu0 0.0
        %2328 = vmatprep.subr.mxu0 0.0
        %2329 = vmatpush1.msra.mxu0 0.0
        %2330 = vmatprep.mubr.f32.mxu0 0.0
        %2331 = vmatmul.mubr.f32.gmra.mrb[0].mxu0 %v1057
        %v2332 = vpop.f32.mrb[0].mxu0
        %v2333 = vadd.f32 %v754, %v2332
        %v2334 = vpop.f32.mrb[0].mxu0
        %v2335 = vadd.f32 %v758, %v2334
        %2336 = vdwg.mxu0
        %2337 = vmatprep.subr.mxu0 %v278
        %2338 = vmatpush1.msra.mxu0 %v277
        %2339 = vmatprep.subr.mxu0 %v366
        %2340 = vmatpush1.msra.mxu0 %v365
        %2341 = vmatprep.subr.mxu0 %v454
        %2342 = vmatpush1.msra.mxu0 %v453
        %2343 = vmatprep.subr.mxu0 %v542
        %2344 = vmatpush1.msra.mxu0 %v541
        %2345 = vmatprep.subr.mxu0 0.0
        %2346 = vmatpush1.msra.mxu0 0.0
        %2347 = vmatprep.subr.mxu0 0.0
        %2348 = vmatpush1.msra.mxu0 0.0
        %2349 = vmatprep.subr.mxu0 0.0
        %2350 = vmatpush1.msra.mxu0 0.0
        %2351 = vmatprep.subr.mxu0 0.0
        %2352 = vmatpush1.msra.mxu0 0.0
        %2353 = vmatprep.subr.mxu0 0.0
        %2354 = vmatpush1.msra.mxu0 0.0
        %2355 = vmatprep.subr.mxu0 0.0
        %2356 = vmatpush1.msra.mxu0 0.0
        %2357 = vmatprep.subr.mxu0 0.0
        %2358 = vmatpush1.msra.mxu0 0.0
        %2359 = vmatprep.subr.mxu0 0.0
        %2360 = vmatpush1.msra.mxu0 0.0
        %2361 = vmatprep.subr.mxu0 0.0
        %2362 = vmatpush1.msra.mxu0 0.0
        %2363 = vmatprep.subr.mxu0 0.0
        %2364 = vmatpush1.msra.mxu0 0.0
        %2365 = vmatprep.subr.mxu0 0.0
        %2366 = vmatpush1.msra.mxu0 0.0
        %2367 = vmatprep.subr.mxu0 0.0
        %2368 = vmatpush1.msra.mxu0 0.0
        %2369 = vmatprep.subr.mxu0 0.0
        %2370 = vmatpush1.msra.mxu0 0.0
        %2371 = vmatprep.subr.mxu0 0.0
        %2372 = vmatpush1.msra.mxu0 0.0
        %2373 = vmatprep.subr.mxu0 0.0
        %2374 = vmatpush1.msra.mxu0 0.0
        %2375 = vmatprep.subr.mxu0 0.0
        %2376 = vmatpush1.msra.mxu0 0.0
        %2377 = vmatprep.subr.mxu0 0.0
        %2378 = vmatpush1.msra.mxu0 0.0
        %2379 = vmatprep.subr.mxu0 0.0
        %2380 = vmatpush1.msra.mxu0 0.0
        %2381 = vmatprep.subr.mxu0 0.0
        %2382 = vmatpush1.msra.mxu0 0.0
        %2383 = vmatprep.subr.mxu0 0.0
        %2384 = vmatpush1.msra.mxu0 0.0
        %2385 = vmatprep.subr.mxu0 0.0
        %2386 = vmatpush1.msra.mxu0 0.0
        %2387 = vmatprep.subr.mxu0 0.0
        %2388 = vmatpush1.msra.mxu0 0.0
        %2389 = vmatprep.subr.mxu0 0.0
        %2390 = vmatpush1.msra.mxu0 0.0
        %2391 = vmatprep.subr.mxu0 0.0
        %2392 = vmatpush1.msra.mxu0 0.0
        %2393 = vmatprep.subr.mxu0 0.0
        %2394 = vmatpush1.msra.mxu0 0.0
        %2395 = vmatprep.subr.mxu0 0.0
        %2396 = vmatpush1.msra.mxu0 0.0
        %2397 = vmatprep.subr.mxu0 0.0
        %2398 = vmatpush1.msra.mxu0 0.0
        %2399 = vmatprep.subr.mxu0 0.0
        %2400 = vmatpush1.msra.mxu0 0.0
        %2401 = vmatprep.mubr.f32.mxu0 0.0
        %2402 = vmatmul.mubr.f32.gmra.mrb[0].mxu0 %v1057
        %v2403 = vpop.f32.mrb[0].mxu0
        %v2404 = vadd.f32 %v762, %v2403
        %v2405 = vpop.f32.mrb[0].mxu0
        %v2406 = vadd.f32 %v766, %v2405
        %2407 = vdwg.mxu0
        %2408 = vmatprep.subr.mxu0 %v280
        %2409 = vmatpush1.msra.mxu0 %v279
        %2410 = vmatprep.subr.mxu0 %v368
        %2411 = vmatpush1.msra.mxu0 %v367
        %2412 = vmatprep.subr.mxu0 %v456
        %2413 = vmatpush1.msra.mxu0 %v455
        %2414 = vmatprep.subr.mxu0 %v544
        %2415 = vmatpush1.msra.mxu0 %v543
        %2416 = vmatprep.subr.mxu0 0.0
        %2417 = vmatpush1.msra.mxu0 0.0
        %2418 = vmatprep.subr.mxu0 0.0
        %2419 = vmatpush1.msra.mxu0 0.0
        %2420 = vmatprep.subr.mxu0 0.0
        %2421 = vmatpush1.msra.mxu0 0.0
        %2422 = vmatprep.subr.mxu0 0.0
        %2423 = vmatpush1.msra.mxu0 0.0
        %2424 = vmatprep.subr.mxu0 0.0
        %2425 = vmatpush1.msra.mxu0 0.0
        %2426 = vmatprep.subr.mxu0 0.0
        %2427 = vmatpush1.msra.mxu0 0.0
        %2428 = vmatprep.subr.mxu0 0.0
        %2429 = vmatpush1.msra.mxu0 0.0
        %2430 = vmatprep.subr.mxu0 0.0
        %2431 = vmatpush1.msra.mxu0 0.0
        %2432 = vmatprep.subr.mxu0 0.0
        %2433 = vmatpush1.msra.mxu0 0.0
        %2434 = vmatprep.subr.mxu0 0.0
        %2435 = vmatpush1.msra.mxu0 0.0
        %2436 = vmatprep.subr.mxu0 0.0
        %2437 = vmatpush1.msra.mxu0 0.0
        %2438 = vmatprep.subr.mxu0 0.0
        %2439 = vmatpush1.msra.mxu0 0.0
        %2440 = vmatprep.subr.mxu0 0.0
        %2441 = vmatpush1.msra.mxu0 0.0
        %2442 = vmatprep.subr.mxu0 0.0
        %2443 = vmatpush1.msra.mxu0 0.0
        %2444 = vmatprep.subr.mxu0 0.0
        %2445 = vmatpush1.msra.mxu0 0.0
        %2446 = vmatprep.subr.mxu0 0.0
        %2447 = vmatpush1.msra.mxu0 0.0
        %2448 = vmatprep.subr.mxu0 0.0
        %2449 = vmatpush1.msra.mxu0 0.0
        %2450 = vmatprep.subr.mxu0 0.0
        %2451 = vmatpush1.msra.mxu0 0.0
        %2452 = vmatprep.subr.mxu0 0.0
        %2453 = vmatpush1.msra.mxu0 0.0
        %2454 = vmatprep.subr.mxu0 0.0
        %2455 = vmatpush1.msra.mxu0 0.0
        %2456 = vmatprep.subr.mxu0 0.0
        %2457 = vmatpush1.msra.mxu0 0.0
        %2458 = vmatprep.subr.mxu0 0.0
        %2459 = vmatpush1.msra.mxu0 0.0
        %2460 = vmatprep.subr.mxu0 0.0
        %2461 = vmatpush1.msra.mxu0 0.0
        %2462 = vmatprep.subr.mxu0 0.0
        %2463 = vmatpush1.msra.mxu0 0.0
        %2464 = vmatprep.subr.mxu0 0.0
        %2465 = vmatpush1.msra.mxu0 0.0
        %2466 = vmatprep.subr.mxu0 0.0
        %2467 = vmatpush1.msra.mxu0 0.0
        %2468 = vmatprep.subr.mxu0 0.0
        %2469 = vmatpush1.msra.mxu0 0.0
        %2470 = vmatprep.subr.mxu0 0.0
        %2471 = vmatpush1.msra.mxu0 0.0
        %2472 = vmatprep.mubr.f32.mxu0 0.0
        %2473 = vmatmul.mubr.f32.gmra.mrb[0].mxu0 %v1057
        %v2474 = vpop.f32.mrb[0].mxu0
        %v2475 = vadd.f32 %v770, %v2474
        %v2476 = vpop.f32.mrb[0].mxu0
        %v2477 = vadd.f32 %v774, %v2476
        %2478 = vdwg.mxu0
        %2479 = vmatprep.subr.mxu0 %v282
        %2480 = vmatpush1.msra.mxu0 %v281
        %2481 = vmatprep.subr.mxu0 %v370
        %2482 = vmatpush1.msra.mxu0 %v369
        %2483 = vmatprep.subr.mxu0 %v458
        %2484 = vmatpush1.msra.mxu0 %v457
        %2485 = vmatprep.subr.mxu0 %v546
        %2486 = vmatpush1.msra.mxu0 %v545
        %2487 = vmatprep.subr.mxu0 0.0
        %2488 = vmatpush1.msra.mxu0 0.0
        %2489 = vmatprep.subr.mxu0 0.0
        %2490 = vmatpush1.msra.mxu0 0.0
        %2491 = vmatprep.subr.mxu0 0.0
        %2492 = vmatpush1.msra.mxu0 0.0
        %2493 = vmatprep.subr.mxu0 0.0
        %2494 = vmatpush1.msra.mxu0 0.0
        %2495 = vmatprep.subr.mxu0 0.0
        %2496 = vmatpush1.msra.mxu0 0.0
        %2497 = vmatprep.subr.mxu0 0.0
        %2498 = vmatpush1.msra.mxu0 0.0
        %2499 = vmatprep.subr.mxu0 0.0
        %2500 = vmatpush1.msra.mxu0 0.0
        %2501 = vmatprep.subr.mxu0 0.0
        %2502 = vmatpush1.msra.mxu0 0.0
        %2503 = vmatprep.subr.mxu0 0.0
        %2504 = vmatpush1.msra.mxu0 0.0
        %2505 = vmatprep.subr.mxu0 0.0
        %2506 = vmatpush1.msra.mxu0 0.0
        %2507 = vmatprep.subr.mxu0 0.0
        %2508 = vmatpush1.msra.mxu0 0.0
        %2509 = vmatprep.subr.mxu0 0.0
        %2510 = vmatpush1.msra.mxu0 0.0
        %2511 = vmatprep.subr.mxu0 0.0
        %2512 = vmatpush1.msra.mxu0 0.0
        %2513 = vmatprep.subr.mxu0 0.0
        %2514 = vmatpush1.msra.mxu0 0.0
        %2515 = vmatprep.subr.mxu0 0.0
        %2516 = vmatpush1.msra.mxu0 0.0
        %2517 = vmatprep.subr.mxu0 0.0
        %2518 = vmatpush1.msra.mxu0 0.0
        %2519 = vmatprep.subr.mxu0 0.0
        %2520 = vmatpush1.msra.mxu0 0.0
        %2521 = vmatprep.subr.mxu0 0.0
        %2522 = vmatpush1.msra.mxu0 0.0
        %2523 = vmatprep.subr.mxu0 0.0
        %2524 = vmatpush1.msra.mxu0 0.0
        %2525 = vmatprep.subr.mxu0 0.0
        %2526 = vmatpush1.msra.mxu0 0.0
        %2527 = vmatprep.subr.mxu0 0.0
        %2528 = vmatpush1.msra.mxu0 0.0
        %2529 = vmatprep.subr.mxu0 0.0
        %2530 = vmatpush1.msra.mxu0 0.0
        %2531 = vmatprep.subr.mxu0 0.0
        %2532 = vmatpush1.msra.mxu0 0.0
        %2533 = vmatprep.subr.mxu0 0.0
        %2534 = vmatpush1.msra.mxu0 0.0
        %2535 = vmatprep.subr.mxu0 0.0
        %2536 = vmatpush1.msra.mxu0 0.0
        %2537 = vmatprep.subr.mxu0 0.0
        %2538 = vmatpush1.msra.mxu0 0.0
        %2539 = vmatprep.subr.mxu0 0.0
        %2540 = vmatpush1.msra.mxu0 0.0
        %2541 = vmatprep.subr.mxu0 0.0
        %2542 = vmatpush1.msra.mxu0 0.0
        %2543 = vmatprep.mubr.f32.mxu0 0.0
        %2544 = vmatmul.mubr.f32.gmra.mrb[0].mxu0 %v1057
        %v2545 = vpop.f32.mrb[0].mxu0
        %v2546 = vadd.f32 %v778, %v2545
        %v2547 = vpop.f32.mrb[0].mxu0
        %v2548 = vadd.f32 %v782, %v2547
        %2549 = vdwg.mxu0
        %2550 = vmatprep.subr.mxu0 %v284
        %2551 = vmatpush1.msra.mxu0 %v283
        %2552 = vmatprep.subr.mxu0 %v372
        %2553 = vmatpush1.msra.mxu0 %v371
        %2554 = vmatprep.subr.mxu0 %v460
        %2555 = vmatpush1.msra.mxu0 %v459
        %2556 = vmatprep.subr.mxu0 %v548
        %2557 = vmatpush1.msra.mxu0 %v547
        %2558 = vmatprep.subr.mxu0 0.0
        %2559 = vmatpush1.msra.mxu0 0.0
        %2560 = vmatprep.subr.mxu0 0.0
        %2561 = vmatpush1.msra.mxu0 0.0
        %2562 = vmatprep.subr.mxu0 0.0
        %2563 = vmatpush1.msra.mxu0 0.0
        %2564 = vmatprep.subr.mxu0 0.0
        %2565 = vmatpush1.msra.mxu0 0.0
        %2566 = vmatprep.subr.mxu0 0.0
        %2567 = vmatpush1.msra.mxu0 0.0
        %2568 = vmatprep.subr.mxu0 0.0
        %2569 = vmatpush1.msra.mxu0 0.0
        %2570 = vmatprep.subr.mxu0 0.0
        %2571 = vmatpush1.msra.mxu0 0.0
        %2572 = vmatprep.subr.mxu0 0.0
        %2573 = vmatpush1.msra.mxu0 0.0
        %2574 = vmatprep.subr.mxu0 0.0
        %2575 = vmatpush1.msra.mxu0 0.0
        %2576 = vmatprep.subr.mxu0 0.0
        %2577 = vmatpush1.msra.mxu0 0.0
        %2578 = vmatprep.subr.mxu0 0.0
        %2579 = vmatpush1.msra.mxu0 0.0
        %2580 = vmatprep.subr.mxu0 0.0
        %2581 = vmatpush1.msra.mxu0 0.0
        %2582 = vmatprep.subr.mxu0 0.0
        %2583 = vmatpush1.msra.mxu0 0.0
        %2584 = vmatprep.subr.mxu0 0.0
        %2585 = vmatpush1.msra.mxu0 0.0
        %2586 = vmatprep.subr.mxu0 0.0
        %2587 = vmatpush1.msra.mxu0 0.0
        %2588 = vmatprep.subr.mxu0 0.0
        %2589 = vmatpush1.msra.mxu0 0.0
        %2590 = vmatprep.subr.mxu0 0.0
        %2591 = vmatpush1.msra.mxu0 0.0
        %2592 = vmatprep.subr.mxu0 0.0
        %2593 = vmatpush1.msra.mxu0 0.0
        %2594 = vmatprep.subr.mxu0 0.0
        %2595 = vmatpush1.msra.mxu0 0.0
        %2596 = vmatprep.subr.mxu0 0.0
        %2597 = vmatpush1.msra.mxu0 0.0
        %2598 = vmatprep.subr.mxu0 0.0
        %2599 = vmatpush1.msra.mxu0 0.0
        %2600 = vmatprep.subr.mxu0 0.0
        %2601 = vmatpush1.msra.mxu0 0.0
        %2602 = vmatprep.subr.mxu0 0.0
        %2603 = vmatpush1.msra.mxu0 0.0
        %2604 = vmatprep.subr.mxu0 0.0
        %2605 = vmatpush1.msra.mxu0 0.0
        %2606 = vmatprep.subr.mxu0 0.0
        %2607 = vmatpush1.msra.mxu0 0.0
        %2608 = vmatprep.subr.mxu0 0.0
        %2609 = vmatpush1.msra.mxu0 0.0
        %2610 = vmatprep.subr.mxu0 0.0
        %2611 = vmatpush1.msra.mxu0 0.0
        %2612 = vmatprep.subr.mxu0 0.0
        %2613 = vmatpush1.msra.mxu0 0.0
        %2614 = vmatprep.mubr.f32.mxu0 0.0
        %2615 = vmatmul.mubr.f32.gmra.mrb[0].mxu0 %v1057
        %v2616 = vpop.f32.mrb[0].mxu0
        %v2617 = vadd.f32 %v786, %v2616
        %v2618 = vpop.f32.mrb[0].mxu0
        %v2619 = vadd.f32 %v790, %v2618
        %2620 = vdwg.mxu0
        %2621 = vmatprep.subr.mxu0 %v286
        %2622 = vmatpush1.msra.mxu0 %v285
        %2623 = vmatprep.subr.mxu0 %v374
        %2624 = vmatpush1.msra.mxu0 %v373
        %2625 = vmatprep.subr.mxu0 %v462
        %2626 = vmatpush1.msra.mxu0 %v461
        %2627 = vmatprep.subr.mxu0 %v550
        %2628 = vmatpush1.msra.mxu0 %v549
        %2629 = vmatprep.subr.mxu0 0.0
        %2630 = vmatpush1.msra.mxu0 0.0
        %2631 = vmatprep.subr.mxu0 0.0
        %2632 = vmatpush1.msra.mxu0 0.0
        %2633 = vmatprep.subr.mxu0 0.0
        %2634 = vmatpush1.msra.mxu0 0.0
        %2635 = vmatprep.subr.mxu0 0.0
        %2636 = vmatpush1.msra.mxu0 0.0
        %2637 = vmatprep.subr.mxu0 0.0
        %2638 = vmatpush1.msra.mxu0 0.0
        %2639 = vmatprep.subr.mxu0 0.0
        %2640 = vmatpush1.msra.mxu0 0.0
        %2641 = vmatprep.subr.mxu0 0.0
        %2642 = vmatpush1.msra.mxu0 0.0
        %2643 = vmatprep.subr.mxu0 0.0
        %2644 = vmatpush1.msra.mxu0 0.0
        %2645 = vmatprep.subr.mxu0 0.0
        %2646 = vmatpush1.msra.mxu0 0.0
        %2647 = vmatprep.subr.mxu0 0.0
        %2648 = vmatpush1.msra.mxu0 0.0
        %2649 = vmatprep.subr.mxu0 0.0
        %2650 = vmatpush1.msra.mxu0 0.0
        %2651 = vmatprep.subr.mxu0 0.0
        %2652 = vmatpush1.msra.mxu0 0.0
        %2653 = vmatprep.subr.mxu0 0.0
        %2654 = vmatpush1.msra.mxu0 0.0
        %2655 = vmatprep.subr.mxu0 0.0
        %2656 = vmatpush1.msra.mxu0 0.0
        %2657 = vmatprep.subr.mxu0 0.0
        %2658 = vmatpush1.msra.mxu0 0.0
        %2659 = vmatprep.subr.mxu0 0.0
        %2660 = vmatpush1.msra.mxu0 0.0
        %2661 = vmatprep.subr.mxu0 0.0
        %2662 = vmatpush1.msra.mxu0 0.0
        %2663 = vmatprep.subr.mxu0 0.0
        %2664 = vmatpush1.msra.mxu0 0.0
        %2665 = vmatprep.subr.mxu0 0.0
        %2666 = vmatpush1.msra.mxu0 0.0
        %2667 = vmatprep.subr.mxu0 0.0
        %2668 = vmatpush1.msra.mxu0 0.0
        %2669 = vmatprep.subr.mxu0 0.0
        %2670 = vmatpush1.msra.mxu0 0.0
        %2671 = vmatprep.subr.mxu0 0.0
        %2672 = vmatpush1.msra.mxu0 0.0
        %2673 = vmatprep.subr.mxu0 0.0
        %2674 = vmatpush1.msra.mxu0 0.0
        %2675 = vmatprep.subr.mxu0 0.0
        %2676 = vmatpush1.msra.mxu0 0.0
        %2677 = vmatprep.subr.mxu0 0.0
        %2678 = vmatpush1.msra.mxu0 0.0
        %2679 = vmatprep.subr.mxu0 0.0
        %2680 = vmatpush1.msra.mxu0 0.0
        %2681 = vmatprep.subr.mxu0 0.0
        %2682 = vmatpush1.msra.mxu0 0.0
        %2683 = vmatprep.subr.mxu0 0.0
        %2684 = vmatpush1.msra.mxu0 0.0
        %2685 = vmatprep.mubr.f32.mxu0 0.0
        %2686 = vmatmul.mubr.f32.gmra.mrb[0].mxu0 %v1057
        %v2687 = vpop.f32.mrb[0].mxu0
        %v2688 = vadd.f32 %v794, %v2687
        %v2689 = vpop.f32.mrb[0].mxu0
        %v2690 = vadd.f32 %v798, %v2689
        %2691 = vdwg.mxu0
        %2692 = vmatprep.subr.mxu0 %v288
        %2693 = vmatpush1.msra.mxu0 %v287
        %2694 = vmatprep.subr.mxu0 %v376
        %2695 = vmatpush1.msra.mxu0 %v375
        %2696 = vmatprep.subr.mxu0 %v464
        %2697 = vmatpush1.msra.mxu0 %v463
        %2698 = vmatprep.subr.mxu0 %v552
        %2699 = vmatpush1.msra.mxu0 %v551
        %2700 = vmatprep.subr.mxu0 0.0
        %2701 = vmatpush1.msra.mxu0 0.0
        %2702 = vmatprep.subr.mxu0 0.0
        %2703 = vmatpush1.msra.mxu0 0.0
        %2704 = vmatprep.subr.mxu0 0.0
        %2705 = vmatpush1.msra.mxu0 0.0
        %2706 = vmatprep.subr.mxu0 0.0
        %2707 = vmatpush1.msra.mxu0 0.0
        %2708 = vmatprep.subr.mxu0 0.0
        %2709 = vmatpush1.msra.mxu0 0.0
        %2710 = vmatprep.subr.mxu0 0.0
        %2711 = vmatpush1.msra.mxu0 0.0
        %2712 = vmatprep.subr.mxu0 0.0
        %2713 = vmatpush1.msra.mxu0 0.0
        %2714 = vmatprep.subr.mxu0 0.0
        %2715 = vmatpush1.msra.mxu0 0.0
        %2716 = vmatprep.subr.mxu0 0.0
        %2717 = vmatpush1.msra.mxu0 0.0
        %2718 = vmatprep.subr.mxu0 0.0
        %2719 = vmatpush1.msra.mxu0 0.0
        %2720 = vmatprep.subr.mxu0 0.0
        %2721 = vmatpush1.msra.mxu0 0.0
        %2722 = vmatprep.subr.mxu0 0.0
        %2723 = vmatpush1.msra.mxu0 0.0
        %2724 = vmatprep.subr.mxu0 0.0
        %2725 = vmatpush1.msra.mxu0 0.0
        %2726 = vmatprep.subr.mxu0 0.0
        %2727 = vmatpush1.msra.mxu0 0.0
        %2728 = vmatprep.subr.mxu0 0.0
        %2729 = vmatpush1.msra.mxu0 0.0
        %2730 = vmatprep.subr.mxu0 0.0
        %2731 = vmatpush1.msra.mxu0 0.0
        %2732 = vmatprep.subr.mxu0 0.0
        %2733 = vmatpush1.msra.mxu0 0.0
        %2734 = vmatprep.subr.mxu0 0.0
        %2735 = vmatpush1.msra.mxu0 0.0
        %2736 = vmatprep.subr.mxu0 0.0
        %2737 = vmatpush1.msra.mxu0 0.0
        %2738 = vmatprep.subr.mxu0 0.0
        %2739 = vmatpush1.msra.mxu0 0.0
        %2740 = vmatprep.subr.mxu0 0.0
        %2741 = vmatpush1.msra.mxu0 0.0
        %2742 = vmatprep.subr.mxu0 0.0
        %2743 = vmatpush1.msra.mxu0 0.0
        %2744 = vmatprep.subr.mxu0 0.0
        %2745 = vmatpush1.msra.mxu0 0.0
        %2746 = vmatprep.subr.mxu0 0.0
        %2747 = vmatpush1.msra.mxu0 0.0
        %2748 = vmatprep.subr.mxu0 0.0
        %2749 = vmatpush1.msra.mxu0 0.0
        %2750 = vmatprep.subr.mxu0 0.0
        %2751 = vmatpush1.msra.mxu0 0.0
        %2752 = vmatprep.subr.mxu0 0.0
        %2753 = vmatpush1.msra.mxu0 0.0
        %2754 = vmatprep.subr.mxu0 0.0
        %2755 = vmatpush1.msra.mxu0 0.0
        %2756 = vmatprep.mubr.f32.mxu0 0.0
        %2757 = vmatmul.mubr.f32.gmra.mrb[0].mxu0 %v1057
        %v2758 = vpop.f32.mrb[0].mxu0
        %v2759 = vadd.f32 %v802, %v2758
        %v2760 = vpop.f32.mrb[0].mxu0
        %v2761 = vadd.f32 %v806, %v2760
        %2762 = vdwg.mxu0
        %2763 = vmatprep.subr.mxu0 %v290
        %2764 = vmatpush1.msra.mxu0 %v289
        %2765 = vmatprep.subr.mxu0 %v378
        %2766 = vmatpush1.msra.mxu0 %v377
        %2767 = vmatprep.subr.mxu0 %v466
        %2768 = vmatpush1.msra.mxu0 %v465
        %2769 = vmatprep.subr.mxu0 %v554
        %2770 = vmatpush1.msra.mxu0 %v553
        %2771 = vmatprep.subr.mxu0 0.0
        %2772 = vmatpush1.msra.mxu0 0.0
        %2773 = vmatprep.subr.mxu0 0.0
        %2774 = vmatpush1.msra.mxu0 0.0
        %2775 = vmatprep.subr.mxu0 0.0
        %2776 = vmatpush1.msra.mxu0 0.0
        %2777 = vmatprep.subr.mxu0 0.0
        %2778 = vmatpush1.msra.mxu0 0.0
        %2779 = vmatprep.subr.mxu0 0.0
        %2780 = vmatpush1.msra.mxu0 0.0
        %2781 = vmatprep.subr.mxu0 0.0
        %2782 = vmatpush1.msra.mxu0 0.0
        %2783 = vmatprep.subr.mxu0 0.0
        %2784 = vmatpush1.msra.mxu0 0.0
        %2785 = vmatprep.subr.mxu0 0.0
        %2786 = vmatpush1.msra.mxu0 0.0
        %2787 = vmatprep.subr.mxu0 0.0
        %2788 = vmatpush1.msra.mxu0 0.0
        %2789 = vmatprep.subr.mxu0 0.0
        %2790 = vmatpush1.msra.mxu0 0.0
        %2791 = vmatprep.subr.mxu0 0.0
        %2792 = vmatpush1.msra.mxu0 0.0
        %2793 = vmatprep.subr.mxu0 0.0
        %2794 = vmatpush1.msra.mxu0 0.0
        %2795 = vmatprep.subr.mxu0 0.0
        %2796 = vmatpush1.msra.mxu0 0.0
        %2797 = vmatprep.subr.mxu0 0.0
        %2798 = vmatpush1.msra.mxu0 0.0
        %2799 = vmatprep.subr.mxu0 0.0
        %2800 = vmatpush1.msra.mxu0 0.0
        %2801 = vmatprep.subr.mxu0 0.0
        %2802 = vmatpush1.msra.mxu0 0.0
        %2803 = vmatprep.subr.mxu0 0.0
        %2804 = vmatpush1.msra.mxu0 0.0
        %2805 = vmatprep.subr.mxu0 0.0
        %2806 = vmatpush1.msra.mxu0 0.0
        %2807 = vmatprep.subr.mxu0 0.0
        %2808 = vmatpush1.msra.mxu0 0.0
        %2809 = vmatprep.subr.mxu0 0.0
        %2810 = vmatpush1.msra.mxu0 0.0
        %2811 = vmatprep.subr.mxu0 0.0
        %2812 = vmatpush1.msra.mxu0 0.0
        %2813 = vmatprep.subr.mxu0 0.0
        %2814 = vmatpush1.msra.mxu0 0.0
        %2815 = vmatprep.subr.mxu0 0.0
        %2816 = vmatpush1.msra.mxu0 0.0
        %2817 = vmatprep.subr.mxu0 0.0
        %2818 = vmatpush1.msra.mxu0 0.0
        %2819 = vmatprep.subr.mxu0 0.0
        %2820 = vmatpush1.msra.mxu0 0.0
        %2821 = vmatprep.subr.mxu0 0.0
        %2822 = vmatpush1.msra.mxu0 0.0
        %2823 = vmatprep.subr.mxu0 0.0
        %2824 = vmatpush1.msra.mxu0 0.0
        %2825 = vmatprep.subr.mxu0 0.0
        %2826 = vmatpush1.msra.mxu0 0.0
        %2827 = vmatprep.mubr.f32.mxu0 0.0
        %2828 = vmatmul.mubr.f32.gmra.mrb[0].mxu0 %v1057
        %v2829 = vpop.f32.mrb[0].mxu0
        %v2830 = vadd.f32 %v810, %v2829
        %v2831 = vpop.f32.mrb[0].mxu0
        %v2832 = vadd.f32 %v814, %v2831
        %2833 = vdwg.mxu0
        %2834 = vmatprep.subr.mxu0 %v292
        %2835 = vmatpush1.msra.mxu0 %v291
        %2836 = vmatprep.subr.mxu0 %v380
        %2837 = vmatpush1.msra.mxu0 %v379
        %2838 = vmatprep.subr.mxu0 %v468
        %2839 = vmatpush1.msra.mxu0 %v467
        %2840 = vmatprep.subr.mxu0 %v556
        %2841 = vmatpush1.msra.mxu0 %v555
        %2842 = vmatprep.subr.mxu0 0.0
        %2843 = vmatpush1.msra.mxu0 0.0
        %2844 = vmatprep.subr.mxu0 0.0
        %2845 = vmatpush1.msra.mxu0 0.0
        %2846 = vmatprep.subr.mxu0 0.0
        %2847 = vmatpush1.msra.mxu0 0.0
        %2848 = vmatprep.subr.mxu0 0.0
        %2849 = vmatpush1.msra.mxu0 0.0
        %2850 = vmatprep.subr.mxu0 0.0
        %2851 = vmatpush1.msra.mxu0 0.0
        %2852 = vmatprep.subr.mxu0 0.0
        %2853 = vmatpush1.msra.mxu0 0.0
        %2854 = vmatprep.subr.mxu0 0.0
        %2855 = vmatpush1.msra.mxu0 0.0
        %2856 = vmatprep.subr.mxu0 0.0
        %2857 = vmatpush1.msra.mxu0 0.0
        %2858 = vmatprep.subr.mxu0 0.0
        %2859 = vmatpush1.msra.mxu0 0.0
        %2860 = vmatprep.subr.mxu0 0.0
        %2861 = vmatpush1.msra.mxu0 0.0
        %2862 = vmatprep.subr.mxu0 0.0
        %2863 = vmatpush1.msra.mxu0 0.0
        %2864 = vmatprep.subr.mxu0 0.0
        %2865 = vmatpush1.msra.mxu0 0.0
        %2866 = vmatprep.subr.mxu0 0.0
        %2867 = vmatpush1.msra.mxu0 0.0
        %2868 = vmatprep.subr.mxu0 0.0
        %2869 = vmatpush1.msra.mxu0 0.0
        %2870 = vmatprep.subr.mxu0 0.0
        %2871 = vmatpush1.msra.mxu0 0.0
        %2872 = vmatprep.subr.mxu0 0.0
        %2873 = vmatpush1.msra.mxu0 0.0
        %2874 = vmatprep.subr.mxu0 0.0
        %2875 = vmatpush1.msra.mxu0 0.0
        %2876 = vmatprep.subr.mxu0 0.0
        %2877 = vmatpush1.msra.mxu0 0.0
        %2878 = vmatprep.subr.mxu0 0.0
        %2879 = vmatpush1.msra.mxu0 0.0
        %2880 = vmatprep.subr.mxu0 0.0
        %2881 = vmatpush1.msra.mxu0 0.0
        %2882 = vmatprep.subr.mxu0 0.0
        %2883 = vmatpush1.msra.mxu0 0.0
        %2884 = vmatprep.subr.mxu0 0.0
        %2885 = vmatpush1.msra.mxu0 0.0
        %2886 = vmatprep.subr.mxu0 0.0
        %2887 = vmatpush1.msra.mxu0 0.0
        %2888 = vmatprep.subr.mxu0 0.0
        %2889 = vmatpush1.msra.mxu0 0.0
        %2890 = vmatprep.subr.mxu0 0.0
        %2891 = vmatpush1.msra.mxu0 0.0
        %2892 = vmatprep.subr.mxu0 0.0
        %2893 = vmatpush1.msra.mxu0 0.0
        %2894 = vmatprep.subr.mxu0 0.0
        %2895 = vmatpush1.msra.mxu0 0.0
        %2896 = vmatprep.subr.mxu0 0.0
        %2897 = vmatpush1.msra.mxu0 0.0
        %2898 = vmatprep.mubr.f32.mxu0 0.0
        %2899 = vmatmul.mubr.f32.gmra.mrb[0].mxu0 %v1057
        %v2900 = vpop.f32.mrb[0].mxu0
        %v2901 = vadd.f32 %v818, %v2900
        %v2902 = vpop.f32.mrb[0].mxu0
        %v2903 = vadd.f32 %v822, %v2902
        %2904 = vdwg.mxu0
        %2905 = vmatprep.subr.mxu0 %v294
        %2906 = vmatpush1.msra.mxu0 %v293
        %2907 = vmatprep.subr.mxu0 %v382
        %2908 = vmatpush1.msra.mxu0 %v381
        %2909 = vmatprep.subr.mxu0 %v470
        %2910 = vmatpush1.msra.mxu0 %v469
        %2911 = vmatprep.subr.mxu0 %v558
        %2912 = vmatpush1.msra.mxu0 %v557
        %2913 = vmatprep.subr.mxu0 0.0
        %2914 = vmatpush1.msra.mxu0 0.0
        %2915 = vmatprep.subr.mxu0 0.0
        %2916 = vmatpush1.msra.mxu0 0.0
        %2917 = vmatprep.subr.mxu0 0.0
        %2918 = vmatpush1.msra.mxu0 0.0
        %2919 = vmatprep.subr.mxu0 0.0
        %2920 = vmatpush1.msra.mxu0 0.0
        %2921 = vmatprep.subr.mxu0 0.0
        %2922 = vmatpush1.msra.mxu0 0.0
        %2923 = vmatprep.subr.mxu0 0.0
        %2924 = vmatpush1.msra.mxu0 0.0
        %2925 = vmatprep.subr.mxu0 0.0
        %2926 = vmatpush1.msra.mxu0 0.0
        %2927 = vmatprep.subr.mxu0 0.0
        %2928 = vmatpush1.msra.mxu0 0.0
        %2929 = vmatprep.subr.mxu0 0.0
        %2930 = vmatpush1.msra.mxu0 0.0
        %2931 = vmatprep.subr.mxu0 0.0
        %2932 = vmatpush1.msra.mxu0 0.0
        %2933 = vmatprep.subr.mxu0 0.0
        %2934 = vmatpush1.msra.mxu0 0.0
        %2935 = vmatprep.subr.mxu0 0.0
        %2936 = vmatpush1.msra.mxu0 0.0
        %2937 = vmatprep.subr.mxu0 0.0
        %2938 = vmatpush1.msra.mxu0 0.0
        %2939 = vmatprep.subr.mxu0 0.0
        %2940 = vmatpush1.msra.mxu0 0.0
        %2941 = vmatprep.subr.mxu0 0.0
        %2942 = vmatpush1.msra.mxu0 0.0
        %2943 = vmatprep.subr.mxu0 0.0
        %2944 = vmatpush1.msra.mxu0 0.0
        %2945 = vmatprep.subr.mxu0 0.0
        %2946 = vmatpush1.msra.mxu0 0.0
        %2947 = vmatprep.subr.mxu0 0.0
        %2948 = vmatpush1.msra.mxu0 0.0
        %2949 = vmatprep.subr.mxu0 0.0
        %2950 = vmatpush1.msra.mxu0 0.0
        %2951 = vmatprep.subr.mxu0 0.0
        %2952 = vmatpush1.msra.mxu0 0.0
        %2953 = vmatprep.subr.mxu0 0.0
        %2954 = vmatpush1.msra.mxu0 0.0
        %2955 = vmatprep.subr.mxu0 0.0
        %2956 = vmatpush1.msra.mxu0 0.0
        %2957 = vmatprep.subr.mxu0 0.0
        %2958 = vmatpush1.msra.mxu0 0.0
        %2959 = vmatprep.subr.mxu0 0.0
        %2960 = vmatpush1.msra.mxu0 0.0
        %2961 = vmatprep.subr.mxu0 0.0
        %2962 = vmatpush1.msra.mxu0 0.0
        %2963 = vmatprep.subr.mxu0 0.0
        %2964 = vmatpush1.msra.mxu0 0.0
        %2965 = vmatprep.subr.mxu0 0.0
        %2966 = vmatpush1.msra.mxu0 0.0
        %2967 = vmatprep.subr.mxu0 0.0
        %2968 = vmatpush1.msra.mxu0 0.0
        %2969 = vmatprep.mubr.f32.mxu0 0.0
        %2970 = vmatmul.mubr.f32.gmra.mrb[0].mxu0 %v1057
        %v2971 = vpop.f32.mrb[0].mxu0
        %v2972 = vadd.f32 %v826, %v2971
        %v2973 = vpop.f32.mrb[0].mxu0
        %v2974 = vadd.f32 %v830, %v2973
        %2975 = vdwg.mxu0
        %2976 = vmatprep.subr.mxu0 %v296
        %2977 = vmatpush1.msra.mxu0 %v295
        %2978 = vmatprep.subr.mxu0 %v384
        %2979 = vmatpush1.msra.mxu0 %v383
        %2980 = vmatprep.subr.mxu0 %v472
        %2981 = vmatpush1.msra.mxu0 %v471
        %2982 = vmatprep.subr.mxu0 %v560
        %2983 = vmatpush1.msra.mxu0 %v559
        %2984 = vmatprep.subr.mxu0 0.0
        %2985 = vmatpush1.msra.mxu0 0.0
        %2986 = vmatprep.subr.mxu0 0.0
        %2987 = vmatpush1.msra.mxu0 0.0
        %2988 = vmatprep.subr.mxu0 0.0
        %2989 = vmatpush1.msra.mxu0 0.0
        %2990 = vmatprep.subr.mxu0 0.0
        %2991 = vmatpush1.msra.mxu0 0.0
        %2992 = vmatprep.subr.mxu0 0.0
        %2993 = vmatpush1.msra.mxu0 0.0
        %2994 = vmatprep.subr.mxu0 0.0
        %2995 = vmatpush1.msra.mxu0 0.0
        %2996 = vmatprep.subr.mxu0 0.0
        %2997 = vmatpush1.msra.mxu0 0.0
        %2998 = vmatprep.subr.mxu0 0.0
        %2999 = vmatpush1.msra.mxu0 0.0
        %3000 = vmatprep.subr.mxu0 0.0
        %3001 = vmatpush1.msra.mxu0 0.0
        %3002 = vmatprep.subr.mxu0 0.0
        %3003 = vmatpush1.msra.mxu0 0.0
        %3004 = vmatprep.subr.mxu0 0.0
        %3005 = vmatpush1.msra.mxu0 0.0
        %3006 = vmatprep.subr.mxu0 0.0
        %3007 = vmatpush1.msra.mxu0 0.0
        %3008 = vmatprep.subr.mxu0 0.0
        %3009 = vmatpush1.msra.mxu0 0.0
        %3010 = vmatprep.subr.mxu0 0.0
        %3011 = vmatpush1.msra.mxu0 0.0
        %3012 = vmatprep.subr.mxu0 0.0
        %3013 = vmatpush1.msra.mxu0 0.0
        %3014 = vmatprep.subr.mxu0 0.0
        %3015 = vmatpush1.msra.mxu0 0.0
        %3016 = vmatprep.subr.mxu0 0.0
        %3017 = vmatpush1.msra.mxu0 0.0
        %3018 = vmatprep.subr.mxu0 0.0
        %3019 = vmatpush1.msra.mxu0 0.0
        %3020 = vmatprep.subr.mxu0 0.0
        %3021 = vmatpush1.msra.mxu0 0.0
        %3022 = vmatprep.subr.mxu0 0.0
        %3023 = vmatpush1.msra.mxu0 0.0
        %3024 = vmatprep.subr.mxu0 0.0
        %3025 = vmatpush1.msra.mxu0 0.0
        %3026 = vmatprep.subr.mxu0 0.0
        %3027 = vmatpush1.msra.mxu0 0.0
        %3028 = vmatprep.subr.mxu0 0.0
        %3029 = vmatpush1.msra.mxu0 0.0
        %3030 = vmatprep.subr.mxu0 0.0
        %3031 = vmatpush1.msra.mxu0 0.0
        %3032 = vmatprep.subr.mxu0 0.0
        %3033 = vmatpush1.msra.mxu0 0.0
        %3034 = vmatprep.subr.mxu0 0.0
        %3035 = vmatpush1.msra.mxu0 0.0
        %3036 = vmatprep.subr.mxu0 0.0
        %3037 = vmatpush1.msra.mxu0 0.0
        %3038 = vmatprep.subr.mxu0 0.0
        %3039 = vmatpush1.msra.mxu0 0.0
        %3040 = vmatprep.mubr.f32.mxu0 0.0
        %3041 = vmatmul.mubr.f32.gmra.mrb[0].mxu0 %v1057
        %v3042 = vpop.f32.mrb[0].mxu0
        %v3043 = vadd.f32 %v834, %v3042
        %v3044 = vpop.f32.mrb[0].mxu0
        %v3045 = vadd.f32 %v838, %v3044
        %3046 = vdwg.mxu0
        %3047 = vmatprep.subr.mxu0 %v298
        %3048 = vmatpush1.msra.mxu0 %v297
        %3049 = vmatprep.subr.mxu0 %v386
        %3050 = vmatpush1.msra.mxu0 %v385
        %3051 = vmatprep.subr.mxu0 %v474
        %3052 = vmatpush1.msra.mxu0 %v473
        %3053 = vmatprep.subr.mxu0 %v562
        %3054 = vmatpush1.msra.mxu0 %v561
        %3055 = vmatprep.subr.mxu0 0.0
        %3056 = vmatpush1.msra.mxu0 0.0
        %3057 = vmatprep.subr.mxu0 0.0
        %3058 = vmatpush1.msra.mxu0 0.0
        %3059 = vmatprep.subr.mxu0 0.0
        %3060 = vmatpush1.msra.mxu0 0.0
        %3061 = vmatprep.subr.mxu0 0.0
        %3062 = vmatpush1.msra.mxu0 0.0
        %3063 = vmatprep.subr.mxu0 0.0
        %3064 = vmatpush1.msra.mxu0 0.0
        %3065 = vmatprep.subr.mxu0 0.0
        %3066 = vmatpush1.msra.mxu0 0.0
        %3067 = vmatprep.subr.mxu0 0.0
        %3068 = vmatpush1.msra.mxu0 0.0
        %3069 = vmatprep.subr.mxu0 0.0
        %3070 = vmatpush1.msra.mxu0 0.0
        %3071 = vmatprep.subr.mxu0 0.0
        %3072 = vmatpush1.msra.mxu0 0.0
        %3073 = vmatprep.subr.mxu0 0.0
        %3074 = vmatpush1.msra.mxu0 0.0
        %3075 = vmatprep.subr.mxu0 0.0
        %3076 = vmatpush1.msra.mxu0 0.0
        %3077 = vmatprep.subr.mxu0 0.0
        %3078 = vmatpush1.msra.mxu0 0.0
        %3079 = vmatprep.subr.mxu0 0.0
        %3080 = vmatpush1.msra.mxu0 0.0
        %3081 = vmatprep.subr.mxu0 0.0
        %3082 = vmatpush1.msra.mxu0 0.0
        %3083 = vmatprep.subr.mxu0 0.0
        %3084 = vmatpush1.msra.mxu0 0.0
        %3085 = vmatprep.subr.mxu0 0.0
        %3086 = vmatpush1.msra.mxu0 0.0
        %3087 = vmatprep.subr.mxu0 0.0
        %3088 = vmatpush1.msra.mxu0 0.0
        %3089 = vmatprep.subr.mxu0 0.0
        %3090 = vmatpush1.msra.mxu0 0.0
        %3091 = vmatprep.subr.mxu0 0.0
        %3092 = vmatpush1.msra.mxu0 0.0
        %3093 = vmatprep.subr.mxu0 0.0
        %3094 = vmatpush1.msra.mxu0 0.0
        %3095 = vmatprep.subr.mxu0 0.0
        %3096 = vmatpush1.msra.mxu0 0.0
        %3097 = vmatprep.subr.mxu0 0.0
        %3098 = vmatpush1.msra.mxu0 0.0
        %3099 = vmatprep.subr.mxu0 0.0
        %3100 = vmatpush1.msra.mxu0 0.0
        %3101 = vmatprep.subr.mxu0 0.0
        %3102 = vmatpush1.msra.mxu0 0.0
        %3103 = vmatprep.subr.mxu0 0.0
        %3104 = vmatpush1.msra.mxu0 0.0
        %3105 = vmatprep.subr.mxu0 0.0
        %3106 = vmatpush1.msra.mxu0 0.0
        %3107 = vmatprep.subr.mxu0 0.0
        %3108 = vmatpush1.msra.mxu0 0.0
        %3109 = vmatprep.subr.mxu0 0.0
        %3110 = vmatpush1.msra.mxu0 0.0
        %3111 = vmatprep.mubr.f32.mxu0 0.0
        %3112 = vmatmul.mubr.f32.gmra.mrb[0].mxu0 %v1057
        %v3113 = vpop.f32.mrb[0].mxu0
        %v3114 = vadd.f32 %v842, %v3113
        %v3115 = vpop.f32.mrb[0].mxu0
        %v3116 = vadd.f32 %v846, %v3115
        %3117 = vdwg.mxu0
        %3118 = vmatprep.subr.mxu0 %v300
        %3119 = vmatpush1.msra.mxu0 %v299
        %3120 = vmatprep.subr.mxu0 %v388
        %3121 = vmatpush1.msra.mxu0 %v387
        %3122 = vmatprep.subr.mxu0 %v476
        %3123 = vmatpush1.msra.mxu0 %v475
        %3124 = vmatprep.subr.mxu0 %v564
        %3125 = vmatpush1.msra.mxu0 %v563
        %3126 = vmatprep.subr.mxu0 0.0
        %3127 = vmatpush1.msra.mxu0 0.0
        %3128 = vmatprep.subr.mxu0 0.0
        %3129 = vmatpush1.msra.mxu0 0.0
        %3130 = vmatprep.subr.mxu0 0.0
        %3131 = vmatpush1.msra.mxu0 0.0
        %3132 = vmatprep.subr.mxu0 0.0
        %3133 = vmatpush1.msra.mxu0 0.0
        %3134 = vmatprep.subr.mxu0 0.0
        %3135 = vmatpush1.msra.mxu0 0.0
        %3136 = vmatprep.subr.mxu0 0.0
        %3137 = vmatpush1.msra.mxu0 0.0
        %3138 = vmatprep.subr.mxu0 0.0
        %3139 = vmatpush1.msra.mxu0 0.0
        %3140 = vmatprep.subr.mxu0 0.0
        %3141 = vmatpush1.msra.mxu0 0.0
        %3142 = vmatprep.subr.mxu0 0.0
        %3143 = vmatpush1.msra.mxu0 0.0
        %3144 = vmatprep.subr.mxu0 0.0
        %3145 = vmatpush1.msra.mxu0 0.0
        %3146 = vmatprep.subr.mxu0 0.0
        %3147 = vmatpush1.msra.mxu0 0.0
        %3148 = vmatprep.subr.mxu0 0.0
        %3149 = vmatpush1.msra.mxu0 0.0
        %3150 = vmatprep.subr.mxu0 0.0
        %3151 = vmatpush1.msra.mxu0 0.0
        %3152 = vmatprep.subr.mxu0 0.0
        %3153 = vmatpush1.msra.mxu0 0.0
        %3154 = vmatprep.subr.mxu0 0.0
        %3155 = vmatpush1.msra.mxu0 0.0
        %3156 = vmatprep.subr.mxu0 0.0
        %3157 = vmatpush1.msra.mxu0 0.0
        %3158 = vmatprep.subr.mxu0 0.0
        %3159 = vmatpush1.msra.mxu0 0.0
        %3160 = vmatprep.subr.mxu0 0.0
        %3161 = vmatpush1.msra.mxu0 0.0
        %3162 = vmatprep.subr.mxu0 0.0
        %3163 = vmatpush1.msra.mxu0 0.0
        %3164 = vmatprep.subr.mxu0 0.0
        %3165 = vmatpush1.msra.mxu0 0.0
        %3166 = vmatprep.subr.mxu0 0.0
        %3167 = vmatpush1.msra.mxu0 0.0
        %3168 = vmatprep.subr.mxu0 0.0
        %3169 = vmatpush1.msra.mxu0 0.0
        %3170 = vmatprep.subr.mxu0 0.0
        %3171 = vmatpush1.msra.mxu0 0.0
        %3172 = vmatprep.subr.mxu0 0.0
        %3173 = vmatpush1.msra.mxu0 0.0
        %3174 = vmatprep.subr.mxu0 0.0
        %3175 = vmatpush1.msra.mxu0 0.0
        %3176 = vmatprep.subr.mxu0 0.0
        %3177 = vmatpush1.msra.mxu0 0.0
        %3178 = vmatprep.subr.mxu0 0.0
        %3179 = vmatpush1.msra.mxu0 0.0
        %3180 = vmatprep.subr.mxu0 0.0
        %3181 = vmatpush1.msra.mxu0 0.0
        %3182 = vmatprep.mubr.f32.mxu0 0.0
        %3183 = vmatmul.mubr.f32.gmra.mrb[0].mxu0 %v1057
        %v3184 = vpop.f32.mrb[0].mxu0
        %v3185 = vadd.f32 %v850, %v3184
        %v3186 = vpop.f32.mrb[0].mxu0
        %v3187 = vadd.f32 %v854, %v3186
        %3188 = vdwg.mxu0
        %3189 = vmatprep.subr.mxu0 %v302
        %3190 = vmatpush1.msra.mxu0 %v301
        %3191 = vmatprep.subr.mxu0 %v390
        %3192 = vmatpush1.msra.mxu0 %v389
        %3193 = vmatprep.subr.mxu0 %v478
        %3194 = vmatpush1.msra.mxu0 %v477
        %3195 = vmatprep.subr.mxu0 %v566
        %3196 = vmatpush1.msra.mxu0 %v565
        %3197 = vmatprep.subr.mxu0 0.0
        %3198 = vmatpush1.msra.mxu0 0.0
        %3199 = vmatprep.subr.mxu0 0.0
        %3200 = vmatpush1.msra.mxu0 0.0
        %3201 = vmatprep.subr.mxu0 0.0
        %3202 = vmatpush1.msra.mxu0 0.0
        %3203 = vmatprep.subr.mxu0 0.0
        %3204 = vmatpush1.msra.mxu0 0.0
        %3205 = vmatprep.subr.mxu0 0.0
        %3206 = vmatpush1.msra.mxu0 0.0
        %3207 = vmatprep.subr.mxu0 0.0
        %3208 = vmatpush1.msra.mxu0 0.0
        %3209 = vmatprep.subr.mxu0 0.0
        %3210 = vmatpush1.msra.mxu0 0.0
        %3211 = vmatprep.subr.mxu0 0.0
        %3212 = vmatpush1.msra.mxu0 0.0
        %3213 = vmatprep.subr.mxu0 0.0
        %3214 = vmatpush1.msra.mxu0 0.0
        %3215 = vmatprep.subr.mxu0 0.0
        %3216 = vmatpush1.msra.mxu0 0.0
        %3217 = vmatprep.subr.mxu0 0.0
        %3218 = vmatpush1.msra.mxu0 0.0
        %3219 = vmatprep.subr.mxu0 0.0
        %3220 = vmatpush1.msra.mxu0 0.0
        %3221 = vmatprep.subr.mxu0 0.0
        %3222 = vmatpush1.msra.mxu0 0.0
        %3223 = vmatprep.subr.mxu0 0.0
        %3224 = vmatpush1.msra.mxu0 0.0
        %3225 = vmatprep.subr.mxu0 0.0
        %3226 = vmatpush1.msra.mxu0 0.0
        %3227 = vmatprep.subr.mxu0 0.0
        %3228 = vmatpush1.msra.mxu0 0.0
        %3229 = vmatprep.subr.mxu0 0.0
        %3230 = vmatpush1.msra.mxu0 0.0
        %3231 = vmatprep.subr.mxu0 0.0
        %3232 = vmatpush1.msra.mxu0 0.0
        %3233 = vmatprep.subr.mxu0 0.0
        %3234 = vmatpush1.msra.mxu0 0.0
        %3235 = vmatprep.subr.mxu0 0.0
        %3236 = vmatpush1.msra.mxu0 0.0
        %3237 = vmatprep.subr.mxu0 0.0
        %3238 = vmatpush1.msra.mxu0 0.0
        %3239 = vmatprep.subr.mxu0 0.0
        %3240 = vmatpush1.msra.mxu0 0.0
        %3241 = vmatprep.subr.mxu0 0.0
        %3242 = vmatpush1.msra.mxu0 0.0
        %3243 = vmatprep.subr.mxu0 0.0
        %3244 = vmatpush1.msra.mxu0 0.0
        %3245 = vmatprep.subr.mxu0 0.0
        %3246 = vmatpush1.msra.mxu0 0.0
        %3247 = vmatprep.subr.mxu0 0.0
        %3248 = vmatpush1.msra.mxu0 0.0
        %3249 = vmatprep.subr.mxu0 0.0
        %3250 = vmatpush1.msra.mxu0 0.0
        %3251 = vmatprep.subr.mxu0 0.0
        %3252 = vmatpush1.msra.mxu0 0.0
        %3253 = vmatprep.mubr.f32.mxu0 0.0
        %3254 = vmatmul.mubr.f32.gmra.mrb[0].mxu0 %v1057
        %v3255 = vpop.f32.mrb[0].mxu0
        %v3256 = vadd.f32 %v858, %v3255
        %v3257 = vpop.f32.mrb[0].mxu0
        %v3258 = vadd.f32 %v862, %v3257
        %3259 = vdwg.mxu0
        %3260 = vmatprep.subr.mxu0 %v304
        %3261 = vmatpush1.msra.mxu0 %v303
        %3262 = vmatprep.subr.mxu0 %v392
        %3263 = vmatpush1.msra.mxu0 %v391
        %3264 = vmatprep.subr.mxu0 %v480
        %3265 = vmatpush1.msra.mxu0 %v479
        %3266 = vmatprep.subr.mxu0 %v568
        %3267 = vmatpush1.msra.mxu0 %v567
        %3268 = vmatprep.subr.mxu0 0.0
        %3269 = vmatpush1.msra.mxu0 0.0
        %3270 = vmatprep.subr.mxu0 0.0
        %3271 = vmatpush1.msra.mxu0 0.0
        %3272 = vmatprep.subr.mxu0 0.0
        %3273 = vmatpush1.msra.mxu0 0.0
        %3274 = vmatprep.subr.mxu0 0.0
        %3275 = vmatpush1.msra.mxu0 0.0
        %3276 = vmatprep.subr.mxu0 0.0
        %3277 = vmatpush1.msra.mxu0 0.0
        %3278 = vmatprep.subr.mxu0 0.0
        %3279 = vmatpush1.msra.mxu0 0.0
        %3280 = vmatprep.subr.mxu0 0.0
        %3281 = vmatpush1.msra.mxu0 0.0
        %3282 = vmatprep.subr.mxu0 0.0
        %3283 = vmatpush1.msra.mxu0 0.0
        %3284 = vmatprep.subr.mxu0 0.0
        %3285 = vmatpush1.msra.mxu0 0.0
        %3286 = vmatprep.subr.mxu0 0.0
        %3287 = vmatpush1.msra.mxu0 0.0
        %3288 = vmatprep.subr.mxu0 0.0
        %3289 = vmatpush1.msra.mxu0 0.0
        %3290 = vmatprep.subr.mxu0 0.0
        %3291 = vmatpush1.msra.mxu0 0.0
        %3292 = vmatprep.subr.mxu0 0.0
        %3293 = vmatpush1.msra.mxu0 0.0
        %3294 = vmatprep.subr.mxu0 0.0
        %3295 = vmatpush1.msra.mxu0 0.0
        %3296 = vmatprep.subr.mxu0 0.0
        %3297 = vmatpush1.msra.mxu0 0.0
        %3298 = vmatprep.subr.mxu0 0.0
        %3299 = vmatpush1.msra.mxu0 0.0
        %3300 = vmatprep.subr.mxu0 0.0
        %3301 = vmatpush1.msra.mxu0 0.0
        %3302 = vmatprep.subr.mxu0 0.0
        %3303 = vmatpush1.msra.mxu0 0.0
        %3304 = vmatprep.subr.mxu0 0.0
        %3305 = vmatpush1.msra.mxu0 0.0
        %3306 = vmatprep.subr.mxu0 0.0
        %3307 = vmatpush1.msra.mxu0 0.0
        %3308 = vmatprep.subr.mxu0 0.0
        %3309 = vmatpush1.msra.mxu0 0.0
        %3310 = vmatprep.subr.mxu0 0.0
        %3311 = vmatpush1.msra.mxu0 0.0
        %3312 = vmatprep.subr.mxu0 0.0
        %3313 = vmatpush1.msra.mxu0 0.0
        %3314 = vmatprep.subr.mxu0 0.0
        %3315 = vmatpush1.msra.mxu0 0.0
        %3316 = vmatprep.subr.mxu0 0.0
        %3317 = vmatpush1.msra.mxu0 0.0
        %3318 = vmatprep.subr.mxu0 0.0
        %3319 = vmatpush1.msra.mxu0 0.0
        %3320 = vmatprep.subr.mxu0 0.0
        %3321 = vmatpush1.msra.mxu0 0.0
        %3322 = vmatprep.subr.mxu0 0.0
        %3323 = vmatpush1.msra.mxu0 0.0
        %3324 = vmatprep.mubr.f32.mxu0 0.0
        %3325 = vmatmul.mubr.f32.gmra.mrb[0].mxu0 %v1057
        %v3326 = vpop.f32.mrb[0].mxu0
        %v3327 = vadd.f32 %v866, %v3326
        %v3328 = vpop.f32.mrb[0].mxu0
        %v3329 = vadd.f32 %v870, %v3328
        %3330 = vdwg.mxu0
        %3331 = vmatprep.subr.mxu0 %v306
        %3332 = vmatpush1.msra.mxu0 %v305
        %3333 = vmatprep.subr.mxu0 %v394
        %3334 = vmatpush1.msra.mxu0 %v393
        %3335 = vmatprep.subr.mxu0 %v482
        %3336 = vmatpush1.msra.mxu0 %v481
        %3337 = vmatprep.subr.mxu0 %v570
        %3338 = vmatpush1.msra.mxu0 %v569
        %3339 = vmatprep.subr.mxu0 0.0
        %3340 = vmatpush1.msra.mxu0 0.0
        %3341 = vmatprep.subr.mxu0 0.0
        %3342 = vmatpush1.msra.mxu0 0.0
        %3343 = vmatprep.subr.mxu0 0.0
        %3344 = vmatpush1.msra.mxu0 0.0
        %3345 = vmatprep.subr.mxu0 0.0
        %3346 = vmatpush1.msra.mxu0 0.0
        %3347 = vmatprep.subr.mxu0 0.0
        %3348 = vmatpush1.msra.mxu0 0.0
        %3349 = vmatprep.subr.mxu0 0.0
        %3350 = vmatpush1.msra.mxu0 0.0
        %3351 = vmatprep.subr.mxu0 0.0
        %3352 = vmatpush1.msra.mxu0 0.0
        %3353 = vmatprep.subr.mxu0 0.0
        %3354 = vmatpush1.msra.mxu0 0.0
        %3355 = vmatprep.subr.mxu0 0.0
        %3356 = vmatpush1.msra.mxu0 0.0
        %3357 = vmatprep.subr.mxu0 0.0
        %3358 = vmatpush1.msra.mxu0 0.0
        %3359 = vmatprep.subr.mxu0 0.0
        %3360 = vmatpush1.msra.mxu0 0.0
        %3361 = vmatprep.subr.mxu0 0.0
        %3362 = vmatpush1.msra.mxu0 0.0
        %3363 = vmatprep.subr.mxu0 0.0
        %3364 = vmatpush1.msra.mxu0 0.0
        %3365 = vmatprep.subr.mxu0 0.0
        %3366 = vmatpush1.msra.mxu0 0.0
        %3367 = vmatprep.subr.mxu0 0.0
        %3368 = vmatpush1.msra.mxu0 0.0
        %3369 = vmatprep.subr.mxu0 0.0
        %3370 = vmatpush1.msra.mxu0 0.0
        %3371 = vmatprep.subr.mxu0 0.0
        %3372 = vmatpush1.msra.mxu0 0.0
        %3373 = vmatprep.subr.mxu0 0.0
        %3374 = vmatpush1.msra.mxu0 0.0
        %3375 = vmatprep.subr.mxu0 0.0
        %3376 = vmatpush1.msra.mxu0 0.0
        %3377 = vmatprep.subr.mxu0 0.0
        %3378 = vmatpush1.msra.mxu0 0.0
        %3379 = vmatprep.subr.mxu0 0.0
        %3380 = vmatpush1.msra.mxu0 0.0
        %3381 = vmatprep.subr.mxu0 0.0
        %3382 = vmatpush1.msra.mxu0 0.0
        %3383 = vmatprep.subr.mxu0 0.0
        %3384 = vmatpush1.msra.mxu0 0.0
        %3385 = vmatprep.subr.mxu0 0.0
        %3386 = vmatpush1.msra.mxu0 0.0
        %3387 = vmatprep.subr.mxu0 0.0
        %3388 = vmatpush1.msra.mxu0 0.0
        %3389 = vmatprep.subr.mxu0 0.0
        %3390 = vmatpush1.msra.mxu0 0.0
        %3391 = vmatprep.subr.mxu0 0.0
        %3392 = vmatpush1.msra.mxu0 0.0
        %3393 = vmatprep.subr.mxu0 0.0
        %3394 = vmatpush1.msra.mxu0 0.0
        %3395 = vmatprep.mubr.f32.mxu0 0.0
        %3396 = vmatmul.mubr.f32.gmra.mrb[0].mxu0 %v1057
        %v3397 = vpop.f32.mrb[0].mxu0
        %v3398 = vadd.f32 %v874, %v3397
        %v3399 = vpop.f32.mrb[0].mxu0
        %v3400 = vadd.f32 %v878, %v3399
        %3401 = vdwg.mxu0
        %3402 = vmatprep.subr.mxu0 %v308
        %3403 = vmatpush1.msra.mxu0 %v307
        %3404 = vmatprep.subr.mxu0 %v396
        %3405 = vmatpush1.msra.mxu0 %v395
        %3406 = vmatprep.subr.mxu0 %v484
        %3407 = vmatpush1.msra.mxu0 %v483
        %3408 = vmatprep.subr.mxu0 %v572
        %3409 = vmatpush1.msra.mxu0 %v571
        %3410 = vmatprep.subr.mxu0 0.0
        %3411 = vmatpush1.msra.mxu0 0.0
        %3412 = vmatprep.subr.mxu0 0.0
        %3413 = vmatpush1.msra.mxu0 0.0
        %3414 = vmatprep.subr.mxu0 0.0
        %3415 = vmatpush1.msra.mxu0 0.0
        %3416 = vmatprep.subr.mxu0 0.0
        %3417 = vmatpush1.msra.mxu0 0.0
        %3418 = vmatprep.subr.mxu0 0.0
        %3419 = vmatpush1.msra.mxu0 0.0
        %3420 = vmatprep.subr.mxu0 0.0
        %3421 = vmatpush1.msra.mxu0 0.0
        %3422 = vmatprep.subr.mxu0 0.0
        %3423 = vmatpush1.msra.mxu0 0.0
        %3424 = vmatprep.subr.mxu0 0.0
        %3425 = vmatpush1.msra.mxu0 0.0
        %3426 = vmatprep.subr.mxu0 0.0
        %3427 = vmatpush1.msra.mxu0 0.0
        %3428 = vmatprep.subr.mxu0 0.0
        %3429 = vmatpush1.msra.mxu0 0.0
        %3430 = vmatprep.subr.mxu0 0.0
        %3431 = vmatpush1.msra.mxu0 0.0
        %3432 = vmatprep.subr.mxu0 0.0
        %3433 = vmatpush1.msra.mxu0 0.0
        %3434 = vmatprep.subr.mxu0 0.0
        %3435 = vmatpush1.msra.mxu0 0.0
        %3436 = vmatprep.subr.mxu0 0.0
        %3437 = vmatpush1.msra.mxu0 0.0
        %3438 = vmatprep.subr.mxu0 0.0
        %3439 = vmatpush1.msra.mxu0 0.0
        %3440 = vmatprep.subr.mxu0 0.0
        %3441 = vmatpush1.msra.mxu0 0.0
        %3442 = vmatprep.subr.mxu0 0.0
        %3443 = vmatpush1.msra.mxu0 0.0
        %3444 = vmatprep.subr.mxu0 0.0
        %3445 = vmatpush1.msra.mxu0 0.0
        %3446 = vmatprep.subr.mxu0 0.0
        %3447 = vmatpush1.msra.mxu0 0.0
        %3448 = vmatprep.subr.mxu0 0.0
        %3449 = vmatpush1.msra.mxu0 0.0
        %3450 = vmatprep.subr.mxu0 0.0
        %3451 = vmatpush1.msra.mxu0 0.0
        %3452 = vmatprep.subr.mxu0 0.0
        %3453 = vmatpush1.msra.mxu0 0.0
        %3454 = vmatprep.subr.mxu0 0.0
        %3455 = vmatpush1.msra.mxu0 0.0
        %3456 = vmatprep.subr.mxu0 0.0
        %3457 = vmatpush1.msra.mxu0 0.0
        %3458 = vmatprep.subr.mxu0 0.0
        %3459 = vmatpush1.msra.mxu0 0.0
        %3460 = vmatprep.subr.mxu0 0.0
        %3461 = vmatpush1.msra.mxu0 0.0
        %3462 = vmatprep.subr.mxu0 0.0
        %3463 = vmatpush1.msra.mxu0 0.0
        %3464 = vmatprep.subr.mxu0 0.0
        %3465 = vmatpush1.msra.mxu0 0.0
        %3466 = vmatprep.mubr.f32.mxu0 0.0
        %3467 = vmatmul.mubr.f32.gmra.mrb[0].mxu0 %v1057
        %v3468 = vpop.f32.mrb[0].mxu0
        %v3469 = vadd.f32 %v882, %v3468
        %v3470 = vpop.f32.mrb[0].mxu0
        %v3471 = vadd.f32 %v886, %v3470
        %3472 = vdwg.mxu0
        %3473 = vmatprep.subr.mxu0 %v310
        %3474 = vmatpush1.msra.mxu0 %v309
        %3475 = vmatprep.subr.mxu0 %v398
        %3476 = vmatpush1.msra.mxu0 %v397
        %3477 = vmatprep.subr.mxu0 %v486
        %3478 = vmatpush1.msra.mxu0 %v485
        %3479 = vmatprep.subr.mxu0 %v574
        %3480 = vmatpush1.msra.mxu0 %v573
        %3481 = vmatprep.subr.mxu0 0.0
        %3482 = vmatpush1.msra.mxu0 0.0
        %3483 = vmatprep.subr.mxu0 0.0
        %3484 = vmatpush1.msra.mxu0 0.0
        %3485 = vmatprep.subr.mxu0 0.0
        %3486 = vmatpush1.msra.mxu0 0.0
        %3487 = vmatprep.subr.mxu0 0.0
        %3488 = vmatpush1.msra.mxu0 0.0
        %3489 = vmatprep.subr.mxu0 0.0
        %3490 = vmatpush1.msra.mxu0 0.0
        %3491 = vmatprep.subr.mxu0 0.0
        %3492 = vmatpush1.msra.mxu0 0.0
        %3493 = vmatprep.subr.mxu0 0.0
        %3494 = vmatpush1.msra.mxu0 0.0
        %3495 = vmatprep.subr.mxu0 0.0
        %3496 = vmatpush1.msra.mxu0 0.0
        %3497 = vmatprep.subr.mxu0 0.0
        %3498 = vmatpush1.msra.mxu0 0.0
        %3499 = vmatprep.subr.mxu0 0.0
        %3500 = vmatpush1.msra.mxu0 0.0
        %3501 = vmatprep.subr.mxu0 0.0
        %3502 = vmatpush1.msra.mxu0 0.0
        %3503 = vmatprep.subr.mxu0 0.0
        %3504 = vmatpush1.msra.mxu0 0.0
        %3505 = vmatprep.subr.mxu0 0.0
        %3506 = vmatpush1.msra.mxu0 0.0
        %3507 = vmatprep.subr.mxu0 0.0
        %3508 = vmatpush1.msra.mxu0 0.0
        %3509 = vmatprep.subr.mxu0 0.0
        %3510 = vmatpush1.msra.mxu0 0.0
        %3511 = vmatprep.subr.mxu0 0.0
        %3512 = vmatpush1.msra.mxu0 0.0
        %3513 = vmatprep.subr.mxu0 0.0
        %3514 = vmatpush1.msra.mxu0 0.0
        %3515 = vmatprep.subr.mxu0 0.0
        %3516 = vmatpush1.msra.mxu0 0.0
        %3517 = vmatprep.subr.mxu0 0.0
        %3518 = vmatpush1.msra.mxu0 0.0
        %3519 = vmatprep.subr.mxu0 0.0
        %3520 = vmatpush1.msra.mxu0 0.0
        %3521 = vmatprep.subr.mxu0 0.0
        %3522 = vmatpush1.msra.mxu0 0.0
        %3523 = vmatprep.subr.mxu0 0.0
        %3524 = vmatpush1.msra.mxu0 0.0
        %3525 = vmatprep.subr.mxu0 0.0
        %3526 = vmatpush1.msra.mxu0 0.0
        %3527 = vmatprep.subr.mxu0 0.0
        %3528 = vmatpush1.msra.mxu0 0.0
        %3529 = vmatprep.subr.mxu0 0.0
        %3530 = vmatpush1.msra.mxu0 0.0
        %3531 = vmatprep.subr.mxu0 0.0
        %3532 = vmatpush1.msra.mxu0 0.0
        %3533 = vmatprep.subr.mxu0 0.0
        %3534 = vmatpush1.msra.mxu0 0.0
        %3535 = vmatprep.subr.mxu0 0.0
        %3536 = vmatpush1.msra.mxu0 0.0
        %3537 = vmatprep.mubr.f32.mxu0 0.0
        %3538 = vmatmul.mubr.f32.gmra.mrb[0].mxu0 %v1057
        %v3539 = vpop.f32.mrb[0].mxu0
        %v3540 = vadd.f32 %v890, %v3539
        %v3541 = vpop.f32.mrb[0].mxu0
        %v3542 = vadd.f32 %v894, %v3541
        %3543 = vdwg.mxu0
        %3544 = vmatprep.subr.mxu0 %v312
        %3545 = vmatpush1.msra.mxu0 %v311
        %3546 = vmatprep.subr.mxu0 %v400
        %3547 = vmatpush1.msra.mxu0 %v399
        %3548 = vmatprep.subr.mxu0 %v488
        %3549 = vmatpush1.msra.mxu0 %v487
        %3550 = vmatprep.subr.mxu0 %v576
        %3551 = vmatpush1.msra.mxu0 %v575
        %3552 = vmatprep.subr.mxu0 0.0
        %3553 = vmatpush1.msra.mxu0 0.0
        %3554 = vmatprep.subr.mxu0 0.0
        %3555 = vmatpush1.msra.mxu0 0.0
        %3556 = vmatprep.subr.mxu0 0.0
        %3557 = vmatpush1.msra.mxu0 0.0
        %3558 = vmatprep.subr.mxu0 0.0
        %3559 = vmatpush1.msra.mxu0 0.0
        %3560 = vmatprep.subr.mxu0 0.0
        %3561 = vmatpush1.msra.mxu0 0.0
        %3562 = vmatprep.subr.mxu0 0.0
        %3563 = vmatpush1.msra.mxu0 0.0
        %3564 = vmatprep.subr.mxu0 0.0
        %3565 = vmatpush1.msra.mxu0 0.0
        %3566 = vmatprep.subr.mxu0 0.0
        %3567 = vmatpush1.msra.mxu0 0.0
        %3568 = vmatprep.subr.mxu0 0.0
        %3569 = vmatpush1.msra.mxu0 0.0
        %3570 = vmatprep.subr.mxu0 0.0
        %3571 = vmatpush1.msra.mxu0 0.0
        %3572 = vmatprep.subr.mxu0 0.0
        %3573 = vmatpush1.msra.mxu0 0.0
        %3574 = vmatprep.subr.mxu0 0.0
        %3575 = vmatpush1.msra.mxu0 0.0
        %3576 = vmatprep.subr.mxu0 0.0
        %3577 = vmatpush1.msra.mxu0 0.0
        %3578 = vmatprep.subr.mxu0 0.0
        %3579 = vmatpush1.msra.mxu0 0.0
        %3580 = vmatprep.subr.mxu0 0.0
        %3581 = vmatpush1.msra.mxu0 0.0
        %3582 = vmatprep.subr.mxu0 0.0
        %3583 = vmatpush1.msra.mxu0 0.0
        %3584 = vmatprep.subr.mxu0 0.0
        %3585 = vmatpush1.msra.mxu0 0.0
        %3586 = vmatprep.subr.mxu0 0.0
        %3587 = vmatpush1.msra.mxu0 0.0
        %3588 = vmatprep.subr.mxu0 0.0
        %3589 = vmatpush1.msra.mxu0 0.0
        %3590 = vmatprep.subr.mxu0 0.0
        %3591 = vmatpush1.msra.mxu0 0.0
        %3592 = vmatprep.subr.mxu0 0.0
        %3593 = vmatpush1.msra.mxu0 0.0
        %3594 = vmatprep.subr.mxu0 0.0
        %3595 = vmatpush1.msra.mxu0 0.0
        %3596 = vmatprep.subr.mxu0 0.0
        %3597 = vmatpush1.msra.mxu0 0.0
        %3598 = vmatprep.subr.mxu0 0.0
        %3599 = vmatpush1.msra.mxu0 0.0
        %3600 = vmatprep.subr.mxu0 0.0
        %3601 = vmatpush1.msra.mxu0 0.0
        %3602 = vmatprep.subr.mxu0 0.0
        %3603 = vmatpush1.msra.mxu0 0.0
        %3604 = vmatprep.subr.mxu0 0.0
        %3605 = vmatpush1.msra.mxu0 0.0
        %3606 = vmatprep.subr.mxu0 0.0
        %3607 = vmatpush1.msra.mxu0 0.0
        %3608 = vmatprep.mubr.f32.mxu0 0.0
        %3609 = vmatmul.mubr.f32.gmra.mrb[0].mxu0 %v1057
        %v3610 = vpop.f32.mrb[0].mxu0
        %v3611 = vadd.f32 %v898, %v3610
        %v3612 = vpop.f32.mrb[0].mxu0
        %v3613 = vadd.f32 %v902, %v3612
        %3614 = vdwg.mxu0
        %3615 = vmatprep.subr.mxu0 %v314
        %3616 = vmatpush1.msra.mxu0 %v313
        %3617 = vmatprep.subr.mxu0 %v402
        %3618 = vmatpush1.msra.mxu0 %v401
        %3619 = vmatprep.subr.mxu0 %v490
        %3620 = vmatpush1.msra.mxu0 %v489
        %3621 = vmatprep.subr.mxu0 %v578
        %3622 = vmatpush1.msra.mxu0 %v577
        %3623 = vmatprep.subr.mxu0 0.0
        %3624 = vmatpush1.msra.mxu0 0.0
        %3625 = vmatprep.subr.mxu0 0.0
        %3626 = vmatpush1.msra.mxu0 0.0
        %3627 = vmatprep.subr.mxu0 0.0
        %3628 = vmatpush1.msra.mxu0 0.0
        %3629 = vmatprep.subr.mxu0 0.0
        %3630 = vmatpush1.msra.mxu0 0.0
        %3631 = vmatprep.subr.mxu0 0.0
        %3632 = vmatpush1.msra.mxu0 0.0
        %3633 = vmatprep.subr.mxu0 0.0
        %3634 = vmatpush1.msra.mxu0 0.0
        %3635 = vmatprep.subr.mxu0 0.0
        %3636 = vmatpush1.msra.mxu0 0.0
        %3637 = vmatprep.subr.mxu0 0.0
        %3638 = vmatpush1.msra.mxu0 0.0
        %3639 = vmatprep.subr.mxu0 0.0
        %3640 = vmatpush1.msra.mxu0 0.0
        %3641 = vmatprep.subr.mxu0 0.0
        %3642 = vmatpush1.msra.mxu0 0.0
        %3643 = vmatprep.subr.mxu0 0.0
        %3644 = vmatpush1.msra.mxu0 0.0
        %3645 = vmatprep.subr.mxu0 0.0
        %3646 = vmatpush1.msra.mxu0 0.0
        %3647 = vmatprep.subr.mxu0 0.0
        %3648 = vmatpush1.msra.mxu0 0.0
        %3649 = vmatprep.subr.mxu0 0.0
        %3650 = vmatpush1.msra.mxu0 0.0
        %3651 = vmatprep.subr.mxu0 0.0
        %3652 = vmatpush1.msra.mxu0 0.0
        %3653 = vmatprep.subr.mxu0 0.0
        %3654 = vmatpush1.msra.mxu0 0.0
        %3655 = vmatprep.subr.mxu0 0.0
        %3656 = vmatpush1.msra.mxu0 0.0
        %3657 = vmatprep.subr.mxu0 0.0
        %3658 = vmatpush1.msra.mxu0 0.0
        %3659 = vmatprep.subr.mxu0 0.0
        %3660 = vmatpush1.msra.mxu0 0.0
        %3661 = vmatprep.subr.mxu0 0.0
        %3662 = vmatpush1.msra.mxu0 0.0
        %3663 = vmatprep.subr.mxu0 0.0
        %3664 = vmatpush1.msra.mxu0 0.0
        %3665 = vmatprep.subr.mxu0 0.0
        %3666 = vmatpush1.msra.mxu0 0.0
        %3667 = vmatprep.subr.mxu0 0.0
        %3668 = vmatpush1.msra.mxu0 0.0
        %3669 = vmatprep.subr.mxu0 0.0
        %3670 = vmatpush1.msra.mxu0 0.0
        %3671 = vmatprep.subr.mxu0 0.0
        %3672 = vmatpush1.msra.mxu0 0.0
        %3673 = vmatprep.subr.mxu0 0.0
        %3674 = vmatpush1.msra.mxu0 0.0
        %3675 = vmatprep.subr.mxu0 0.0
        %3676 = vmatpush1.msra.mxu0 0.0
        %3677 = vmatprep.subr.mxu0 0.0
        %3678 = vmatpush1.msra.mxu0 0.0
        %3679 = vmatprep.mubr.f32.mxu0 0.0
        %3680 = vmatmul.mubr.f32.gmra.mrb[0].mxu0 %v1057
        %v3681 = vpop.f32.mrb[0].mxu0
        %v3682 = vadd.f32 %v906, %v3681
        %v3683 = vpop.f32.mrb[0].mxu0
        %v3684 = vadd.f32 %v910, %v3683
        %3685 = vdwg.mxu0
        %3686 = vmatprep.subr.mxu0 %v316
        %3687 = vmatpush1.msra.mxu0 %v315
        %3688 = vmatprep.subr.mxu0 %v404
        %3689 = vmatpush1.msra.mxu0 %v403
        %3690 = vmatprep.subr.mxu0 %v492
        %3691 = vmatpush1.msra.mxu0 %v491
        %3692 = vmatprep.subr.mxu0 %v580
        %3693 = vmatpush1.msra.mxu0 %v579
        %3694 = vmatprep.subr.mxu0 0.0
        %3695 = vmatpush1.msra.mxu0 0.0
        %3696 = vmatprep.subr.mxu0 0.0
        %3697 = vmatpush1.msra.mxu0 0.0
        %3698 = vmatprep.subr.mxu0 0.0
        %3699 = vmatpush1.msra.mxu0 0.0
        %3700 = vmatprep.subr.mxu0 0.0
        %3701 = vmatpush1.msra.mxu0 0.0
        %3702 = vmatprep.subr.mxu0 0.0
        %3703 = vmatpush1.msra.mxu0 0.0
        %3704 = vmatprep.subr.mxu0 0.0
        %3705 = vmatpush1.msra.mxu0 0.0
        %3706 = vmatprep.subr.mxu0 0.0
        %3707 = vmatpush1.msra.mxu0 0.0
        %3708 = vmatprep.subr.mxu0 0.0
        %3709 = vmatpush1.msra.mxu0 0.0
        %3710 = vmatprep.subr.mxu0 0.0
        %3711 = vmatpush1.msra.mxu0 0.0
        %3712 = vmatprep.subr.mxu0 0.0
        %3713 = vmatpush1.msra.mxu0 0.0
        %3714 = vmatprep.subr.mxu0 0.0
        %3715 = vmatpush1.msra.mxu0 0.0
        %3716 = vmatprep.subr.mxu0 0.0
        %3717 = vmatpush1.msra.mxu0 0.0
        %3718 = vmatprep.subr.mxu0 0.0
        %3719 = vmatpush1.msra.mxu0 0.0
        %3720 = vmatprep.subr.mxu0 0.0
        %3721 = vmatpush1.msra.mxu0 0.0
        %3722 = vmatprep.subr.mxu0 0.0
        %3723 = vmatpush1.msra.mxu0 0.0
        %3724 = vmatprep.subr.mxu0 0.0
        %3725 = vmatpush1.msra.mxu0 0.0
        %3726 = vmatprep.subr.mxu0 0.0
        %3727 = vmatpush1.msra.mxu0 0.0
        %3728 = vmatprep.subr.mxu0 0.0
        %3729 = vmatpush1.msra.mxu0 0.0
        %3730 = vmatprep.subr.mxu0 0.0
        %3731 = vmatpush1.msra.mxu0 0.0
        %3732 = vmatprep.subr.mxu0 0.0
        %3733 = vmatpush1.msra.mxu0 0.0
        %3734 = vmatprep.subr.mxu0 0.0
        %3735 = vmatpush1.msra.mxu0 0.0
        %3736 = vmatprep.subr.mxu0 0.0
        %3737 = vmatpush1.msra.mxu0 0.0
        %3738 = vmatprep.subr.mxu0 0.0
        %3739 = vmatpush1.msra.mxu0 0.0
        %3740 = vmatprep.subr.mxu0 0.0
        %3741 = vmatpush1.msra.mxu0 0.0
        %3742 = vmatprep.subr.mxu0 0.0
        %3743 = vmatpush1.msra.mxu0 0.0
        %3744 = vmatprep.subr.mxu0 0.0
        %3745 = vmatpush1.msra.mxu0 0.0
        %3746 = vmatprep.subr.mxu0 0.0
        %3747 = vmatpush1.msra.mxu0 0.0
        %3748 = vmatprep.subr.mxu0 0.0
        %3749 = vmatpush1.msra.mxu0 0.0
        %3750 = vmatprep.mubr.f32.mxu0 0.0
        %3751 = vmatmul.mubr.f32.gmra.mrb[0].mxu0 %v1057
        %v3752 = vpop.f32.mrb[0].mxu0
        %v3753 = vadd.f32 %v914, %v3752
        %v3754 = vpop.f32.mrb[0].mxu0
        %v3755 = vadd.f32 %v918, %v3754
        %3756 = vdwg.mxu0
        %3757 = vmatprep.subr.mxu0 %v318
        %3758 = vmatpush1.msra.mxu0 %v317
        %3759 = vmatprep.subr.mxu0 %v406
        %3760 = vmatpush1.msra.mxu0 %v405
        %3761 = vmatprep.subr.mxu0 %v494
        %3762 = vmatpush1.msra.mxu0 %v493
        %3763 = vmatprep.subr.mxu0 %v582
        %3764 = vmatpush1.msra.mxu0 %v581
        %3765 = vmatprep.subr.mxu0 0.0
        %3766 = vmatpush1.msra.mxu0 0.0
        %3767 = vmatprep.subr.mxu0 0.0
        %3768 = vmatpush1.msra.mxu0 0.0
        %3769 = vmatprep.subr.mxu0 0.0
        %3770 = vmatpush1.msra.mxu0 0.0
        %3771 = vmatprep.subr.mxu0 0.0
        %3772 = vmatpush1.msra.mxu0 0.0
        %3773 = vmatprep.subr.mxu0 0.0
        %3774 = vmatpush1.msra.mxu0 0.0
        %3775 = vmatprep.subr.mxu0 0.0
        %3776 = vmatpush1.msra.mxu0 0.0
        %3777 = vmatprep.subr.mxu0 0.0
        %3778 = vmatpush1.msra.mxu0 0.0
        %3779 = vmatprep.subr.mxu0 0.0
        %3780 = vmatpush1.msra.mxu0 0.0
        %3781 = vmatprep.subr.mxu0 0.0
        %3782 = vmatpush1.msra.mxu0 0.0
        %3783 = vmatprep.subr.mxu0 0.0
        %3784 = vmatpush1.msra.mxu0 0.0
        %3785 = vmatprep.subr.mxu0 0.0
        %3786 = vmatpush1.msra.mxu0 0.0
        %3787 = vmatprep.subr.mxu0 0.0
        %3788 = vmatpush1.msra.mxu0 0.0
        %3789 = vmatprep.subr.mxu0 0.0
        %3790 = vmatpush1.msra.mxu0 0.0
        %3791 = vmatprep.subr.mxu0 0.0
        %3792 = vmatpush1.msra.mxu0 0.0
        %3793 = vmatprep.subr.mxu0 0.0
        %3794 = vmatpush1.msra.mxu0 0.0
        %3795 = vmatprep.subr.mxu0 0.0
        %3796 = vmatpush1.msra.mxu0 0.0
        %3797 = vmatprep.subr.mxu0 0.0
        %3798 = vmatpush1.msra.mxu0 0.0
        %3799 = vmatprep.subr.mxu0 0.0
        %3800 = vmatpush1.msra.mxu0 0.0
        %3801 = vmatprep.subr.mxu0 0.0
        %3802 = vmatpush1.msra.mxu0 0.0
        %3803 = vmatprep.subr.mxu0 0.0
        %3804 = vmatpush1.msra.mxu0 0.0
        %3805 = vmatprep.subr.mxu0 0.0
        %3806 = vmatpush1.msra.mxu0 0.0
        %3807 = vmatprep.subr.mxu0 0.0
        %3808 = vmatpush1.msra.mxu0 0.0
        %3809 = vmatprep.subr.mxu0 0.0
        %3810 = vmatpush1.msra.mxu0 0.0
        %3811 = vmatprep.subr.mxu0 0.0
        %3812 = vmatpush1.msra.mxu0 0.0
        %3813 = vmatprep.subr.mxu0 0.0
        %3814 = vmatpush1.msra.mxu0 0.0
        %3815 = vmatprep.subr.mxu0 0.0
        %3816 = vmatpush1.msra.mxu0 0.0
        %3817 = vmatprep.subr.mxu0 0.0
        %3818 = vmatpush1.msra.mxu0 0.0
        %3819 = vmatprep.subr.mxu0 0.0
        %3820 = vmatpush1.msra.mxu0 0.0
        %3821 = vmatprep.mubr.f32.mxu0 0.0
        %3822 = vmatmul.mubr.f32.gmra.mrb[0].mxu0 %v1057
        %v3823 = vpop.f32.mrb[0].mxu0
        %v3824 = vadd.f32 %v922, %v3823
        %v3825 = vpop.f32.mrb[0].mxu0
        %v3826 = vadd.f32 %v926, %v3825
        %3827 = vdwg.mxu0
        %3828 = vmatprep.subr.mxu0 %v320
        %3829 = vmatpush1.msra.mxu0 %v319
        %3830 = vmatprep.subr.mxu0 %v408
        %3831 = vmatpush1.msra.mxu0 %v407
        %3832 = vmatprep.subr.mxu0 %v496
        %3833 = vmatpush1.msra.mxu0 %v495
        %3834 = vmatprep.subr.mxu0 %v584
        %3835 = vmatpush1.msra.mxu0 %v583
        %3836 = vmatprep.subr.mxu0 0.0
        %3837 = vmatpush1.msra.mxu0 0.0
        %3838 = vmatprep.subr.mxu0 0.0
        %3839 = vmatpush1.msra.mxu0 0.0
        %3840 = vmatprep.subr.mxu0 0.0
        %3841 = vmatpush1.msra.mxu0 0.0
        %3842 = vmatprep.subr.mxu0 0.0
        %3843 = vmatpush1.msra.mxu0 0.0
        %3844 = vmatprep.subr.mxu0 0.0
        %3845 = vmatpush1.msra.mxu0 0.0
        %3846 = vmatprep.subr.mxu0 0.0
        %3847 = vmatpush1.msra.mxu0 0.0
        %3848 = vmatprep.subr.mxu0 0.0
        %3849 = vmatpush1.msra.mxu0 0.0
        %3850 = vmatprep.subr.mxu0 0.0
        %3851 = vmatpush1.msra.mxu0 0.0
        %3852 = vmatprep.subr.mxu0 0.0
        %3853 = vmatpush1.msra.mxu0 0.0
        %3854 = vmatprep.subr.mxu0 0.0
        %3855 = vmatpush1.msra.mxu0 0.0
        %3856 = vmatprep.subr.mxu0 0.0
        %3857 = vmatpush1.msra.mxu0 0.0
        %3858 = vmatprep.subr.mxu0 0.0
        %3859 = vmatpush1.msra.mxu0 0.0
        %3860 = vmatprep.subr.mxu0 0.0
        %3861 = vmatpush1.msra.mxu0 0.0
        %3862 = vmatprep.subr.mxu0 0.0
        %3863 = vmatpush1.msra.mxu0 0.0
        %3864 = vmatprep.subr.mxu0 0.0
        %3865 = vmatpush1.msra.mxu0 0.0
        %3866 = vmatprep.subr.mxu0 0.0
        %3867 = vmatpush1.msra.mxu0 0.0
        %3868 = vmatprep.subr.mxu0 0.0
        %3869 = vmatpush1.msra.mxu0 0.0
        %3870 = vmatprep.subr.mxu0 0.0
        %3871 = vmatpush1.msra.mxu0 0.0
        %3872 = vmatprep.subr.mxu0 0.0
        %3873 = vmatpush1.msra.mxu0 0.0
        %3874 = vmatprep.subr.mxu0 0.0
        %3875 = vmatpush1.msra.mxu0 0.0
        %3876 = vmatprep.subr.mxu0 0.0
        %3877 = vmatpush1.msra.mxu0 0.0
        %3878 = vmatprep.subr.mxu0 0.0
        %3879 = vmatpush1.msra.mxu0 0.0
        %3880 = vmatprep.subr.mxu0 0.0
        %3881 = vmatpush1.msra.mxu0 0.0
        %3882 = vmatprep.subr.mxu0 0.0
        %3883 = vmatpush1.msra.mxu0 0.0
        %3884 = vmatprep.subr.mxu0 0.0
        %3885 = vmatpush1.msra.mxu0 0.0
        %3886 = vmatprep.subr.mxu0 0.0
        %3887 = vmatpush1.msra.mxu0 0.0
        %3888 = vmatprep.subr.mxu0 0.0
        %3889 = vmatpush1.msra.mxu0 0.0
        %3890 = vmatprep.subr.mxu0 0.0
        %3891 = vmatpush1.msra.mxu0 0.0
        %3892 = vmatprep.mubr.f32.mxu0 0.0
        %3893 = vmatmul.mubr.f32.gmra.mrb[0].mxu0 %v1057
        %v3894 = vpop.f32.mrb[0].mxu0
        %v3895 = vadd.f32 %v930, %v3894
        %v3896 = vpop.f32.mrb[0].mxu0
        %v3897 = vadd.f32 %v934, %v3896
        %3898 = vdwg.mxu0
        %3899 = vmatprep.subr.mxu0 %v322
        %3900 = vmatpush1.msra.mxu0 %v321
        %3901 = vmatprep.subr.mxu0 %v410
        %3902 = vmatpush1.msra.mxu0 %v409
        %3903 = vmatprep.subr.mxu0 %v498
        %3904 = vmatpush1.msra.mxu0 %v497
        %3905 = vmatprep.subr.mxu0 %v586
        %3906 = vmatpush1.msra.mxu0 %v585
        %3907 = vmatprep.subr.mxu0 0.0
        %3908 = vmatpush1.msra.mxu0 0.0
        %3909 = vmatprep.subr.mxu0 0.0
        %3910 = vmatpush1.msra.mxu0 0.0
        %3911 = vmatprep.subr.mxu0 0.0
        %3912 = vmatpush1.msra.mxu0 0.0
        %3913 = vmatprep.subr.mxu0 0.0
        %3914 = vmatpush1.msra.mxu0 0.0
        %3915 = vmatprep.subr.mxu0 0.0
        %3916 = vmatpush1.msra.mxu0 0.0
        %3917 = vmatprep.subr.mxu0 0.0
        %3918 = vmatpush1.msra.mxu0 0.0
        %3919 = vmatprep.subr.mxu0 0.0
        %3920 = vmatpush1.msra.mxu0 0.0
        %3921 = vmatprep.subr.mxu0 0.0
        %3922 = vmatpush1.msra.mxu0 0.0
        %3923 = vmatprep.subr.mxu0 0.0
        %3924 = vmatpush1.msra.mxu0 0.0
        %3925 = vmatprep.subr.mxu0 0.0
        %3926 = vmatpush1.msra.mxu0 0.0
        %3927 = vmatprep.subr.mxu0 0.0
        %3928 = vmatpush1.msra.mxu0 0.0
        %3929 = vmatprep.subr.mxu0 0.0
        %3930 = vmatpush1.msra.mxu0 0.0
        %3931 = vmatprep.subr.mxu0 0.0
        %3932 = vmatpush1.msra.mxu0 0.0
        %3933 = vmatprep.subr.mxu0 0.0
        %3934 = vmatpush1.msra.mxu0 0.0
        %3935 = vmatprep.subr.mxu0 0.0
        %3936 = vmatpush1.msra.mxu0 0.0
        %3937 = vmatprep.subr.mxu0 0.0
        %3938 = vmatpush1.msra.mxu0 0.0
        %3939 = vmatprep.subr.mxu0 0.0
        %3940 = vmatpush1.msra.mxu0 0.0
        %3941 = vmatprep.subr.mxu0 0.0
        %3942 = vmatpush1.msra.mxu0 0.0
        %3943 = vmatprep.subr.mxu0 0.0
        %3944 = vmatpush1.msra.mxu0 0.0
        %3945 = vmatprep.subr.mxu0 0.0
        %3946 = vmatpush1.msra.mxu0 0.0
        %3947 = vmatprep.subr.mxu0 0.0
        %3948 = vmatpush1.msra.mxu0 0.0
        %3949 = vmatprep.subr.mxu0 0.0
        %3950 = vmatpush1.msra.mxu0 0.0
        %3951 = vmatprep.subr.mxu0 0.0
        %3952 = vmatpush1.msra.mxu0 0.0
        %3953 = vmatprep.subr.mxu0 0.0
        %3954 = vmatpush1.msra.mxu0 0.0
        %3955 = vmatprep.subr.mxu0 0.0
        %3956 = vmatpush1.msra.mxu0 0.0
        %3957 = vmatprep.subr.mxu0 0.0
        %3958 = vmatpush1.msra.mxu0 0.0
        %3959 = vmatprep.subr.mxu0 0.0
        %3960 = vmatpush1.msra.mxu0 0.0
        %3961 = vmatprep.subr.mxu0 0.0
        %3962 = vmatpush1.msra.mxu0 0.0
        %3963 = vmatprep.mubr.f32.mxu0 0.0
        %3964 = vmatmul.mubr.f32.gmra.mrb[0].mxu0 %v1057
        %v3965 = vpop.f32.mrb[0].mxu0
        %v3966 = vadd.f32 %v938, %v3965
        %v3967 = vpop.f32.mrb[0].mxu0
        %v3968 = vadd.f32 %v942, %v3967
        %3969 = vdwg.mxu0
        %3970 = vmatprep.subr.mxu0 %v324
        %3971 = vmatpush1.msra.mxu0 %v323
        %3972 = vmatprep.subr.mxu0 %v412
        %3973 = vmatpush1.msra.mxu0 %v411
        %3974 = vmatprep.subr.mxu0 %v500
        %3975 = vmatpush1.msra.mxu0 %v499
        %3976 = vmatprep.subr.mxu0 %v588
        %3977 = vmatpush1.msra.mxu0 %v587
        %3978 = vmatprep.subr.mxu0 0.0
        %3979 = vmatpush1.msra.mxu0 0.0
        %3980 = vmatprep.subr.mxu0 0.0
        %3981 = vmatpush1.msra.mxu0 0.0
        %3982 = vmatprep.subr.mxu0 0.0
        %3983 = vmatpush1.msra.mxu0 0.0
        %3984 = vmatprep.subr.mxu0 0.0
        %3985 = vmatpush1.msra.mxu0 0.0
        %3986 = vmatprep.subr.mxu0 0.0
        %3987 = vmatpush1.msra.mxu0 0.0
        %3988 = vmatprep.subr.mxu0 0.0
        %3989 = vmatpush1.msra.mxu0 0.0
        %3990 = vmatprep.subr.mxu0 0.0
        %3991 = vmatpush1.msra.mxu0 0.0
        %3992 = vmatprep.subr.mxu0 0.0
        %3993 = vmatpush1.msra.mxu0 0.0
        %3994 = vmatprep.subr.mxu0 0.0
        %3995 = vmatpush1.msra.mxu0 0.0
        %3996 = vmatprep.subr.mxu0 0.0
        %3997 = vmatpush1.msra.mxu0 0.0
        %3998 = vmatprep.subr.mxu0 0.0
        %3999 = vmatpush1.msra.mxu0 0.0
        %4000 = vmatprep.subr.mxu0 0.0
        %4001 = vmatpush1.msra.mxu0 0.0
        %4002 = vmatprep.subr.mxu0 0.0
        %4003 = vmatpush1.msra.mxu0 0.0
        %4004 = vmatprep.subr.mxu0 0.0
        %4005 = vmatpush1.msra.mxu0 0.0
        %4006 = vmatprep.subr.mxu0 0.0
        %4007 = vmatpush1.msra.mxu0 0.0
        %4008 = vmatprep.subr.mxu0 0.0
        %4009 = vmatpush1.msra.mxu0 0.0
        %4010 = vmatprep.subr.mxu0 0.0
        %4011 = vmatpush1.msra.mxu0 0.0
        %4012 = vmatprep.subr.mxu0 0.0
        %4013 = vmatpush1.msra.mxu0 0.0
        %4014 = vmatprep.subr.mxu0 0.0
        %4015 = vmatpush1.msra.mxu0 0.0
        %4016 = vmatprep.subr.mxu0 0.0
        %4017 = vmatpush1.msra.mxu0 0.0
        %4018 = vmatprep.subr.mxu0 0.0
        %4019 = vmatpush1.msra.mxu0 0.0
        %4020 = vmatprep.subr.mxu0 0.0
        %4021 = vmatpush1.msra.mxu0 0.0
        %4022 = vmatprep.subr.mxu0 0.0
        %4023 = vmatpush1.msra.mxu0 0.0
        %4024 = vmatprep.subr.mxu0 0.0
        %4025 = vmatpush1.msra.mxu0 0.0
        %4026 = vmatprep.subr.mxu0 0.0
        %4027 = vmatpush1.msra.mxu0 0.0
        %4028 = vmatprep.subr.mxu0 0.0
        %4029 = vmatpush1.msra.mxu0 0.0
        %4030 = vmatprep.subr.mxu0 0.0
        %4031 = vmatpush1.msra.mxu0 0.0
        %4032 = vmatprep.subr.mxu0 0.0
        %4033 = vmatpush1.msra.mxu0 0.0
        %4034 = vmatprep.mubr.f32.mxu0 0.0
        %4035 = vmatmul.mubr.f32.gmra.mrb[0].mxu0 %v1057
        %v4036 = vpop.f32.mrb[0].mxu0
        %v4037 = vadd.f32 %v946, %v4036
        %v4038 = vpop.f32.mrb[0].mxu0
        %v4039 = vadd.f32 %v950, %v4038
        %4040 = vdwg.mxu0
        %4041 = vmatprep.subr.mxu0 %v326
        %4042 = vmatpush1.msra.mxu0 %v325
        %4043 = vmatprep.subr.mxu0 %v414
        %4044 = vmatpush1.msra.mxu0 %v413
        %4045 = vmatprep.subr.mxu0 %v502
        %4046 = vmatpush1.msra.mxu0 %v501
        %4047 = vmatprep.subr.mxu0 %v590
        %4048 = vmatpush1.msra.mxu0 %v589
        %4049 = vmatprep.subr.mxu0 0.0
        %4050 = vmatpush1.msra.mxu0 0.0
        %4051 = vmatprep.subr.mxu0 0.0
        %4052 = vmatpush1.msra.mxu0 0.0
        %4053 = vmatprep.subr.mxu0 0.0
        %4054 = vmatpush1.msra.mxu0 0.0
        %4055 = vmatprep.subr.mxu0 0.0
        %4056 = vmatpush1.msra.mxu0 0.0
        %4057 = vmatprep.subr.mxu0 0.0
        %4058 = vmatpush1.msra.mxu0 0.0
        %4059 = vmatprep.subr.mxu0 0.0
        %4060 = vmatpush1.msra.mxu0 0.0
        %4061 = vmatprep.subr.mxu0 0.0
        %4062 = vmatpush1.msra.mxu0 0.0
        %4063 = vmatprep.subr.mxu0 0.0
        %4064 = vmatpush1.msra.mxu0 0.0
        %4065 = vmatprep.subr.mxu0 0.0
        %4066 = vmatpush1.msra.mxu0 0.0
        %4067 = vmatprep.subr.mxu0 0.0
        %4068 = vmatpush1.msra.mxu0 0.0
        %4069 = vmatprep.subr.mxu0 0.0
        %4070 = vmatpush1.msra.mxu0 0.0
        %4071 = vmatprep.subr.mxu0 0.0
        %4072 = vmatpush1.msra.mxu0 0.0
        %4073 = vmatprep.subr.mxu0 0.0
        %4074 = vmatpush1.msra.mxu0 0.0
        %4075 = vmatprep.subr.mxu0 0.0
        %4076 = vmatpush1.msra.mxu0 0.0
        %4077 = vmatprep.subr.mxu0 0.0
        %4078 = vmatpush1.msra.mxu0 0.0
        %4079 = vmatprep.subr.mxu0 0.0
        %4080 = vmatpush1.msra.mxu0 0.0
        %4081 = vmatprep.subr.mxu0 0.0
        %4082 = vmatpush1.msra.mxu0 0.0
        %4083 = vmatprep.subr.mxu0 0.0
        %4084 = vmatpush1.msra.mxu0 0.0
        %4085 = vmatprep.subr.mxu0 0.0
        %4086 = vmatpush1.msra.mxu0 0.0
        %4087 = vmatprep.subr.mxu0 0.0
        %4088 = vmatpush1.msra.mxu0 0.0
        %4089 = vmatprep.subr.mxu0 0.0
        %4090 = vmatpush1.msra.mxu0 0.0
        %4091 = vmatprep.subr.mxu0 0.0
        %4092 = vmatpush1.msra.mxu0 0.0
        %4093 = vmatprep.subr.mxu0 0.0
        %4094 = vmatpush1.msra.mxu0 0.0
        %4095 = vmatprep.subr.mxu0 0.0
        %4096 = vmatpush1.msra.mxu0 0.0
        %4097 = vmatprep.subr.mxu0 0.0
        %4098 = vmatpush1.msra.mxu0 0.0
        %4099 = vmatprep.subr.mxu0 0.0
        %4100 = vmatpush1.msra.mxu0 0.0
        %4101 = vmatprep.subr.mxu0 0.0
        %4102 = vmatpush1.msra.mxu0 0.0
        %4103 = vmatprep.subr.mxu0 0.0
        %4104 = vmatpush1.msra.mxu0 0.0
        %4105 = vmatprep.mubr.f32.mxu0 0.0
        %4106 = vmatmul.mubr.f32.gmra.mrb[0].mxu0 %v1057
        %v4107 = vpop.f32.mrb[0].mxu0
        %v4108 = vadd.f32 %v954, %v4107
        %v4109 = vpop.f32.mrb[0].mxu0
        %v4110 = vadd.f32 %v958, %v4109
        %4111 = vdwg.mxu0
        %4112 = vmatprep.subr.mxu0 %v328
        %4113 = vmatpush1.msra.mxu0 %v327
        %4114 = vmatprep.subr.mxu0 %v416
        %4115 = vmatpush1.msra.mxu0 %v415
        %4116 = vmatprep.subr.mxu0 %v504
        %4117 = vmatpush1.msra.mxu0 %v503
        %4118 = vmatprep.subr.mxu0 %v592
        %4119 = vmatpush1.msra.mxu0 %v591
        %4120 = vmatprep.subr.mxu0 0.0
        %4121 = vmatpush1.msra.mxu0 0.0
        %4122 = vmatprep.subr.mxu0 0.0
        %4123 = vmatpush1.msra.mxu0 0.0
        %4124 = vmatprep.subr.mxu0 0.0
        %4125 = vmatpush1.msra.mxu0 0.0
        %4126 = vmatprep.subr.mxu0 0.0
        %4127 = vmatpush1.msra.mxu0 0.0
        %4128 = vmatprep.subr.mxu0 0.0
        %4129 = vmatpush1.msra.mxu0 0.0
        %4130 = vmatprep.subr.mxu0 0.0
        %4131 = vmatpush1.msra.mxu0 0.0
        %4132 = vmatprep.subr.mxu0 0.0
        %4133 = vmatpush1.msra.mxu0 0.0
        %4134 = vmatprep.subr.mxu0 0.0
        %4135 = vmatpush1.msra.mxu0 0.0
        %4136 = vmatprep.subr.mxu0 0.0
        %4137 = vmatpush1.msra.mxu0 0.0
        %4138 = vmatprep.subr.mxu0 0.0
        %4139 = vmatpush1.msra.mxu0 0.0
        %4140 = vmatprep.subr.mxu0 0.0
        %4141 = vmatpush1.msra.mxu0 0.0
        %4142 = vmatprep.subr.mxu0 0.0
        %4143 = vmatpush1.msra.mxu0 0.0
        %4144 = vmatprep.subr.mxu0 0.0
        %4145 = vmatpush1.msra.mxu0 0.0
        %4146 = vmatprep.subr.mxu0 0.0
        %4147 = vmatpush1.msra.mxu0 0.0
        %4148 = vmatprep.subr.mxu0 0.0
        %4149 = vmatpush1.msra.mxu0 0.0
        %4150 = vmatprep.subr.mxu0 0.0
        %4151 = vmatpush1.msra.mxu0 0.0
        %4152 = vmatprep.subr.mxu0 0.0
        %4153 = vmatpush1.msra.mxu0 0.0
        %4154 = vmatprep.subr.mxu0 0.0
        %4155 = vmatpush1.msra.mxu0 0.0
        %4156 = vmatprep.subr.mxu0 0.0
        %4157 = vmatpush1.msra.mxu0 0.0
        %4158 = vmatprep.subr.mxu0 0.0
        %4159 = vmatpush1.msra.mxu0 0.0
        %4160 = vmatprep.subr.mxu0 0.0
        %4161 = vmatpush1.msra.mxu0 0.0
        %4162 = vmatprep.subr.mxu0 0.0
        %4163 = vmatpush1.msra.mxu0 0.0
        %4164 = vmatprep.subr.mxu0 0.0
        %4165 = vmatpush1.msra.mxu0 0.0
        %4166 = vmatprep.subr.mxu0 0.0
        %4167 = vmatpush1.msra.mxu0 0.0
        %4168 = vmatprep.subr.mxu0 0.0
        %4169 = vmatpush1.msra.mxu0 0.0
        %4170 = vmatprep.subr.mxu0 0.0
        %4171 = vmatpush1.msra.mxu0 0.0
        %4172 = vmatprep.subr.mxu0 0.0
        %4173 = vmatpush1.msra.mxu0 0.0
        %4174 = vmatprep.subr.mxu0 0.0
        %4175 = vmatpush1.msra.mxu0 0.0
        %4176 = vmatprep.mubr.f32.mxu0 0.0
        %4177 = vmatmul.mubr.f32.gmra.mrb[0].mxu0 %v1057
        %v4178 = vpop.f32.mrb[0].mxu0
        %v4179 = vadd.f32 %v962, %v4178
        %v4180 = vpop.f32.mrb[0].mxu0
        %v4181 = vadd.f32 %v966, %v4180
        %4182 = vdwg.mxu0
        %v4183 = vmax.f32 %v1126, 0.0
        %v4184 = vmax.f32 %v1128, 0.0
        %v4185 = vmax.f32 %v1197, 0.0
        %v4186 = vmax.f32 %v1199, 0.0
        %v4187 = vmax.f32 %v1268, 0.0
        %v4188 = vmax.f32 %v1270, 0.0
        %v4189 = vmax.f32 %v1339, 0.0
        %v4190 = vmax.f32 %v1341, 0.0
        %v4191 = vmax.f32 %v1410, 0.0
        %v4192 = vmax.f32 %v1412, 0.0
        %v4193 = vmax.f32 %v1481, 0.0
        %v4194 = vmax.f32 %v1483, 0.0
        %v4195 = vmax.f32 %v1552, 0.0
        %v4196 = vmax.f32 %v1554, 0.0
        %v4197 = vmax.f32 %v1623, 0.0
        %v4198 = vmax.f32 %v1625, 0.0
        %v4199 = vmax.f32 %v1694, 0.0
        %v4200 = vmax.f32 %v1696, 0.0
        %v4201 = vmax.f32 %v1765, 0.0
        %v4202 = vmax.f32 %v1767, 0.0
        %v4203 = vmax.f32 %v1836, 0.0
        %v4204 = vmax.f32 %v1838, 0.0
        %v4205 = vmax.f32 %v1907, 0.0
        %v4206 = vmax.f32 %v1909, 0.0
        %v4207 = vmax.f32 %v1978, 0.0
        %v4208 = vmax.f32 %v1980, 0.0
        %v4209 = vmax.f32 %v2049, 0.0
        %v4210 = vmax.f32 %v2051, 0.0
        %v4211 = vmax.f32 %v2120, 0.0
        %v4212 = vmax.f32 %v2122, 0.0
        %v4213 = vmax.f32 %v2191, 0.0
        %v4214 = vmax.f32 %v2193, 0.0
        %v4215 = vmax.f32 %v2262, 0.0
        %v4216 = vmax.f32 %v2264, 0.0
        %v4217 = vmax.f32 %v2333, 0.0
        %v4218 = vmax.f32 %v2335, 0.0
        %v4219 = vmax.f32 %v2404, 0.0
        %v4220 = vmax.f32 %v2406, 0.0
        %v4221 = vmax.f32 %v2475, 0.0
        %v4222 = vmax.f32 %v2477, 0.0
        %v4223 = vmax.f32 %v2546, 0.0
        %v4224 = vmax.f32 %v2548, 0.0
        %v4225 = vmax.f32 %v2617, 0.0
        %v4226 = vmax.f32 %v2619, 0.0
        %v4227 = vmax.f32 %v2688, 0.0
        %v4228 = vmax.f32 %v2690, 0.0
        %v4229 = vmax.f32 %v2759, 0.0
        %v4230 = vmax.f32 %v2761, 0.0
        %v4231 = vmax.f32 %v2830, 0.0
        %v4232 = vmax.f32 %v2832, 0.0
        %v4233 = vmax.f32 %v2901, 0.0
        %v4234 = vmax.f32 %v2903, 0.0
        %v4235 = vmax.f32 %v2972, 0.0
        %v4236 = vmax.f32 %v2974, 0.0
        %v4237 = vmax.f32 %v3043, 0.0
        %v4238 = vmax.f32 %v3045, 0.0
        %v4239 = vmax.f32 %v3114, 0.0
        %v4240 = vmax.f32 %v3116, 0.0
        %v4241 = vmax.f32 %v3185, 0.0
        %v4242 = vmax.f32 %v3187, 0.0
        %v4243 = vmax.f32 %v3256, 0.0
        %v4244 = vmax.f32 %v3258, 0.0
        %v4245 = vmax.f32 %v3327, 0.0
        %v4246 = vmax.f32 %v3329, 0.0
        %v4247 = vmax.f32 %v3398, 0.0
        %v4248 = vmax.f32 %v3400, 0.0
        %v4249 = vmax.f32 %v3469, 0.0
        %v4250 = vmax.f32 %v3471, 0.0
        %v4251 = vmax.f32 %v3540, 0.0
        %v4252 = vmax.f32 %v3542, 0.0
        %v4253 = vmax.f32 %v3611, 0.0
        %v4254 = vmax.f32 %v3613, 0.0
        %v4255 = vmax.f32 %v3682, 0.0
        %v4256 = vmax.f32 %v3684, 0.0
        %v4257 = vmax.f32 %v3753, 0.0
        %v4258 = vmax.f32 %v3755, 0.0
        %v4259 = vmax.f32 %v3824, 0.0
        %v4260 = vmax.f32 %v3826, 0.0
        %v4261 = vmax.f32 %v3895, 0.0
        %v4262 = vmax.f32 %v3897, 0.0
        %v4263 = vmax.f32 %v3966, 0.0
        %v4264 = vmax.f32 %v3968, 0.0
        %v4265 = vmax.f32 %v4037, 0.0
        %v4266 = vmax.f32 %v4039, 0.0
        %v4267 = vmax.f32 %v4108, 0.0
        %v4268 = vmax.f32 %v4110, 0.0
        %v4269 = vmax.f32 %v4179, 0.0
        %v4270 = vmax.f32 %v4181, 0.0
        %v4271 = vmin.f32 %v4183, 0.0
        %v4272 = vmin.f32 %v4184, 0.0
        %v4273 = vmin.f32 %v4185, 0.0
        %v4274 = vmin.f32 %v4186, 0.0
        %v4275 = vmin.f32 %v4187, 0.0
        %v4276 = vmin.f32 %v4188, 0.0
        %v4277 = vmin.f32 %v4189, 0.0
        %v4278 = vmin.f32 %v4190, 0.0
        %v4279 = vmin.f32 %v4191, 0.0
        %v4280 = vmin.f32 %v4192, 0.0
        %v4281 = vmin.f32 %v4193, 0.0
        %v4282 = vmin.f32 %v4194, 0.0
        %v4283 = vmin.f32 %v4195, 0.0
        %v4284 = vmin.f32 %v4196, 0.0
        %v4285 = vmin.f32 %v4197, 0.0
        %v4286 = vmin.f32 %v4198, 0.0
        %v4287 = vmin.f32 %v4199, 0.0
        %v4288 = vmin.f32 %v4200, 0.0
        %v4289 = vmin.f32 %v4201, 0.0
        %v4290 = vmin.f32 %v4202, 0.0
        %v4291 = vmin.f32 %v4203, 0.0
        %v4292 = vmin.f32 %v4204, 0.0
        %v4293 = vmin.f32 %v4205, 0.0
        %v4294 = vmin.f32 %v4206, 0.0
        %v4295 = vmin.f32 %v4207, 0.0
        %v4296 = vmin.f32 %v4208, 0.0
        %v4297 = vmin.f32 %v4209, 0.0
        %v4298 = vmin.f32 %v4210, 0.0
        %v4299 = vmin.f32 %v4211, 0.0
        %v4300 = vmin.f32 %v4212, 0.0
        %v4301 = vmin.f32 %v4213, 0.0
        %v4302 = vmin.f32 %v4214, 0.0
        %v4303 = vmin.f32 %v4215, 0.0
        %v4304 = vmin.f32 %v4216, 0.0
        %v4305 = vmin.f32 %v4217, 0.0
        %v4306 = vmin.f32 %v4218, 0.0
        %v4307 = vmin.f32 %v4219, 0.0
        %v4308 = vmin.f32 %v4220, 0.0
        %v4309 = vmin.f32 %v4221, 0.0
        %v4310 = vmin.f32 %v4222, 0.0
        %v4311 = vmin.f32 %v4223, 0.0
        %v4312 = vmin.f32 %v4224, 0.0
        %v4313 = vmin.f32 %v4225, 0.0
        %v4314 = vmin.f32 %v4226, 0.0
        %v4315 = vmin.f32 %v4227, 0.0
        %v4316 = vmin.f32 %v4228, 0.0
        %v4317 = vmin.f32 %v4229, 0.0
        %v4318 = vmin.f32 %v4230, 0.0
        %v4319 = vmin.f32 %v4231, 0.0
        %v4320 = vmin.f32 %v4232, 0.0
        %v4321 = vmin.f32 %v4233, 0.0
        %v4322 = vmin.f32 %v4234, 0.0
        %v4323 = vmin.f32 %v4235, 0.0
        %v4324 = vmin.f32 %v4236, 0.0
        %v4325 = vmin.f32 %v4237, 0.0
        %v4326 = vmin.f32 %v4238, 0.0
        %v4327 = vmin.f32 %v4239, 0.0
        %v4328 = vmin.f32 %v4240, 0.0
        %v4329 = vmin.f32 %v4241, 0.0
        %v4330 = vmin.f32 %v4242, 0.0
        %v4331 = vmin.f32 %v4243, 0.0
        %v4332 = vmin.f32 %v4244, 0.0
        %v4333 = vmin.f32 %v4245, 0.0
        %v4334 = vmin.f32 %v4246, 0.0
        %v4335 = vmin.f32 %v4247, 0.0
        %v4336 = vmin.f32 %v4248, 0.0
        %v4337 = vmin.f32 %v4249, 0.0
        %v4338 = vmin.f32 %v4250, 0.0
        %v4339 = vmin.f32 %v4251, 0.0
        %v4340 = vmin.f32 %v4252, 0.0
        %v4341 = vmin.f32 %v4253, 0.0
        %v4342 = vmin.f32 %v4254, 0.0
        %v4343 = vmin.f32 %v4255, 0.0
        %v4344 = vmin.f32 %v4256, 0.0
        %v4345 = vmin.f32 %v4257, 0.0
        %v4346 = vmin.f32 %v4258, 0.0
        %v4347 = vmin.f32 %v4259, 0.0
        %v4348 = vmin.f32 %v4260, 0.0
        %v4349 = vmin.f32 %v4261, 0.0
        %v4350 = vmin.f32 %v4262, 0.0
        %v4351 = vmin.f32 %v4263, 0.0
        %v4352 = vmin.f32 %v4264, 0.0
        %v4353 = vmin.f32 %v4265, 0.0
        %v4354 = vmin.f32 %v4266, 0.0
        %v4355 = vmin.f32 %v4267, 0.0
        %v4356 = vmin.f32 %v4268, 0.0
        %v4357 = vmin.f32 %v4269, 0.0
        %v4358 = vmin.f32 %v4270, 0.0
        %v4447 = vcombine.low %v4271, %v4272
        %v4448 = vcombine.low %v4273, %v4274
        %v4449 = vcombine.low %v4275, %v4276
        %v4450 = vcombine.low %v4277, %v4278
        %v4452 = vunpack.c.l.s4 1966171168
        %v4453 = vunpack.c.0.s8 %v4452
        %v4454 = vlaneseq
        %v4455 = vshrl.u32 %v4454, 7
        %v4456 = vsub.s32 %v4453, %v4455
        %v4457 = vrot.slane %v4447, %v4456
        %v4459 = vunpack.c.l.s4 1966171168
        %v4460 = vunpack.c.0.s8 %v4459
        %v4461 = vlaneseq
        %v4462 = vshrl.u32 %v4461, 7
        %v4463 = vsub.s32 %v4460, %v4462
        %v4464 = vrot.slane %v4448, %v4463
        %v4466 = vunpack.c.l.s4 1966171168
        %v4467 = vunpack.c.0.s8 %v4466
        %v4468 = vlaneseq
        %v4469 = vshrl.u32 %v4468, 7
        %v4470 = vsub.s32 %v4467, %v4469
        %v4471 = vrot.slane %v4449, %v4470
        %v4473 = vunpack.c.l.s4 1966171168
        %v4474 = vunpack.c.0.s8 %v4473
        %v4475 = vlaneseq
        %v4476 = vshrl.u32 %v4475, 7
        %v4477 = vsub.s32 %v4474, %v4476
        %v4478 = vrot.slane %v4450, %v4477
        %v4479 = vcombine.low %v4457, %v4464
        %v4480 = vcombine.low %v4471, %v4478
        %v4482 = vunpack.c.l.s4 1966171168
        %v4483 = vunpack.c.0.s8 %v4482
        %v4484 = vlaneseq
        %v4485 = vshrl.u32 %v4484, 7
        %v4486 = vsub.s32 %v4483, %v4485
        %v4487 = vrot.slane %v4479, %v4486
        %v4489 = vunpack.c.l.s4 1966171168
        %v4490 = vunpack.c.0.s8 %v4489
        %v4491 = vlaneseq
        %v4492 = vshrl.u32 %v4491, 7
        %v4493 = vsub.s32 %v4490, %v4492
        %v4494 = vrot.slane %v4480, %v4493
        %v4495 = vcombine.low %v4487, %v4494
        %v4496 = vcombine.low %v4279, %v4280
        %v4497 = vcombine.low %v4281, %v4282
        %v4498 = vcombine.low %v4283, %v4284
        %v4499 = vcombine.low %v4285, %v4286
        %v4501 = vunpack.c.l.s4 1966171168
        %v4502 = vunpack.c.0.s8 %v4501
        %v4503 = vlaneseq
        %v4504 = vshrl.u32 %v4503, 7
        %v4505 = vsub.s32 %v4502, %v4504
        %v4506 = vrot.slane %v4496, %v4505
        %v4508 = vunpack.c.l.s4 1966171168
        %v4509 = vunpack.c.0.s8 %v4508
        %v4510 = vlaneseq
        %v4511 = vshrl.u32 %v4510, 7
        %v4512 = vsub.s32 %v4509, %v4511
        %v4513 = vrot.slane %v4497, %v4512
        %v4515 = vunpack.c.l.s4 1966171168
        %v4516 = vunpack.c.0.s8 %v4515
        %v4517 = vlaneseq
        %v4518 = vshrl.u32 %v4517, 7
        %v4519 = vsub.s32 %v4516, %v4518
        %v4520 = vrot.slane %v4498, %v4519
        %v4522 = vunpack.c.l.s4 1966171168
        %v4523 = vunpack.c.0.s8 %v4522
        %v4524 = vlaneseq
        %v4525 = vshrl.u32 %v4524, 7
        %v4526 = vsub.s32 %v4523, %v4525
        %v4527 = vrot.slane %v4499, %v4526
        %v4528 = vcombine.low %v4506, %v4513
        %v4529 = vcombine.low %v4520, %v4527
        %v4531 = vunpack.c.l.s4 1966171168
        %v4532 = vunpack.c.0.s8 %v4531
        %v4533 = vlaneseq
        %v4534 = vshrl.u32 %v4533, 7
        %v4535 = vsub.s32 %v4532, %v4534
        %v4536 = vrot.slane %v4528, %v4535
        %v4538 = vunpack.c.l.s4 1966171168
        %v4539 = vunpack.c.0.s8 %v4538
        %v4540 = vlaneseq
        %v4541 = vshrl.u32 %v4540, 7
        %v4542 = vsub.s32 %v4539, %v4541
        %v4543 = vrot.slane %v4529, %v4542
        %v4544 = vcombine.low %v4536, %v4543
        %v4545 = vcombine.low %v4287, %v4288
        %v4546 = vcombine.low %v4289, %v4290
        %v4547 = vcombine.low %v4291, %v4292
        %v4548 = vcombine.low %v4293, %v4294
        %v4550 = vunpack.c.l.s4 1966171168
        %v4551 = vunpack.c.0.s8 %v4550
        %v4552 = vlaneseq
        %v4553 = vshrl.u32 %v4552, 7
        %v4554 = vsub.s32 %v4551, %v4553
        %v4555 = vrot.slane %v4545, %v4554
        %v4557 = vunpack.c.l.s4 1966171168
        %v4558 = vunpack.c.0.s8 %v4557
        %v4559 = vlaneseq
        %v4560 = vshrl.u32 %v4559, 7
        %v4561 = vsub.s32 %v4558, %v4560
        %v4562 = vrot.slane %v4546, %v4561
        %v4564 = vunpack.c.l.s4 1966171168
        %v4565 = vunpack.c.0.s8 %v4564
        %v4566 = vlaneseq
        %v4567 = vshrl.u32 %v4566, 7
        %v4568 = vsub.s32 %v4565, %v4567
        %v4569 = vrot.slane %v4547, %v4568
        %v4571 = vunpack.c.l.s4 1966171168
        %v4572 = vunpack.c.0.s8 %v4571
        %v4573 = vlaneseq
        %v4574 = vshrl.u32 %v4573, 7
        %v4575 = vsub.s32 %v4572, %v4574
        %v4576 = vrot.slane %v4548, %v4575
        %v4577 = vcombine.low %v4555, %v4562
        %v4578 = vcombine.low %v4569, %v4576
        %v4580 = vunpack.c.l.s4 1966171168
        %v4581 = vunpack.c.0.s8 %v4580
        %v4582 = vlaneseq
        %v4583 = vshrl.u32 %v4582, 7
        %v4584 = vsub.s32 %v4581, %v4583
        %v4585 = vrot.slane %v4577, %v4584
        %v4587 = vunpack.c.l.s4 1966171168
        %v4588 = vunpack.c.0.s8 %v4587
        %v4589 = vlaneseq
        %v4590 = vshrl.u32 %v4589, 7
        %v4591 = vsub.s32 %v4588, %v4590
        %v4592 = vrot.slane %v4578, %v4591
        %v4593 = vcombine.low %v4585, %v4592
        %v4594 = vcombine.low %v4295, %v4296
        %v4595 = vcombine.low %v4297, %v4298
        %v4596 = vcombine.low %v4299, %v4300
        %v4597 = vcombine.low %v4301, %v4302
        %v4599 = vunpack.c.l.s4 1966171168
        %v4600 = vunpack.c.0.s8 %v4599
        %v4601 = vlaneseq
        %v4602 = vshrl.u32 %v4601, 7
        %v4603 = vsub.s32 %v4600, %v4602
        %v4604 = vrot.slane %v4594, %v4603
        %v4606 = vunpack.c.l.s4 1966171168
        %v4607 = vunpack.c.0.s8 %v4606
        %v4608 = vlaneseq
        %v4609 = vshrl.u32 %v4608, 7
        %v4610 = vsub.s32 %v4607, %v4609
        %v4611 = vrot.slane %v4595, %v4610
        %v4613 = vunpack.c.l.s4 1966171168
        %v4614 = vunpack.c.0.s8 %v4613
        %v4615 = vlaneseq
        %v4616 = vshrl.u32 %v4615, 7
        %v4617 = vsub.s32 %v4614, %v4616
        %v4618 = vrot.slane %v4596, %v4617
        %v4620 = vunpack.c.l.s4 1966171168
        %v4621 = vunpack.c.0.s8 %v4620
        %v4622 = vlaneseq
        %v4623 = vshrl.u32 %v4622, 7
        %v4624 = vsub.s32 %v4621, %v4623
        %v4625 = vrot.slane %v4597, %v4624
        %v4626 = vcombine.low %v4604, %v4611
        %v4627 = vcombine.low %v4618, %v4625
        %v4629 = vunpack.c.l.s4 1966171168
        %v4630 = vunpack.c.0.s8 %v4629
        %v4631 = vlaneseq
        %v4632 = vshrl.u32 %v4631, 7
        %v4633 = vsub.s32 %v4630, %v4632
        %v4634 = vrot.slane %v4626, %v4633
        %v4636 = vunpack.c.l.s4 1966171168
        %v4637 = vunpack.c.0.s8 %v4636
        %v4638 = vlaneseq
        %v4639 = vshrl.u32 %v4638, 7
        %v4640 = vsub.s32 %v4637, %v4639
        %v4641 = vrot.slane %v4627, %v4640
        %v4642 = vcombine.low %v4634, %v4641
        %v4643 = vcombine.low %v4303, %v4304
        %v4644 = vcombine.low %v4305, %v4306
        %v4645 = vcombine.low %v4307, %v4308
        %v4646 = vcombine.low %v4309, %v4310
        %v4648 = vunpack.c.l.s4 1966171168
        %v4649 = vunpack.c.0.s8 %v4648
        %v4650 = vlaneseq
        %v4651 = vshrl.u32 %v4650, 7
        %v4652 = vsub.s32 %v4649, %v4651
        %v4653 = vrot.slane %v4643, %v4652
        %v4655 = vunpack.c.l.s4 1966171168
        %v4656 = vunpack.c.0.s8 %v4655
        %v4657 = vlaneseq
        %v4658 = vshrl.u32 %v4657, 7
        %v4659 = vsub.s32 %v4656, %v4658
        %v4660 = vrot.slane %v4644, %v4659
        %v4662 = vunpack.c.l.s4 1966171168
        %v4663 = vunpack.c.0.s8 %v4662
        %v4664 = vlaneseq
        %v4665 = vshrl.u32 %v4664, 7
        %v4666 = vsub.s32 %v4663, %v4665
        %v4667 = vrot.slane %v4645, %v4666
        %v4669 = vunpack.c.l.s4 1966171168
        %v4670 = vunpack.c.0.s8 %v4669
        %v4671 = vlaneseq
        %v4672 = vshrl.u32 %v4671, 7
        %v4673 = vsub.s32 %v4670, %v4672
        %v4674 = vrot.slane %v4646, %v4673
        %v4675 = vcombine.low %v4653, %v4660
        %v4676 = vcombine.low %v4667, %v4674
        %v4678 = vunpack.c.l.s4 1966171168
        %v4679 = vunpack.c.0.s8 %v4678
        %v4680 = vlaneseq
        %v4681 = vshrl.u32 %v4680, 7
        %v4682 = vsub.s32 %v4679, %v4681
        %v4683 = vrot.slane %v4675, %v4682
        %v4685 = vunpack.c.l.s4 1966171168
        %v4686 = vunpack.c.0.s8 %v4685
        %v4687 = vlaneseq
        %v4688 = vshrl.u32 %v4687, 7
        %v4689 = vsub.s32 %v4686, %v4688
        %v4690 = vrot.slane %v4676, %v4689
        %v4691 = vcombine.low %v4683, %v4690
        %v4692 = vcombine.low %v4311, %v4312
        %v4693 = vcombine.low %v4313, %v4314
        %v4694 = vcombine.low %v4315, %v4316
        %v4695 = vcombine.low %v4317, %v4318
        %v4697 = vunpack.c.l.s4 1966171168
        %v4698 = vunpack.c.0.s8 %v4697
        %v4699 = vlaneseq
        %v4700 = vshrl.u32 %v4699, 7
        %v4701 = vsub.s32 %v4698, %v4700
        %v4702 = vrot.slane %v4692, %v4701
        %v4704 = vunpack.c.l.s4 1966171168
        %v4705 = vunpack.c.0.s8 %v4704
        %v4706 = vlaneseq
        %v4707 = vshrl.u32 %v4706, 7
        %v4708 = vsub.s32 %v4705, %v4707
        %v4709 = vrot.slane %v4693, %v4708
        %v4711 = vunpack.c.l.s4 1966171168
        %v4712 = vunpack.c.0.s8 %v4711
        %v4713 = vlaneseq
        %v4714 = vshrl.u32 %v4713, 7
        %v4715 = vsub.s32 %v4712, %v4714
        %v4716 = vrot.slane %v4694, %v4715
        %v4718 = vunpack.c.l.s4 1966171168
        %v4719 = vunpack.c.0.s8 %v4718
        %v4720 = vlaneseq
        %v4721 = vshrl.u32 %v4720, 7
        %v4722 = vsub.s32 %v4719, %v4721
        %v4723 = vrot.slane %v4695, %v4722
        %v4724 = vcombine.low %v4702, %v4709
        %v4725 = vcombine.low %v4716, %v4723
        %v4727 = vunpack.c.l.s4 1966171168
        %v4728 = vunpack.c.0.s8 %v4727
        %v4729 = vlaneseq
        %v4730 = vshrl.u32 %v4729, 7
        %v4731 = vsub.s32 %v4728, %v4730
        %v4732 = vrot.slane %v4724, %v4731
        %v4734 = vunpack.c.l.s4 1966171168
        %v4735 = vunpack.c.0.s8 %v4734
        %v4736 = vlaneseq
        %v4737 = vshrl.u32 %v4736, 7
        %v4738 = vsub.s32 %v4735, %v4737
        %v4739 = vrot.slane %v4725, %v4738
        %v4740 = vcombine.low %v4732, %v4739
        %v4741 = vcombine.low %v4319, %v4320
        %v4742 = vcombine.low %v4321, %v4322
        %v4743 = vcombine.low %v4323, %v4324
        %v4744 = vcombine.low %v4325, %v4326
        %v4746 = vunpack.c.l.s4 1966171168
        %v4747 = vunpack.c.0.s8 %v4746
        %v4748 = vlaneseq
        %v4749 = vshrl.u32 %v4748, 7
        %v4750 = vsub.s32 %v4747, %v4749
        %v4751 = vrot.slane %v4741, %v4750
        %v4753 = vunpack.c.l.s4 1966171168
        %v4754 = vunpack.c.0.s8 %v4753
        %v4755 = vlaneseq
        %v4756 = vshrl.u32 %v4755, 7
        %v4757 = vsub.s32 %v4754, %v4756
        %v4758 = vrot.slane %v4742, %v4757
        %v4760 = vunpack.c.l.s4 1966171168
        %v4761 = vunpack.c.0.s8 %v4760
        %v4762 = vlaneseq
        %v4763 = vshrl.u32 %v4762, 7
        %v4764 = vsub.s32 %v4761, %v4763
        %v4765 = vrot.slane %v4743, %v4764
        %v4767 = vunpack.c.l.s4 1966171168
        %v4768 = vunpack.c.0.s8 %v4767
        %v4769 = vlaneseq
        %v4770 = vshrl.u32 %v4769, 7
        %v4771 = vsub.s32 %v4768, %v4770
        %v4772 = vrot.slane %v4744, %v4771
        %v4773 = vcombine.low %v4751, %v4758
        %v4774 = vcombine.low %v4765, %v4772
        %v4776 = vunpack.c.l.s4 1966171168
        %v4777 = vunpack.c.0.s8 %v4776
        %v4778 = vlaneseq
        %v4779 = vshrl.u32 %v4778, 7
        %v4780 = vsub.s32 %v4777, %v4779
        %v4781 = vrot.slane %v4773, %v4780
        %v4783 = vunpack.c.l.s4 1966171168
        %v4784 = vunpack.c.0.s8 %v4783
        %v4785 = vlaneseq
        %v4786 = vshrl.u32 %v4785, 7
        %v4787 = vsub.s32 %v4784, %v4786
        %v4788 = vrot.slane %v4774, %v4787
        %v4789 = vcombine.low %v4781, %v4788
        %v4790 = vcombine.low %v4327, %v4328
        %v4791 = vcombine.low %v4329, %v4330
        %v4792 = vcombine.low %v4331, %v4332
        %v4793 = vcombine.low %v4333, %v4334
        %v4795 = vunpack.c.l.s4 1966171168
        %v4796 = vunpack.c.0.s8 %v4795
        %v4797 = vlaneseq
        %v4798 = vshrl.u32 %v4797, 7
        %v4799 = vsub.s32 %v4796, %v4798
        %v4800 = vrot.slane %v4790, %v4799
        %v4802 = vunpack.c.l.s4 1966171168
        %v4803 = vunpack.c.0.s8 %v4802
        %v4804 = vlaneseq
        %v4805 = vshrl.u32 %v4804, 7
        %v4806 = vsub.s32 %v4803, %v4805
        %v4807 = vrot.slane %v4791, %v4806
        %v4809 = vunpack.c.l.s4 1966171168
        %v4810 = vunpack.c.0.s8 %v4809
        %v4811 = vlaneseq
        %v4812 = vshrl.u32 %v4811, 7
        %v4813 = vsub.s32 %v4810, %v4812
        %v4814 = vrot.slane %v4792, %v4813
        %v4816 = vunpack.c.l.s4 1966171168
        %v4817 = vunpack.c.0.s8 %v4816
        %v4818 = vlaneseq
        %v4819 = vshrl.u32 %v4818, 7
        %v4820 = vsub.s32 %v4817, %v4819
        %v4821 = vrot.slane %v4793, %v4820
        %v4822 = vcombine.low %v4800, %v4807
        %v4823 = vcombine.low %v4814, %v4821
        %v4825 = vunpack.c.l.s4 1966171168
        %v4826 = vunpack.c.0.s8 %v4825
        %v4827 = vlaneseq
        %v4828 = vshrl.u32 %v4827, 7
        %v4829 = vsub.s32 %v4826, %v4828
        %v4830 = vrot.slane %v4822, %v4829
        %v4832 = vunpack.c.l.s4 1966171168
        %v4833 = vunpack.c.0.s8 %v4832
        %v4834 = vlaneseq
        %v4835 = vshrl.u32 %v4834, 7
        %v4836 = vsub.s32 %v4833, %v4835
        %v4837 = vrot.slane %v4823, %v4836
        %v4838 = vcombine.low %v4830, %v4837
        %v4839 = vcombine.low %v4335, %v4336
        %v4840 = vcombine.low %v4337, %v4338
        %v4841 = vcombine.low %v4339, %v4340
        %v4842 = vcombine.low %v4341, %v4342
        %v4844 = vunpack.c.l.s4 1966171168
        %v4845 = vunpack.c.0.s8 %v4844
        %v4846 = vlaneseq
        %v4847 = vshrl.u32 %v4846, 7
        %v4848 = vsub.s32 %v4845, %v4847
        %v4849 = vrot.slane %v4839, %v4848
        %v4851 = vunpack.c.l.s4 1966171168
        %v4852 = vunpack.c.0.s8 %v4851
        %v4853 = vlaneseq
        %v4854 = vshrl.u32 %v4853, 7
        %v4855 = vsub.s32 %v4852, %v4854
        %v4856 = vrot.slane %v4840, %v4855
        %v4858 = vunpack.c.l.s4 1966171168
        %v4859 = vunpack.c.0.s8 %v4858
        %v4860 = vlaneseq
        %v4861 = vshrl.u32 %v4860, 7
        %v4862 = vsub.s32 %v4859, %v4861
        %v4863 = vrot.slane %v4841, %v4862
        %v4865 = vunpack.c.l.s4 1966171168
        %v4866 = vunpack.c.0.s8 %v4865
        %v4867 = vlaneseq
        %v4868 = vshrl.u32 %v4867, 7
        %v4869 = vsub.s32 %v4866, %v4868
        %v4870 = vrot.slane %v4842, %v4869
        %v4871 = vcombine.low %v4849, %v4856
        %v4872 = vcombine.low %v4863, %v4870
        %v4874 = vunpack.c.l.s4 1966171168
        %v4875 = vunpack.c.0.s8 %v4874
        %v4876 = vlaneseq
        %v4877 = vshrl.u32 %v4876, 7
        %v4878 = vsub.s32 %v4875, %v4877
        %v4879 = vrot.slane %v4871, %v4878
        %v4881 = vunpack.c.l.s4 1966171168
        %v4882 = vunpack.c.0.s8 %v4881
        %v4883 = vlaneseq
        %v4884 = vshrl.u32 %v4883, 7
        %v4885 = vsub.s32 %v4882, %v4884
        %v4886 = vrot.slane %v4872, %v4885
        %v4887 = vcombine.low %v4879, %v4886
        %v4888 = vcombine.low %v4343, %v4344
        %v4889 = vcombine.low %v4345, %v4346
        %v4890 = vcombine.low %v4347, %v4348
        %v4891 = vcombine.low %v4349, %v4350
        %v4893 = vunpack.c.l.s4 1966171168
        %v4894 = vunpack.c.0.s8 %v4893
        %v4895 = vlaneseq
        %v4896 = vshrl.u32 %v4895, 7
        %v4897 = vsub.s32 %v4894, %v4896
        %v4898 = vrot.slane %v4888, %v4897
        %v4900 = vunpack.c.l.s4 1966171168
        %v4901 = vunpack.c.0.s8 %v4900
        %v4902 = vlaneseq
        %v4903 = vshrl.u32 %v4902, 7
        %v4904 = vsub.s32 %v4901, %v4903
        %v4905 = vrot.slane %v4889, %v4904
        %v4907 = vunpack.c.l.s4 1966171168
        %v4908 = vunpack.c.0.s8 %v4907
        %v4909 = vlaneseq
        %v4910 = vshrl.u32 %v4909, 7
        %v4911 = vsub.s32 %v4908, %v4910
        %v4912 = vrot.slane %v4890, %v4911
        %v4914 = vunpack.c.l.s4 1966171168
        %v4915 = vunpack.c.0.s8 %v4914
        %v4916 = vlaneseq
        %v4917 = vshrl.u32 %v4916, 7
        %v4918 = vsub.s32 %v4915, %v4917
        %v4919 = vrot.slane %v4891, %v4918
        %v4920 = vcombine.low %v4898, %v4905
        %v4921 = vcombine.low %v4912, %v4919
        %v4923 = vunpack.c.l.s4 1966171168
        %v4924 = vunpack.c.0.s8 %v4923
        %v4925 = vlaneseq
        %v4926 = vshrl.u32 %v4925, 7
        %v4927 = vsub.s32 %v4924, %v4926
        %v4928 = vrot.slane %v4920, %v4927
        %v4930 = vunpack.c.l.s4 1966171168
        %v4931 = vunpack.c.0.s8 %v4930
        %v4932 = vlaneseq
        %v4933 = vshrl.u32 %v4932, 7
        %v4934 = vsub.s32 %v4931, %v4933
        %v4935 = vrot.slane %v4921, %v4934
        %v4936 = vcombine.low %v4928, %v4935
        %v4937 = vcombine.low %v4351, %v4352
        %v4938 = vcombine.low %v4353, %v4354
        %v4939 = vcombine.low %v4355, %v4356
        %v4940 = vcombine.low %v4357, %v4358
        %v4942 = vunpack.c.l.s4 1966171168
        %v4943 = vunpack.c.0.s8 %v4942
        %v4944 = vlaneseq
        %v4945 = vshrl.u32 %v4944, 7
        %v4946 = vsub.s32 %v4943, %v4945
        %v4947 = vrot.slane %v4937, %v4946
        %v4949 = vunpack.c.l.s4 1966171168
        %v4950 = vunpack.c.0.s8 %v4949
        %v4951 = vlaneseq
        %v4952 = vshrl.u32 %v4951, 7
        %v4953 = vsub.s32 %v4950, %v4952
        %v4954 = vrot.slane %v4938, %v4953
        %v4956 = vunpack.c.l.s4 1966171168
        %v4957 = vunpack.c.0.s8 %v4956
        %v4958 = vlaneseq
        %v4959 = vshrl.u32 %v4958, 7
        %v4960 = vsub.s32 %v4957, %v4959
        %v4961 = vrot.slane %v4939, %v4960
        %v4963 = vunpack.c.l.s4 1966171168
        %v4964 = vunpack.c.0.s8 %v4963
        %v4965 = vlaneseq
        %v4966 = vshrl.u32 %v4965, 7
        %v4967 = vsub.s32 %v4964, %v4966
        %v4968 = vrot.slane %v4940, %v4967
        %v4969 = vcombine.low %v4947, %v4954
        %v4970 = vcombine.low %v4961, %v4968
        %v4972 = vunpack.c.l.s4 1966171168
        %v4973 = vunpack.c.0.s8 %v4972
        %v4974 = vlaneseq
        %v4975 = vshrl.u32 %v4974, 7
        %v4976 = vsub.s32 %v4973, %v4975
        %v4977 = vrot.slane %v4969, %v4976
        %v4979 = vunpack.c.l.s4 1966171168
        %v4980 = vunpack.c.0.s8 %v4979
        %v4981 = vlaneseq
        %v4982 = vshrl.u32 %v4981, 7
        %v4983 = vsub.s32 %v4980, %v4982
        %v4984 = vrot.slane %v4970, %v4983
        %v4985 = vcombine.low %v4977, %v4984
        %4997 = vst [vmem:[%s238] sm:$0xff] %v4495
        %4998 = vst [vmem:[%s238 + $0x8] sm:$0xff] %v4544
        %4999 = vst [vmem:[%s238 + $0x10] sm:$0xff] %v4593
        %5000 = vst [vmem:[%s238 + $0x18] sm:$0xff] %v4642
        %5001 = vst [vmem:[%s238 + $0x20] sm:$0xff] %v4691
        %5002 = vst [vmem:[%s238 + $0x28] sm:$0xff] %v4740
        %5003 = vst [vmem:[%s238 + $0x30] sm:$0xff] %v4789
        %5004 = vst [vmem:[%s238 + $0x38] sm:$0xff] %v4838
        %5005 = vst [vmem:[%s238 + $0x40] sm:$0xff] %v4887
        %5006 = vst [vmem:[%s238 + $0x48] sm:$0xff] %v4936
        %5007 = vst [vmem:[%s238 + $0x50] sm:$0xff] %v4985
        %s5008 = smul.u32 88, %s18
        %p5009 = scmp.lt.s32.totalorder %s5008, 703
        %s5010 = scalar_select %p5009, %s5008, 703
        %s5011 = scalar_lea.vmem %s3, %s5010
        // Predicated region
        $region45: #{conv_transpose_1x1_clamp.1} parent=31 // pred_check
          %p5012 = pneg %p109
        $region46: #{conv_transpose_1x1_clamp.1} parent=31 // pred_check_branch
          %5014 = sbr.rel (%p5012) target = $region48
        $region47: #{conv_transpose_1x1_clamp.1} parent=31 // pred_region
          %s5015 = smul.u32 88, %s18
        $region48: #{conv_transpose_1x1_clamp.1} parent=31 // pred_fallthru
          _
      $region32: #{conv_transpose_1x1_clamp.1} parent=5 // pred_fallthru
        _
      %p5016 = scmp.le.s32.totalorder 2, %s13
      // Predicated region
      $region49: #{conv_transpose_1x1_clamp.1} parent=5 // pred_check
        %p5017 = pneg %p5016
      $region50: #{conv_transpose_1x1_clamp.1} parent=5 // pred_check_branch
        %5019 = sbr.rel (%p5017) target = $region52
      $region51: #{conv_transpose_1x1_clamp.1} parent=5 // pred_region
        %s5020 = ssub.s32 %s13, 2
        // Predicated region
        $region53: #{conv_transpose_1x1_clamp.1} parent=51 // pred_check
          %p5021 = pneg %p115
        $region54: #{conv_transpose_1x1_clamp.1} parent=51 // pred_check_branch
          %5023 = sbr.rel (%p5021) target = $region56
        $region55: #{conv_transpose_1x1_clamp.1} parent=51 // pred_region
          %s5024 = smul.u32 88, %s19
          %p5025 = scmp.lt.s32.totalorder %s5024, 703
          %s5026 = scalar_select %p5025, %s5024, 703
          %s5027 = scalar_lea.vmem %s3, %s5026
        $region56: #{conv_transpose_1x1_clamp.1} parent=51 // pred_fallthru
          _
      $region52: #{conv_transpose_1x1_clamp.1} parent=5 // pred_fallthru
        _
    $region6: #{conv_transpose_1x1_clamp.1} parent=1 // loop_footer
      %s17 = sadd.s32 1, %s13
    $region7: #{conv_transpose_1x1_clamp.1} parent=1 // loop_footer_branch
      %12 = sbr.rel target = $region3
    $region8: #{conv_transpose_1x1_clamp.1} parent=1 // loop_exit
      _
    %5028 = vsyncpa [#allocation3], 1
    %s5029 = scalar_lea.sflag [#allocation3], 1
    %5030 = vsyncpa %s5029, 1
    %5031 = vsyncpa [#allocation5], 1
    %s5032 = scalar_lea.sflag [#allocation5], 1
    %5033 = vsyncpa %s5032, 1

</llo_original>
